<compile_context>
chip_gen: v5e
topology: v5e:2x2
jax: 0.10.0
libtpu: 0.0.40
codegen_flags: <defaults>
</compile_context>

<pallas_src>
import functools

import numpy as np
import jax
import jax.numpy as jnp
from jax.experimental import pallas as pl
from jax.experimental.pallas import tpu as pltpu


def _shift_matrices(h, w):
    """M[t, q, p] = 1 iff flat input position q feeds flat output position p
    for tap t = kh*3 + kw of a 3x3, stride-1, pad-1 depthwise conv."""
    hw = h * w
    m = np.zeros((9, hw, hw), np.float32)
    for kh in range(3):
        for kw in range(3):
            t = kh * 3 + kw
            dh, dw = kh - 1, kw - 1
            for ph in range(h):
                for pw in range(w):
                    qh, qw = ph + dh, pw + dw
                    if 0 <= qh < h and 0 <= qw < w:
                        m[t, qh * w + qw, ph * w + pw] = 1.0
    return m


def _relu_dwconv_kernel(x_ref, w_ref, m_ref, o_ref, *, csub, hw):
    """x_ref: (CBLK, HW)  w_ref: (CBLK, 9)  m_ref: (9, HW, HW)  o_ref: (CBLK, HW)."""
    nsub = x_ref.shape[0] // csub

    def body(j, carry):
        c0 = j * csub
        if csub % 8 == 0:
            c0 = pl.multiple_of(c0, 8)           # sublane-aligned chunk start

        # ReLU applied per chunk (never materialize the whole ReLU'd tensor).
        xr = jnp.maximum(x_ref[pl.ds(c0, csub), :], 0.0)          # (csub, hw) f32
        acc = jnp.zeros((csub, hw), jnp.float32)

        for t in range(9):
            # Shift+zero-pad via constant 0/1 matrix on the MXU (exact gather).
            sh = jnp.dot(
                xr, m_ref[t],
                preferred_element_type=jnp.float32,
                precision=jax.lax.Precision.HIGHEST,
            )                                                     # (csub, hw)
            wt = w_ref[pl.ds(c0, csub), pl.ds(t, 1)]              # (csub, 1)
            acc = acc + sh * wt                                   # lane-broadcast

        o_ref[pl.ds(c0, csub), :] = acc.astype(o_ref.dtype)
        return carry

    jax.lax.fori_loop(0, nsub, body, 0)


def _largest_divisor(n, limit, mult):
    best = n
    for d in range(mult, limit + 1, mult):
        if n % d == 0:
            best = d
    return best


@jax.jit
def relu_dwconv3x3(x_nchw, w_oihw):
    """x_nchw: (N, C, H, W) f32; w_oihw: (C, 1, 3, 3) f32 depthwise weights."""
    n, c, h, w = x_nchw.shape
    assert w_oihw.shape == (c, 1, 3, 3)
    hw = h * w
    rows = n * c

    # Free, contiguous reshapes -- no HBM relayout.
    x2 = x_nchw.reshape(rows, hw)
    w2 = w_oihw.reshape(c, 9)
    if n > 1:
        w2 = jnp.tile(w2, (n, 1))
    m = jnp.asarray(_shift_matrices(h, w))        # compile-time constant (9,hw,hw)

    # 2-way channel split only (v7x megacore); deeper sequential grids would
    # just add per-step overhead at this problem size.
    grid = 2 if (rows % 16 == 0 and rows >= 16) else 1
    cblk = rows // grid
    csub = _largest_divisor(cblk, 96, 8) if cblk % 8 == 0 else cblk

    kernel = functools.partial(_relu_dwconv_kernel, csub=csub, hw=hw)

    out2 = pl.pallas_call(
        kernel,
        out_shape=jax.ShapeDtypeStruct((rows, hw), x_nchw.dtype),
        grid=(grid,),
        in_specs=[
            pl.BlockSpec((cblk, hw), lambda i: (i, 0)),
            pl.BlockSpec((cblk, 9), lambda i: (i, 0)),
            pl.BlockSpec((9, hw, hw), lambda i: (0, 0, 0)),
        ],
        out_specs=pl.BlockSpec((cblk, hw), lambda i: (i, 0)),
        compiler_params=pltpu.CompilerParams(
            dimension_semantics=("parallel",)),
    )(x2, w2, m)

    return out2.reshape(n, c, h, w)


def reference(x_nchw, w_oihw):
    """Pure-JAX reference: ReLU + grouped (depthwise) conv, NCHW."""
    c = x_nchw.shape[1]
    y = jnp.maximum(x_nchw, 0.0)
    return jax.lax.conv_general_dilated(
        y, w_oihw,
        window_strides=(1, 1),
        padding=((1, 1), (1, 1)),
        dimension_numbers=("NCHW", "OIHW", "NCHW"),
        feature_group_count=c,
        precision=jax.lax.Precision.HIGHEST,
    )


if __name__ == "__main__":
    key = jax.random.PRNGKey(0)
    kx, kw = jax.random.split(key)

    # Shapes from the PyTorch module: (1, 864, 7, 7), depthwise (864, 1, 3, 3).
    N, C, H, W = 1, 864, 7, 7
    x = jax.random.normal(kx, (N, C, H, W), dtype=jnp.float32)
    wt = jax.random.normal(kw, (C, 1, 3, 3), dtype=jnp.float32) * 0.1

    out = relu_dwconv3x3(x, wt)
    out = jax.block_until_ready(out)

    ref = reference(x, wt)
    assert out.shape == (N, C, H, W)
    max_err = float(jnp.max(jnp.abs(out - ref)))
    assert jnp.allclose(out, ref, atol=2e-3, rtol=2e-3), \
        f"mismatch vs reference (max abs err {max_err})"

    print("KERNEL_OK")
</pallas_src>

<mosaic_0001>
module attributes {stable_mosaic.version = 11 : i64} {
  func.func @_relu_dwconv_kernel(%arg0: i32, %arg1: memref<432x49xf32, #tpu.memory_space<vmem>>, %arg2: memref<432x9xf32, #tpu.memory_space<vmem>>, %arg3: memref<9x49x49xf32, #tpu.memory_space<vmem>>, %arg4: memref<432x49xf32, #tpu.memory_space<vmem>>) attributes {dimension_semantics = [#tpu.dimension_semantics<parallel>], iteration_bounds = array<i64: 2>, scalar_prefetch = 0 : i64, scratch_operands = 0 : i64, tpu.core_type = #tpu.core_type<tc>, window_params = [{transform_indices = @transform_0, window_bounds = array<i64: 432, 49>}, {transform_indices = @transform_1, window_bounds = array<i64: 432, 9>}, {pipeline_mode = #tpu.pipeline_mode<synchronous>, transform_indices = @transform_2, window_bounds = array<i64: 9, 49, 49>}, {transform_indices = @transform_3, window_bounds = array<i64: 432, 49>}]} {
    %c0_i32 = arith.constant 0 : i32
    %c6_i32 = arith.constant 6 : i32
    %0 = arith.addi %c0_i32, %c6_i32 : i32
    %c1_i32 = arith.constant 1 : i32
    scf.for %arg5 = %c0_i32 to %0 step %c1_i32  : i32 {
      %c72_i32 = arith.constant 72 : i32
      %1 = arith.muli %arg5, %c72_i32 : i32
      %2 = tpu.assume_multiple %1, 8 : i32
      %3 = arith.index_cast %2 : i32 to index
      %c0 = arith.constant 0 : index
      %4 = vector.load %arg1[%3, %c0] : memref<432x49xf32, #tpu.memory_space<vmem>>, vector<72x49xf32>
      %cst = arith.constant 0.000000e+00 : f32
      %5 = vector.broadcast %cst : f32 to vector<72x49xf32>
      %6 = arith.maximumf %4, %5 : vector<72x49xf32>
      %cst_1 = arith.constant 0.000000e+00 : f32
      %7 = vector.broadcast %cst_1 : f32 to vector<72x49xf32>
      %c0_2 = arith.constant 0 : index
      %c0_3 = arith.constant 0 : index
      %c0_4 = arith.constant 0 : index
      %8 = vector.load %arg3[%c0_2, %c0_3, %c0_4] : memref<9x49x49xf32, #tpu.memory_space<vmem>>, vector<1x49x49xf32>
      %9 = vector.shape_cast %8 : vector<1x49x49xf32> to vector<49x49xf32>
      %cst_5 = arith.constant dense<0.000000e+00> : vector<72x49xf32>
      %10 = tpu.matmul %6, %9, %cst_5 {dimension_numbers = #tpu.dot_dimension_numbers<[1], [0], [0], [1], [0, 0, 1, 1], [], []>, precision = #tpu.contract_precision<fp32>} : vector<72x49xf32>, vector<49x49xf32>, vector<72x49xf32> -> vector<72x49xf32>
      %11 = arith.index_cast %2 : i32 to index
      %c0_6 = arith.constant 0 : index
      %12 = vector.load %arg2[%11, %c0_6] : memref<432x9xf32, #tpu.memory_space<vmem>>, vector<72x1xf32>
      %13 = vector.broadcast %12 : vector<72x1xf32> to vector<72x49xf32>
      %14 = arith.mulf %10, %13 : vector<72x49xf32>
      %15 = arith.addf %7, %14 : vector<72x49xf32>
      %c1 = arith.constant 1 : index
      %c0_7 = arith.constant 0 : index
      %c0_8 = arith.constant 0 : index
      %16 = vector.load %arg3[%c1, %c0_7, %c0_8] : memref<9x49x49xf32, #tpu.memory_space<vmem>>, vector<1x49x49xf32>
      %17 = vector.shape_cast %16 : vector<1x49x49xf32> to vector<49x49xf32>
      %cst_9 = arith.constant dense<0.000000e+00> : vector<72x49xf32>
      %18 = tpu.matmul %6, %17, %cst_9 {dimension_numbers = #tpu.dot_dimension_numbers<[1], [0], [0], [1], [0, 0, 1, 1], [], []>, precision = #tpu.contract_precision<fp32>} : vector<72x49xf32>, vector<49x49xf32>, vector<72x49xf32> -> vector<72x49xf32>
      %19 = arith.index_cast %2 : i32 to index
      %c1_10 = arith.constant 1 : index
      %20 = vector.load %arg2[%19, %c1_10] : memref<432x9xf32, #tpu.memory_space<vmem>>, vector<72x1xf32>
      %21 = vector.broadcast %20 : vector<72x1xf32> to vector<72x49xf32>
      %22 = arith.mulf %18, %21 : vector<72x49xf32>
      %23 = arith.addf %15, %22 : vector<72x49xf32>
      %c2 = arith.constant 2 : index
      %c0_11 = arith.constant 0 : index
      %c0_12 = arith.constant 0 : index
      %24 = vector.load %arg3[%c2, %c0_11, %c0_12] : memref<9x49x49xf32, #tpu.memory_space<vmem>>, vector<1x49x49xf32>
      %25 = vector.shape_cast %24 : vector<1x49x49xf32> to vector<49x49xf32>
      %cst_13 = arith.constant dense<0.000000e+00> : vector<72x49xf32>
      %26 = tpu.matmul %6, %25, %cst_13 {dimension_numbers = #tpu.dot_dimension_numbers<[1], [0], [0], [1], [0, 0, 1, 1], [], []>, precision = #tpu.contract_precision<fp32>} : vector<72x49xf32>, vector<49x49xf32>, vector<72x49xf32> -> vector<72x49xf32>
      %27 = arith.index_cast %2 : i32 to index
      %c2_14 = arith.constant 2 : index
      %28 = vector.load %arg2[%27, %c2_14] : memref<432x9xf32, #tpu.memory_space<vmem>>, vector<72x1xf32>
      %29 = vector.broadcast %28 : vector<72x1xf32> to vector<72x49xf32>
      %30 = arith.mulf %26, %29 : vector<72x49xf32>
      %31 = arith.addf %23, %30 : vector<72x49xf32>
      %c3 = arith.constant 3 : index
      %c0_15 = arith.constant 0 : index
      %c0_16 = arith.constant 0 : index
      %32 = vector.load %arg3[%c3, %c0_15, %c0_16] : memref<9x49x49xf32, #tpu.memory_space<vmem>>, vector<1x49x49xf32>
      %33 = vector.shape_cast %32 : vector<1x49x49xf32> to vector<49x49xf32>
      %cst_17 = arith.constant dense<0.000000e+00> : vector<72x49xf32>
      %34 = tpu.matmul %6, %33, %cst_17 {dimension_numbers = #tpu.dot_dimension_numbers<[1], [0], [0], [1], [0, 0, 1, 1], [], []>, precision = #tpu.contract_precision<fp32>} : vector<72x49xf32>, vector<49x49xf32>, vector<72x49xf32> -> vector<72x49xf32>
      %35 = arith.index_cast %2 : i32 to index
      %c3_18 = arith.constant 3 : index
      %36 = vector.load %arg2[%35, %c3_18] : memref<432x9xf32, #tpu.memory_space<vmem>>, vector<72x1xf32>
      %37 = vector.broadcast %36 : vector<72x1xf32> to vector<72x49xf32>
      %38 = arith.mulf %34, %37 : vector<72x49xf32>
      %39 = arith.addf %31, %38 : vector<72x49xf32>
      %c4 = arith.constant 4 : index
      %c0_19 = arith.constant 0 : index
      %c0_20 = arith.constant 0 : index
      %40 = vector.load %arg3[%c4, %c0_19, %c0_20] : memref<9x49x49xf32, #tpu.memory_space<vmem>>, vector<1x49x49xf32>
      %41 = vector.shape_cast %40 : vector<1x49x49xf32> to vector<49x49xf32>
      %cst_21 = arith.constant dense<0.000000e+00> : vector<72x49xf32>
      %42 = tpu.matmul %6, %41, %cst_21 {dimension_numbers = #tpu.dot_dimension_numbers<[1], [0], [0], [1], [0, 0, 1, 1], [], []>, precision = #tpu.contract_precision<fp32>} : vector<72x49xf32>, vector<49x49xf32>, vector<72x49xf32> -> vector<72x49xf32>
      %43 = arith.index_cast %2 : i32 to index
      %c4_22 = arith.constant 4 : index
      %44 = vector.load %arg2[%43, %c4_22] : memref<432x9xf32, #tpu.memory_space<vmem>>, vector<72x1xf32>
      %45 = vector.broadcast %44 : vector<72x1xf32> to vector<72x49xf32>
      %46 = arith.mulf %42, %45 : vector<72x49xf32>
      %47 = arith.addf %39, %46 : vector<72x49xf32>
      %c5 = arith.constant 5 : index
      %c0_23 = arith.constant 0 : index
      %c0_24 = arith.constant 0 : index
      %48 = vector.load %arg3[%c5, %c0_23, %c0_24] : memref<9x49x49xf32, #tpu.memory_space<vmem>>, vector<1x49x49xf32>
      %49 = vector.shape_cast %48 : vector<1x49x49xf32> to vector<49x49xf32>
      %cst_25 = arith.constant dense<0.000000e+00> : vector<72x49xf32>
      %50 = tpu.matmul %6, %49, %cst_25 {dimension_numbers = #tpu.dot_dimension_numbers<[1], [0], [0], [1], [0, 0, 1, 1], [], []>, precision = #tpu.contract_precision<fp32>} : vector<72x49xf32>, vector<49x49xf32>, vector<72x49xf32> -> vector<72x49xf32>
      %51 = arith.index_cast %2 : i32 to index
      %c5_26 = arith.constant 5 : index
      %52 = vector.load %arg2[%51, %c5_26] : memref<432x9xf32, #tpu.memory_space<vmem>>, vector<72x1xf32>
      %53 = vector.broadcast %52 : vector<72x1xf32> to vector<72x49xf32>
      %54 = arith.mulf %50, %53 : vector<72x49xf32>
      %55 = arith.addf %47, %54 : vector<72x49xf32>
      %c6 = arith.constant 6 : index
      %c0_27 = arith.constant 0 : index
      %c0_28 = arith.constant 0 : index
      %56 = vector.load %arg3[%c6, %c0_27, %c0_28] : memref<9x49x49xf32, #tpu.memory_space<vmem>>, vector<1x49x49xf32>
      %57 = vector.shape_cast %56 : vector<1x49x49xf32> to vector<49x49xf32>
      %cst_29 = arith.constant dense<0.000000e+00> : vector<72x49xf32>
      %58 = tpu.matmul %6, %57, %cst_29 {dimension_numbers = #tpu.dot_dimension_numbers<[1], [0], [0], [1], [0, 0, 1, 1], [], []>, precision = #tpu.contract_precision<fp32>} : vector<72x49xf32>, vector<49x49xf32>, vector<72x49xf32> -> vector<72x49xf32>
      %59 = arith.index_cast %2 : i32 to index
      %c6_30 = arith.constant 6 : index
      %60 = vector.load %arg2[%59, %c6_30] : memref<432x9xf32, #tpu.memory_space<vmem>>, vector<72x1xf32>
      %61 = vector.broadcast %60 : vector<72x1xf32> to vector<72x49xf32>
      %62 = arith.mulf %58, %61 : vector<72x49xf32>
      %63 = arith.addf %55, %62 : vector<72x49xf32>
      %c7 = arith.constant 7 : index
      %c0_31 = arith.constant 0 : index
      %c0_32 = arith.constant 0 : index
      %64 = vector.load %arg3[%c7, %c0_31, %c0_32] : memref<9x49x49xf32, #tpu.memory_space<vmem>>, vector<1x49x49xf32>
      %65 = vector.shape_cast %64 : vector<1x49x49xf32> to vector<49x49xf32>
      %cst_33 = arith.constant dense<0.000000e+00> : vector<72x49xf32>
      %66 = tpu.matmul %6, %65, %cst_33 {dimension_numbers = #tpu.dot_dimension_numbers<[1], [0], [0], [1], [0, 0, 1, 1], [], []>, precision = #tpu.contract_precision<fp32>} : vector<72x49xf32>, vector<49x49xf32>, vector<72x49xf32> -> vector<72x49xf32>
      %67 = arith.index_cast %2 : i32 to index
      %c7_34 = arith.constant 7 : index
      %68 = vector.load %arg2[%67, %c7_34] : memref<432x9xf32, #tpu.memory_space<vmem>>, vector<72x1xf32>
      %69 = vector.broadcast %68 : vector<72x1xf32> to vector<72x49xf32>
      %70 = arith.mulf %66, %69 : vector<72x49xf32>
      %71 = arith.addf %63, %70 : vector<72x49xf32>
      %c8 = arith.constant 8 : index
      %c0_35 = arith.constant 0 : index
      %c0_36 = arith.constant 0 : index
      %72 = vector.load %arg3[%c8, %c0_35, %c0_36] : memref<9x49x49xf32, #tpu.memory_space<vmem>>, vector<1x49x49xf32>
      %73 = vector.shape_cast %72 : vector<1x49x49xf32> to vector<49x49xf32>
      %cst_37 = arith.constant dense<0.000000e+00> : vector<72x49xf32>
      %74 = tpu.matmul %6, %73, %cst_37 {dimension_numbers = #tpu.dot_dimension_numbers<[1], [0], [0], [1], [0, 0, 1, 1], [], []>, precision = #tpu.contract_precision<fp32>} : vector<72x49xf32>, vector<49x49xf32>, vector<72x49xf32> -> vector<72x49xf32>
      %75 = arith.index_cast %2 : i32 to index
      %c8_38 = arith.constant 8 : index
      %76 = vector.load %arg2[%75, %c8_38] : memref<432x9xf32, #tpu.memory_space<vmem>>, vector<72x1xf32>
      %77 = vector.broadcast %76 : vector<72x1xf32> to vector<72x49xf32>
      %78 = arith.mulf %74, %77 : vector<72x49xf32>
      %79 = arith.addf %71, %78 : vector<72x49xf32>
      %80 = arith.index_cast %2 : i32 to index
      %c0_39 = arith.constant 0 : index
      %81 = vector.load %arg4[%80, %c0_39] : memref<432x49xf32, #tpu.memory_space<vmem>>, vector<72x49xf32>
      tpu.vector_store %arg4[%80, %c0_39], %79 {strides = array<i32>} : memref<432x49xf32, #tpu.memory_space<vmem>>, vector<72x49xf32>,
    }
    %c6_i32_0 = arith.constant 6 : i32
    return
  }
  func.func @transform_0(%arg0: i32) -> (i32, i32) {
    %c0_i32 = arith.constant 0 : i32
    %c0_i32_0 = arith.constant 0 : i32
    return %arg0, %c0_i32 : i32, i32
  }
  func.func @transform_1(%arg0: i32) -> (i32, i32) {
    %c0_i32 = arith.constant 0 : i32
    %c0_i32_0 = arith.constant 0 : i32
    return %arg0, %c0_i32 : i32, i32
  }
  func.func @transform_2(%arg0: i32) -> (i32, i32, i32) {
    %c0_i32 = arith.constant 0 : i32
    %c0_i32_0 = arith.constant 0 : i32
    %c0_i32_1 = arith.constant 0 : i32
    %c0_i32_2 = arith.constant 0 : i32
    return %c0_i32, %c0_i32_0, %c0_i32_1 : i32, i32, i32
  }
  func.func @transform_3(%arg0: i32) -> (i32, i32) {
    %c0_i32 = arith.constant 0 : i32
    %c0_i32_0 = arith.constant 0 : i32
    return %arg0, %c0_i32 : i32, i32
  }
}

</mosaic_0001>

<llo_original>
// kernel: relu_dwconv3x3.1
$region0: #{relu_dwconv3x3.1}
  #allocation0 [shape = 'u32[]', space=smem, size = 0x4, offset = 0x4, fixed_abs, tag = 'smem constant byte address 0x4 - core index']
  #allocation1 [shape = 'u32[72,128]{1,0:T(1,128)}', space=vmem, size = 0x9000, scoped, tag = 'internal scratch']
  %s0 = inlined_call_operand.vmem [shape: f32[864,49], index: 0, kind: input, shape index: {}]
  %s1 = inlined_call_operand.vmem [shape: f32[864,9], index: 1, kind: input, shape index: {}]
  %s2 = inlined_call_operand.vmem [shape: f32[9,49,49], index: 2, kind: input, shape index: {}]
  %s3 = inlined_call_operand.vmem [shape: f32[864,49], index: 3, kind: output, shape index: {}]
  %s4 = sld [smem:[#allocation0]]
  $region52: #{relu_dwconv3x3.1} parent=0
    _
  %s6 = ssub.s32 1, %s4
  %s7 = scalar_select 0, %s6, %s4
  loop: start=0, step=1, limit=4
  $region2: #{relu_dwconv3x3.1} parent=0 // loop_pre_header
    _
  $region3: #{relu_dwconv3x3.1} parent=0 // loop_header
    %s9 = sphi 0, %s13
    %p10 = scmp.ge.s32.totalorder %s9, 4
    %s19 = sphi 0, %s21
    %s22 = sphi 0, %s19
    %s23 = sphi 0, %s22
    %s39 = sphi 0, %s23
    %s45 = sphi 0, %s47
    %s48 = sphi 0, %s45
    %s49 = sphi 0, %s48
    %s65 = sphi 0, %s49
    %s69 = sphi 0, %s69
    %s71 = sphi 0, %s69
    %s72 = sphi 0, %s71
    %s86 = sphi 0, %s72
    %s92 = sphi 0, %s94
    %s95 = sphi 0, %s92
    %s96 = sphi 0, %s95
    %s112 = sphi 0, %s96
  $region4: #{relu_dwconv3x3.1} parent=0 // loop_header_branch
    %12 = sbr.rel (%p10) target = $region8
  $region5: #{relu_dwconv3x3.1} parent=0 // loop_body
    %s14 = ssub.s32 %s9, 1
    %s15 = ssub.s32 %s9, 2
    %s16 = sadd.s32 %s9, 1
    %s17 = ssub.s32 %s9, %s16
    %p18 = scmp.eq.s32.totalorder %s17, 0
    %s20 = sadd.s32 %s19, 1
    %s21 = scalar_select %p18, %s19, %s20
    %p24 = pneg %p18
    %p25 = scmp.eq.s32.totalorder %s9, 1
    %p26 = por %p24, %p25
    %p27 = scmp.ne.s32.totalorder %s19, %s22
    %p28 = scmp.eq.s32.totalorder %s9, 0
    %p29 = por %p27, %p28
    %p30 = scmp.ne.s32.totalorder %s19, %s22
    %p31 = scmp.eq.s32.totalorder %s14, 1
    %p32 = por %p30, %p31
    %p33 = scmp.ne.s32.totalorder %s22, %s23
    %p34 = scmp.eq.s32.totalorder %s14, 0
    %p35 = por %p33, %p34
    %p36 = scmp.ne.s32.totalorder %s22, %s23
    %p37 = scmp.eq.s32.totalorder %s15, 1
    %p38 = por %p36, %p37
    %p40 = scmp.ne.s32.totalorder %s23, %s39
    %p41 = scmp.eq.s32.totalorder %s15, 0
    %p42 = por %p40, %p41
    %s43 = ssub.s32 %s9, %s16
    %p44 = scmp.eq.s32.totalorder %s43, 0
    %s46 = sadd.s32 %s45, 1
    %s47 = scalar_select %p44, %s45, %s46
    %p50 = pneg %p44
    %p51 = scmp.eq.s32.totalorder %s9, 1
    %p52 = por %p50, %p51
    %p53 = scmp.ne.s32.totalorder %s45, %s48
    %p54 = scmp.eq.s32.totalorder %s9, 0
    %p55 = por %p53, %p54
    %p56 = scmp.ne.s32.totalorder %s45, %s48
    %p57 = scmp.eq.s32.totalorder %s14, 1
    %p58 = por %p56, %p57
    %p59 = scmp.ne.s32.totalorder %s48, %s49
    %p60 = scmp.eq.s32.totalorder %s14, 0
    %p61 = por %p59, %p60
    %p62 = scmp.ne.s32.totalorder %s48, %s49
    %p63 = scmp.eq.s32.totalorder %s15, 1
    %p64 = por %p62, %p63
    %p66 = scmp.ne.s32.totalorder %s49, %s65
    %p67 = scmp.eq.s32.totalorder %s15, 0
    %p68 = por %p66, %p67
    %s70 = sadd.s32 %s69, 1
    %p73 = scmp.eq.s32.totalorder %s9, 1
    %p74 = scmp.ne.s32.totalorder %s69, %s71
    %p75 = scmp.eq.s32.totalorder %s9, 0
    %p76 = por %p74, %p75
    %p77 = scmp.ne.s32.totalorder %s69, %s71
    %p78 = scmp.eq.s32.totalorder %s14, 1
    %p79 = por %p77, %p78
    %p80 = scmp.ne.s32.totalorder %s71, %s72
    %p81 = scmp.eq.s32.totalorder %s14, 0
    %p82 = por %p80, %p81
    %p83 = scmp.ne.s32.totalorder %s71, %s72
    %p84 = scmp.eq.s32.totalorder %s15, 1
    %p85 = por %p83, %p84
    %p87 = scmp.ne.s32.totalorder %s72, %s86
    %p88 = scmp.eq.s32.totalorder %s15, 0
    %p89 = por %p87, %p88
    %s90 = ssub.s32 %s9, %s16
    %p91 = scmp.eq.s32.totalorder %s90, 0
    %s93 = sadd.s32 %s92, 1
    %s94 = scalar_select %p91, %s92, %s93
    %p97 = pneg %p91
    %p98 = scmp.eq.s32.totalorder %s9, 1
    %p99 = por %p97, %p98
    %p100 = scmp.ne.s32.totalorder %s92, %s95
    %p101 = scmp.eq.s32.totalorder %s9, 0
    %p102 = por %p100, %p101
    %p103 = scmp.ne.s32.totalorder %s92, %s95
    %p104 = scmp.eq.s32.totalorder %s14, 1
    %p105 = por %p103, %p104
    %p106 = scmp.ne.s32.totalorder %s95, %s96
    %p107 = scmp.eq.s32.totalorder %s14, 0
    %p108 = por %p106, %p107
    %p109 = scmp.ne.s32.totalorder %s95, %s96
    %p110 = scmp.eq.s32.totalorder %s15, 1
    %p111 = por %p109, %p110
    %p113 = scmp.ne.s32.totalorder %s96, %s112
    %p114 = scmp.eq.s32.totalorder %s15, 0
    %p115 = por %p113, %p114
    %p116 = scmp.le.s32.totalorder 1, %s9
    %p117 = scmp.lt.s32.totalorder %s9, 3
    %p118 = pnand %p116, %p117
    %p119 = pneg %p118
    // Predicated region
    $region9: #{relu_dwconv3x3.1} parent=5 // pred_check
      _
    $region10: #{relu_dwconv3x3.1} parent=5 // pred_check_branch
      %121 = sbr.rel (%p118) target = $region12
    $region11: #{relu_dwconv3x3.1} parent=5 // pred_region
      %s122 = ssub.s32 %s9, 1
      // Predicated region
      $region13: #{relu_dwconv3x3.1} parent=11 // pred_check
        %p123 = pneg %p82
      $region14: #{relu_dwconv3x3.1} parent=11 // pred_check_branch
        %125 = sbr.rel (%p123) target = $region16
      $region15: #{relu_dwconv3x3.1} parent=11 // pred_region
        _
      $region16: #{relu_dwconv3x3.1} parent=11 // pred_fallthru
        _
    $region12: #{relu_dwconv3x3.1} parent=5 // pred_fallthru
      _
    %p126 = scmp.lt.s32.totalorder %s9, 2
    // Predicated region
    $region17: #{relu_dwconv3x3.1} parent=5 // pred_check
      %p127 = pneg %p126
    $region18: #{relu_dwconv3x3.1} parent=5 // pred_check_branch
      %129 = sbr.rel (%p127) target = $region20
    $region19: #{relu_dwconv3x3.1} parent=5 // pred_region
      // Predicated region
      $region21: #{relu_dwconv3x3.1} parent=19 // pred_check
        %p130 = pneg %p29
      $region22: #{relu_dwconv3x3.1} parent=19 // pred_check_branch
        %132 = sbr.rel (%p130) target = $region24
      $region23: #{relu_dwconv3x3.1} parent=19 // pred_region
        %s133 = smul.u32 54, %s9
        %p134 = scmp.lt.s32.totalorder %s133, 107
        %s135 = scalar_select %p134, %s133, 107
        %s136 = smul.addr %s135, 8
        %s137 = scalar_lea.vmem %s0, %s136
        %s138 = smul.u32 54, %s9
      $region24: #{relu_dwconv3x3.1} parent=19 // pred_fallthru
        _
      // Predicated region
      $region25: #{relu_dwconv3x3.1} parent=19 // pred_check
        %p139 = pneg %p55
      $region26: #{relu_dwconv3x3.1} parent=19 // pred_check_branch
        %141 = sbr.rel (%p139) target = $region28
      $region27: #{relu_dwconv3x3.1} parent=19 // pred_region
        %s142 = smul.u32 54, %s9
        %p143 = scmp.lt.s32.totalorder %s142, 107
        %s144 = scalar_select %p143, %s142, 107
        %s145 = smul.addr %s144, 8
        %s146 = scalar_lea.vmem %s1, %s145
        %s147 = smul.u32 54, %s9
      $region28: #{relu_dwconv3x3.1} parent=19 // pred_fallthru
        _
    $region20: #{relu_dwconv3x3.1} parent=5 // pred_fallthru
      _
    %p148 = scmp.le.s32.totalorder 1, %s9
    %p149 = scmp.lt.s32.totalorder %s9, 3
    %p150 = pnand %p148, %p149
    %p151 = pneg %p150
    // Predicated region
    $region29: #{relu_dwconv3x3.1} parent=5 // pred_check
      _
    $region30: #{relu_dwconv3x3.1} parent=5 // pred_check_branch
      %153 = sbr.rel (%p150) target = $region32
    $region31: #{relu_dwconv3x3.1} parent=5 // pred_region
      %s154 = ssub.s32 %s9, 1
      %s155 = smul.u32 54, %s14
      %p156 = scmp.lt.s32.totalorder %s155, 107
      %s157 = scalar_select %p156, %s155, 107
      %s158 = smul.addr %s157, 8
      %s159 = scalar_lea.vmem %s0, %s158
      %p160 = pneg %p35
      %p161 = pneg %p32
      %s162 = smul.u32 54, %s14
      %p163 = scmp.lt.s32.totalorder %s162, 107
      %s164 = scalar_select %p163, %s162, 107
      %s165 = smul.addr %s164, 8
      %s166 = scalar_lea.vmem %s1, %s165
      %p167 = pneg %p61
      %p168 = pneg %p58
      %p169 = pneg %p82
      %p170 = pneg %p79
      %p171 = pneg %p108
      %p172 = pneg %p105
      %s173 = smul.u32 54, %s14
      %p174 = scmp.lt.s32.totalorder %s173, 107
      %s175 = scalar_select %p174, %s173, 107
      %s176 = smul.addr %s175, 8
      %s177 = scalar_lea.vmem %s3, %s176
      %s178 = smul.u32 54, %s14
      %p179 = scmp.lt.s32.totalorder %s178, 107
      %s180 = scalar_select %p179, %s178, 107
      %s181 = smul.addr %s180, 8
      %s182 = scalar_lea.vmem %s0, %s181
      %s183 = smul.u32 54, %s14
      %s184 = smul.u32 54, %s14
      %p185 = scmp.lt.s32.totalorder %s184, 107
      %s186 = scalar_select %p185, %s184, 107
      %s187 = smul.addr %s186, 8
      %s188 = scalar_lea.vmem %s1, %s187
      %s189 = smul.u32 54, %s14
      %s190 = smul.u32 54, %s14
      %p191 = scmp.lt.s32.totalorder %s190, 107
      %s192 = scalar_select %p191, %s190, 107
      %s193 = smul.addr %s192, 8
      %s194 = scalar_lea.vmem %s3, %s193
      %s195 = smul.u32 54, %s14
      loop: start=0, step=1, limit=6
      $region33: #{relu_dwconv3x3.1} parent=31 // loop_pre_header
        _
      $region34: #{relu_dwconv3x3.1} parent=31 // loop_header
        %s197 = sphi 0, %s201
        %p198 = scmp.ge.s32.totalorder %s197, 6
      $region35: #{relu_dwconv3x3.1} parent=31 // loop_header_branch
        %200 = sbr.rel (%p198) target = $region39
      $region36: #{relu_dwconv3x3.1} parent=31 // loop_body
        %s202 = smul.u32 %s197, 72
        %s203 = scalar_lea.vmem %s182, %s202
        %v204 = vld [vmem:[%s203] sm:$0xff]
        %v205 = vld [vmem:[%s203 + $0x8] sm:$0xff]
        %v206 = vld [vmem:[%s203 + $0x10] sm:$0xff]
        %v207 = vld [vmem:[%s203 + $0x18] sm:$0xff]
        %v208 = vld [vmem:[%s203 + $0x20] sm:$0xff]
        %v209 = vld [vmem:[%s203 + $0x28] sm:$0xff]
        %v210 = vld [vmem:[%s203 + $0x30] sm:$0xff]
        %v211 = vld [vmem:[%s203 + $0x38] sm:$0xff]
        %v212 = vld [vmem:[%s203 + $0x40] sm:$0xff]
        %v213 = vmax.f32 %v204, 0.0
        %v214 = vmax.f32 %v205, 0.0
        %v215 = vmax.f32 %v206, 0.0
        %v216 = vmax.f32 %v207, 0.0
        %v217 = vmax.f32 %v208, 0.0
        %v218 = vmax.f32 %v209, 0.0
        %v219 = vmax.f32 %v210, 0.0
        %v220 = vmax.f32 %v211, 0.0
        %v221 = vmax.f32 %v212, 0.0
        %v222 = vld [vmem:[%s2] sm:$0xff]
        %v223 = vld [vmem:[%s2 + $0x8] sm:$0xff]
        %v224 = vld [vmem:[%s2 + $0x10] sm:$0xff]
        %v225 = vld [vmem:[%s2 + $0x18] sm:$0xff]
        %v226 = vld [vmem:[%s2 + $0x20] sm:$0xff]
        %v227 = vld [vmem:[%s2 + $0x28] sm:$0xff]
        %v228 = vld [vmem:[%s2 + $0x30] sm:$0x1]
        %vm229 = vcmask 400384
        %v231 = vsel %vm229, %v213, 0
        %v234 = vsel %vm229, %v214, 0
        %v237 = vsel %vm229, %v215, 0
        %v240 = vsel %vm229, %v216, 0
        %v243 = vsel %vm229, %v217, 0
        %v246 = vsel %vm229, %v218, 0
        %v249 = vsel %vm229, %v219, 0
        %v252 = vsel %vm229, %v220, 0
        %v255 = vsel %vm229, %v221, 0
        %vm257 = vcmask 1040384
        %v259 = vsel %vm257, %v228, 0
        %261 = vmatpush.msra.mxu0 0.0
        %262 = vmatpush.msra.mxu0 0.0
        %263 = vmatpush.msra.mxu0 0.0
        %264 = vmatpush.msra.mxu0 0.0
        %265 = vmatpush.msra.mxu0 0.0
        %266 = vmatpush.msra.mxu0 0.0
        %267 = vmatpush.msra.mxu0 0.0
        %268 = vmatpush.msra.mxu0 0.0
        %269 = vmatpush.msra.mxu0 0.0
        %v270 = vand.u32 %v259, 4294901760
        %271 = vmatpush.msra.mxu0 %v270
        %v272 = vand.u32 %v227, 4294901760
        %273 = vmatpush.msra.mxu0 %v272
        %v274 = vand.u32 %v226, 4294901760
        %275 = vmatpush.msra.mxu0 %v274
        %v276 = vand.u32 %v225, 4294901760
        %277 = vmatpush.msra.mxu0 %v276
        %v278 = vand.u32 %v224, 4294901760
        %279 = vmatpush.msra.mxu0 %v278
        %v280 = vand.u32 %v223, 4294901760
        %281 = vmatpush.msra.mxu0 %v280
        %v282 = vand.u32 %v222, 4294901760
        %283 = vmatpush.msra.mxu0 %v282
        %v284 = vand.u32 %v231, 4294901760
        %v285 = vsub.f32 %v231, %v284
        %v286 = vand.u32 %v285, 4294901760
        %v287 = vsub.f32 %v285, %v286
        %v288 = vand.u32 %v287, 4294901760
        %289 = vmatmul.f32.gmra.mxu0 %v288
        %v290 = vpop.f32.mrf.mxu0
        %v291 = vadd.f32 0.0, %v290
        %v292 = vand.u32 %v234, 4294901760
        %v293 = vsub.f32 %v234, %v292
        %v294 = vand.u32 %v293, 4294901760
        %v295 = vsub.f32 %v293, %v294
        %v296 = vand.u32 %v295, 4294901760
        %297 = vmatmul.f32.gmra.mxu0 %v296
        %v298 = vpop.f32.mrf.mxu0
        %v299 = vadd.f32 0.0, %v298
        %v300 = vand.u32 %v237, 4294901760
        %v301 = vsub.f32 %v237, %v300
        %v302 = vand.u32 %v301, 4294901760
        %v303 = vsub.f32 %v301, %v302
        %v304 = vand.u32 %v303, 4294901760
        %305 = vmatmul.f32.gmra.mxu0 %v304
        %v306 = vpop.f32.mrf.mxu0
        %v307 = vadd.f32 0.0, %v306
        %v308 = vand.u32 %v240, 4294901760
        %v309 = vsub.f32 %v240, %v308
        %v310 = vand.u32 %v309, 4294901760
        %v311 = vsub.f32 %v309, %v310
        %v312 = vand.u32 %v311, 4294901760
        %313 = vmatmul.f32.gmra.mxu0 %v312
        %v314 = vpop.f32.mrf.mxu0
        %v315 = vadd.f32 0.0, %v314
        %v316 = vand.u32 %v243, 4294901760
        %v317 = vsub.f32 %v243, %v316
        %v318 = vand.u32 %v317, 4294901760
        %v319 = vsub.f32 %v317, %v318
        %v320 = vand.u32 %v319, 4294901760
        %321 = vmatmul.f32.gmra.mxu0 %v320
        %v322 = vpop.f32.mrf.mxu0
        %v323 = vadd.f32 0.0, %v322
        %v324 = vand.u32 %v246, 4294901760
        %v325 = vsub.f32 %v246, %v324
        %v326 = vand.u32 %v325, 4294901760
        %v327 = vsub.f32 %v325, %v326
        %v328 = vand.u32 %v327, 4294901760
        %329 = vmatmul.f32.gmra.mxu0 %v328
        %v330 = vpop.f32.mrf.mxu0
        %v331 = vadd.f32 0.0, %v330
        %v332 = vand.u32 %v249, 4294901760
        %v333 = vsub.f32 %v249, %v332
        %v334 = vand.u32 %v333, 4294901760
        %v335 = vsub.f32 %v333, %v334
        %v336 = vand.u32 %v335, 4294901760
        %337 = vmatmul.f32.gmra.mxu0 %v336
        %v338 = vpop.f32.mrf.mxu0
        %v339 = vadd.f32 0.0, %v338
        %v340 = vand.u32 %v252, 4294901760
        %v341 = vsub.f32 %v252, %v340
        %v342 = vand.u32 %v341, 4294901760
        %v343 = vsub.f32 %v341, %v342
        %v344 = vand.u32 %v343, 4294901760
        %345 = vmatmul.f32.gmra.mxu0 %v344
        %v346 = vpop.f32.mrf.mxu0
        %v347 = vadd.f32 0.0, %v346
        %v348 = vand.u32 %v255, 4294901760
        %v349 = vsub.f32 %v255, %v348
        %v350 = vand.u32 %v349, 4294901760
        %v351 = vsub.f32 %v349, %v350
        %v352 = vand.u32 %v351, 4294901760
        %353 = vmatmul.f32.gmra.mxu0 %v352
        %v354 = vpop.f32.mrf.mxu0
        %v355 = vadd.f32 0.0, %v354
        %356 = vdwg.mxu0
        %357 = vmatpush.msra.mxu0 0.0
        %358 = vmatpush.msra.mxu0 0.0
        %359 = vmatpush.msra.mxu0 0.0
        %360 = vmatpush.msra.mxu0 0.0
        %361 = vmatpush.msra.mxu0 0.0
        %362 = vmatpush.msra.mxu0 0.0
        %363 = vmatpush.msra.mxu0 0.0
        %364 = vmatpush.msra.mxu0 0.0
        %365 = vmatpush.msra.mxu0 0.0
        %v366 = vand.u32 %v259, 4294901760
        %v367 = vsub.f32 %v259, %v366
        %v368 = vand.u32 %v367, 4294901760
        %v369 = vsub.f32 %v367, %v368
        %v370 = vand.u32 %v369, 4294901760
        %371 = vmatpush.msra.mxu0 %v370
        %v372 = vand.u32 %v227, 4294901760
        %v373 = vsub.f32 %v227, %v372
        %v374 = vand.u32 %v373, 4294901760
        %v375 = vsub.f32 %v373, %v374
        %v376 = vand.u32 %v375, 4294901760
        %377 = vmatpush.msra.mxu0 %v376
        %v378 = vand.u32 %v226, 4294901760
        %v379 = vsub.f32 %v226, %v378
        %v380 = vand.u32 %v379, 4294901760
        %v381 = vsub.f32 %v379, %v380
        %v382 = vand.u32 %v381, 4294901760
        %383 = vmatpush.msra.mxu0 %v382
        %v384 = vand.u32 %v225, 4294901760
        %v385 = vsub.f32 %v225, %v384
        %v386 = vand.u32 %v385, 4294901760
        %v387 = vsub.f32 %v385, %v386
        %v388 = vand.u32 %v387, 4294901760
        %389 = vmatpush.msra.mxu0 %v388
        %v390 = vand.u32 %v224, 4294901760
        %v391 = vsub.f32 %v224, %v390
        %v392 = vand.u32 %v391, 4294901760
        %v393 = vsub.f32 %v391, %v392
        %v394 = vand.u32 %v393, 4294901760
        %395 = vmatpush.msra.mxu0 %v394
        %v396 = vand.u32 %v223, 4294901760
        %v397 = vsub.f32 %v223, %v396
        %v398 = vand.u32 %v397, 4294901760
        %v399 = vsub.f32 %v397, %v398
        %v400 = vand.u32 %v399, 4294901760
        %401 = vmatpush.msra.mxu0 %v400
        %v402 = vand.u32 %v222, 4294901760
        %v403 = vsub.f32 %v222, %v402
        %v404 = vand.u32 %v403, 4294901760
        %v405 = vsub.f32 %v403, %v404
        %v406 = vand.u32 %v405, 4294901760
        %407 = vmatpush.msra.mxu0 %v406
        %v408 = vand.u32 %v231, 4294901760
        %409 = vmatmul.f32.gmra.mxu0 %v408
        %v410 = vpop.f32.mrf.mxu0
        %v411 = vadd.f32 %v291, %v410
        %v412 = vand.u32 %v234, 4294901760
        %413 = vmatmul.f32.gmra.mxu0 %v412
        %v414 = vpop.f32.mrf.mxu0
        %v415 = vadd.f32 %v299, %v414
        %v416 = vand.u32 %v237, 4294901760
        %417 = vmatmul.f32.gmra.mxu0 %v416
        %v418 = vpop.f32.mrf.mxu0
        %v419 = vadd.f32 %v307, %v418
        %v420 = vand.u32 %v240, 4294901760
        %421 = vmatmul.f32.gmra.mxu0 %v420
        %v422 = vpop.f32.mrf.mxu0
        %v423 = vadd.f32 %v315, %v422
        %v424 = vand.u32 %v243, 4294901760
        %425 = vmatmul.f32.gmra.mxu0 %v424
        %v426 = vpop.f32.mrf.mxu0
        %v427 = vadd.f32 %v323, %v426
        %v428 = vand.u32 %v246, 4294901760
        %429 = vmatmul.f32.gmra.mxu0 %v428
        %v430 = vpop.f32.mrf.mxu0
        %v431 = vadd.f32 %v331, %v430
        %v432 = vand.u32 %v249, 4294901760
        %433 = vmatmul.f32.gmra.mxu0 %v432
        %v434 = vpop.f32.mrf.mxu0
        %v435 = vadd.f32 %v339, %v434
        %v436 = vand.u32 %v252, 4294901760
        %437 = vmatmul.f32.gmra.mxu0 %v436
        %v438 = vpop.f32.mrf.mxu0
        %v439 = vadd.f32 %v347, %v438
        %v440 = vand.u32 %v255, 4294901760
        %441 = vmatmul.f32.gmra.mxu0 %v440
        %v442 = vpop.f32.mrf.mxu0
        %v443 = vadd.f32 %v355, %v442
        %444 = vdwg.mxu0
        %445 = vmatpush.msra.mxu0 0.0
        %446 = vmatpush.msra.mxu0 0.0
        %447 = vmatpush.msra.mxu0 0.0
        %448 = vmatpush.msra.mxu0 0.0
        %449 = vmatpush.msra.mxu0 0.0
        %450 = vmatpush.msra.mxu0 0.0
        %451 = vmatpush.msra.mxu0 0.0
        %452 = vmatpush.msra.mxu0 0.0
        %453 = vmatpush.msra.mxu0 0.0
        %v454 = vand.u32 %v259, 4294901760
        %v455 = vsub.f32 %v259, %v454
        %456 = vmatpush.msra.mxu0 %v455
        %v457 = vand.u32 %v227, 4294901760
        %v458 = vsub.f32 %v227, %v457
        %459 = vmatpush.msra.mxu0 %v458
        %v460 = vand.u32 %v226, 4294901760
        %v461 = vsub.f32 %v226, %v460
        %462 = vmatpush.msra.mxu0 %v461
        %v463 = vand.u32 %v225, 4294901760
        %v464 = vsub.f32 %v225, %v463
        %465 = vmatpush.msra.mxu0 %v464
        %v466 = vand.u32 %v224, 4294901760
        %v467 = vsub.f32 %v224, %v466
        %468 = vmatpush.msra.mxu0 %v467
        %v469 = vand.u32 %v223, 4294901760
        %v470 = vsub.f32 %v223, %v469
        %471 = vmatpush.msra.mxu0 %v470
        %v472 = vand.u32 %v222, 4294901760
        %v473 = vsub.f32 %v222, %v472
        %474 = vmatpush.msra.mxu0 %v473
        %v475 = vand.u32 %v231, 4294901760
        %v476 = vsub.f32 %v231, %v475
        %477 = vmatmul.f32.gmra.mxu0 %v476
        %v478 = vpop.f32.mrf.mxu0
        %v479 = vadd.f32 %v411, %v478
        %v480 = vand.u32 %v234, 4294901760
        %v481 = vsub.f32 %v234, %v480
        %482 = vmatmul.f32.gmra.mxu0 %v481
        %v483 = vpop.f32.mrf.mxu0
        %v484 = vadd.f32 %v415, %v483
        %v485 = vand.u32 %v237, 4294901760
        %v486 = vsub.f32 %v237, %v485
        %487 = vmatmul.f32.gmra.mxu0 %v486
        %v488 = vpop.f32.mrf.mxu0
        %v489 = vadd.f32 %v419, %v488
        %v490 = vand.u32 %v240, 4294901760
        %v491 = vsub.f32 %v240, %v490
        %492 = vmatmul.f32.gmra.mxu0 %v491
        %v493 = vpop.f32.mrf.mxu0
        %v494 = vadd.f32 %v423, %v493
        %v495 = vand.u32 %v243, 4294901760
        %v496 = vsub.f32 %v243, %v495
        %497 = vmatmul.f32.gmra.mxu0 %v496
        %v498 = vpop.f32.mrf.mxu0
        %v499 = vadd.f32 %v427, %v498
        %v500 = vand.u32 %v246, 4294901760
        %v501 = vsub.f32 %v246, %v500
        %502 = vmatmul.f32.gmra.mxu0 %v501
        %v503 = vpop.f32.mrf.mxu0
        %v504 = vadd.f32 %v431, %v503
        %v505 = vand.u32 %v249, 4294901760
        %v506 = vsub.f32 %v249, %v505
        %507 = vmatmul.f32.gmra.mxu0 %v506
        %v508 = vpop.f32.mrf.mxu0
        %v509 = vadd.f32 %v435, %v508
        %v510 = vand.u32 %v252, 4294901760
        %v511 = vsub.f32 %v252, %v510
        %512 = vmatmul.f32.gmra.mxu0 %v511
        %v513 = vpop.f32.mrf.mxu0
        %v514 = vadd.f32 %v439, %v513
        %v515 = vand.u32 %v255, 4294901760
        %v516 = vsub.f32 %v255, %v515
        %517 = vmatmul.f32.gmra.mxu0 %v516
        %v518 = vpop.f32.mrf.mxu0
        %v519 = vadd.f32 %v443, %v518
        %520 = vdwg.mxu0
        %521 = vmatpush.msra.mxu0 0.0
        %522 = vmatpush.msra.mxu0 0.0
        %523 = vmatpush.msra.mxu0 0.0
        %524 = vmatpush.msra.mxu0 0.0
        %525 = vmatpush.msra.mxu0 0.0
        %526 = vmatpush.msra.mxu0 0.0
        %527 = vmatpush.msra.mxu0 0.0
        %528 = vmatpush.msra.mxu0 0.0
        %529 = vmatpush.msra.mxu0 0.0
        %v530 = vand.u32 %v259, 4294901760
        %531 = vmatpush.msra.mxu0 %v530
        %v532 = vand.u32 %v227, 4294901760
        %533 = vmatpush.msra.mxu0 %v532
        %v534 = vand.u32 %v226, 4294901760
        %535 = vmatpush.msra.mxu0 %v534
        %v536 = vand.u32 %v225, 4294901760
        %537 = vmatpush.msra.mxu0 %v536
        %v538 = vand.u32 %v224, 4294901760
        %539 = vmatpush.msra.mxu0 %v538
        %v540 = vand.u32 %v223, 4294901760
        %541 = vmatpush.msra.mxu0 %v540
        %v542 = vand.u32 %v222, 4294901760
        %543 = vmatpush.msra.mxu0 %v542
        %v544 = vand.u32 %v231, 4294901760
        %v545 = vsub.f32 %v231, %v544
        %v546 = vand.u32 %v545, 4294901760
        %547 = vmatmul.f32.gmra.mxu0 %v546
        %v548 = vpop.f32.mrf.mxu0
        %v549 = vadd.f32 %v479, %v548
        %v550 = vand.u32 %v234, 4294901760
        %v551 = vsub.f32 %v234, %v550
        %v552 = vand.u32 %v551, 4294901760
        %553 = vmatmul.f32.gmra.mxu0 %v552
        %v554 = vpop.f32.mrf.mxu0
        %v555 = vadd.f32 %v484, %v554
        %v556 = vand.u32 %v237, 4294901760
        %v557 = vsub.f32 %v237, %v556
        %v558 = vand.u32 %v557, 4294901760
        %559 = vmatmul.f32.gmra.mxu0 %v558
        %v560 = vpop.f32.mrf.mxu0
        %v561 = vadd.f32 %v489, %v560
        %v562 = vand.u32 %v240, 4294901760
        %v563 = vsub.f32 %v240, %v562
        %v564 = vand.u32 %v563, 4294901760
        %565 = vmatmul.f32.gmra.mxu0 %v564
        %v566 = vpop.f32.mrf.mxu0
        %v567 = vadd.f32 %v494, %v566
        %v568 = vand.u32 %v243, 4294901760
        %v569 = vsub.f32 %v243, %v568
        %v570 = vand.u32 %v569, 4294901760
        %571 = vmatmul.f32.gmra.mxu0 %v570
        %v572 = vpop.f32.mrf.mxu0
        %v573 = vadd.f32 %v499, %v572
        %v574 = vand.u32 %v246, 4294901760
        %v575 = vsub.f32 %v246, %v574
        %v576 = vand.u32 %v575, 4294901760
        %577 = vmatmul.f32.gmra.mxu0 %v576
        %v578 = vpop.f32.mrf.mxu0
        %v579 = vadd.f32 %v504, %v578
        %v580 = vand.u32 %v249, 4294901760
        %v581 = vsub.f32 %v249, %v580
        %v582 = vand.u32 %v581, 4294901760
        %583 = vmatmul.f32.gmra.mxu0 %v582
        %v584 = vpop.f32.mrf.mxu0
        %v585 = vadd.f32 %v509, %v584
        %v586 = vand.u32 %v252, 4294901760
        %v587 = vsub.f32 %v252, %v586
        %v588 = vand.u32 %v587, 4294901760
        %589 = vmatmul.f32.gmra.mxu0 %v588
        %v590 = vpop.f32.mrf.mxu0
        %v591 = vadd.f32 %v514, %v590
        %v592 = vand.u32 %v255, 4294901760
        %v593 = vsub.f32 %v255, %v592
        %v594 = vand.u32 %v593, 4294901760
        %595 = vmatmul.f32.gmra.mxu0 %v594
        %v596 = vpop.f32.mrf.mxu0
        %v597 = vadd.f32 %v519, %v596
        %598 = vdwg.mxu0
        %599 = vmatpush.msra.mxu0 0.0
        %600 = vmatpush.msra.mxu0 0.0
        %601 = vmatpush.msra.mxu0 0.0
        %602 = vmatpush.msra.mxu0 0.0
        %603 = vmatpush.msra.mxu0 0.0
        %604 = vmatpush.msra.mxu0 0.0
        %605 = vmatpush.msra.mxu0 0.0
        %606 = vmatpush.msra.mxu0 0.0
        %607 = vmatpush.msra.mxu0 0.0
        %v608 = vand.u32 %v259, 4294901760
        %v609 = vsub.f32 %v259, %v608
        %v610 = vand.u32 %v609, 4294901760
        %611 = vmatpush.msra.mxu0 %v610
        %v612 = vand.u32 %v227, 4294901760
        %v613 = vsub.f32 %v227, %v612
        %v614 = vand.u32 %v613, 4294901760
        %615 = vmatpush.msra.mxu0 %v614
        %v616 = vand.u32 %v226, 4294901760
        %v617 = vsub.f32 %v226, %v616
        %v618 = vand.u32 %v617, 4294901760
        %619 = vmatpush.msra.mxu0 %v618
        %v620 = vand.u32 %v225, 4294901760
        %v621 = vsub.f32 %v225, %v620
        %v622 = vand.u32 %v621, 4294901760
        %623 = vmatpush.msra.mxu0 %v622
        %v624 = vand.u32 %v224, 4294901760
        %v625 = vsub.f32 %v224, %v624
        %v626 = vand.u32 %v625, 4294901760
        %627 = vmatpush.msra.mxu0 %v626
        %v628 = vand.u32 %v223, 4294901760
        %v629 = vsub.f32 %v223, %v628
        %v630 = vand.u32 %v629, 4294901760
        %631 = vmatpush.msra.mxu0 %v630
        %v632 = vand.u32 %v222, 4294901760
        %v633 = vsub.f32 %v222, %v632
        %v634 = vand.u32 %v633, 4294901760
        %635 = vmatpush.msra.mxu0 %v634
        %v636 = vand.u32 %v231, 4294901760
        %637 = vmatmul.f32.gmra.mxu0 %v636
        %v638 = vpop.f32.mrf.mxu0
        %v639 = vadd.f32 %v549, %v638
        %v640 = vand.u32 %v234, 4294901760
        %641 = vmatmul.f32.gmra.mxu0 %v640
        %v642 = vpop.f32.mrf.mxu0
        %v643 = vadd.f32 %v555, %v642
        %v644 = vand.u32 %v237, 4294901760
        %645 = vmatmul.f32.gmra.mxu0 %v644
        %v646 = vpop.f32.mrf.mxu0
        %v647 = vadd.f32 %v561, %v646
        %v648 = vand.u32 %v240, 4294901760
        %649 = vmatmul.f32.gmra.mxu0 %v648
        %v650 = vpop.f32.mrf.mxu0
        %v651 = vadd.f32 %v567, %v650
        %v652 = vand.u32 %v243, 4294901760
        %653 = vmatmul.f32.gmra.mxu0 %v652
        %v654 = vpop.f32.mrf.mxu0
        %v655 = vadd.f32 %v573, %v654
        %v656 = vand.u32 %v246, 4294901760
        %657 = vmatmul.f32.gmra.mxu0 %v656
        %v658 = vpop.f32.mrf.mxu0
        %v659 = vadd.f32 %v579, %v658
        %v660 = vand.u32 %v249, 4294901760
        %661 = vmatmul.f32.gmra.mxu0 %v660
        %v662 = vpop.f32.mrf.mxu0
        %v663 = vadd.f32 %v585, %v662
        %v664 = vand.u32 %v252, 4294901760
        %665 = vmatmul.f32.gmra.mxu0 %v664
        %v666 = vpop.f32.mrf.mxu0
        %v667 = vadd.f32 %v591, %v666
        %v668 = vand.u32 %v255, 4294901760
        %669 = vmatmul.f32.gmra.mxu0 %v668
        %v670 = vpop.f32.mrf.mxu0
        %v671 = vadd.f32 %v597, %v670
        %672 = vdwg.mxu0
        %673 = vmatpush.msra.mxu0 0.0
        %674 = vmatpush.msra.mxu0 0.0
        %675 = vmatpush.msra.mxu0 0.0
        %676 = vmatpush.msra.mxu0 0.0
        %677 = vmatpush.msra.mxu0 0.0
        %678 = vmatpush.msra.mxu0 0.0
        %679 = vmatpush.msra.mxu0 0.0
        %680 = vmatpush.msra.mxu0 0.0
        %681 = vmatpush.msra.mxu0 0.0
        %v682 = vand.u32 %v259, 4294901760
        %683 = vmatpush.msra.mxu0 %v682
        %v684 = vand.u32 %v227, 4294901760
        %685 = vmatpush.msra.mxu0 %v684
        %v686 = vand.u32 %v226, 4294901760
        %687 = vmatpush.msra.mxu0 %v686
        %v688 = vand.u32 %v225, 4294901760
        %689 = vmatpush.msra.mxu0 %v688
        %v690 = vand.u32 %v224, 4294901760
        %691 = vmatpush.msra.mxu0 %v690
        %v692 = vand.u32 %v223, 4294901760
        %693 = vmatpush.msra.mxu0 %v692
        %v694 = vand.u32 %v222, 4294901760
        %695 = vmatpush.msra.mxu0 %v694
        %v696 = vand.u32 %v231, 4294901760
        %697 = vmatmul.f32.gmra.mxu0 %v696
        %v698 = vpop.f32.mrf.mxu0
        %v699 = vadd.f32 %v639, %v698
        %v700 = vand.u32 %v234, 4294901760
        %701 = vmatmul.f32.gmra.mxu0 %v700
        %v702 = vpop.f32.mrf.mxu0
        %v703 = vadd.f32 %v643, %v702
        %v704 = vand.u32 %v237, 4294901760
        %705 = vmatmul.f32.gmra.mxu0 %v704
        %v706 = vpop.f32.mrf.mxu0
        %v707 = vadd.f32 %v647, %v706
        %v708 = vand.u32 %v240, 4294901760
        %709 = vmatmul.f32.gmra.mxu0 %v708
        %v710 = vpop.f32.mrf.mxu0
        %v711 = vadd.f32 %v651, %v710
        %v712 = vand.u32 %v243, 4294901760
        %713 = vmatmul.f32.gmra.mxu0 %v712
        %v714 = vpop.f32.mrf.mxu0
        %v715 = vadd.f32 %v655, %v714
        %v716 = vand.u32 %v246, 4294901760
        %717 = vmatmul.f32.gmra.mxu0 %v716
        %v718 = vpop.f32.mrf.mxu0
        %v719 = vadd.f32 %v659, %v718
        %v720 = vand.u32 %v249, 4294901760
        %721 = vmatmul.f32.gmra.mxu0 %v720
        %v722 = vpop.f32.mrf.mxu0
        %v723 = vadd.f32 %v663, %v722
        %v724 = vand.u32 %v252, 4294901760
        %725 = vmatmul.f32.gmra.mxu0 %v724
        %v726 = vpop.f32.mrf.mxu0
        %v727 = vadd.f32 %v667, %v726
        %v728 = vand.u32 %v255, 4294901760
        %729 = vmatmul.f32.gmra.mxu0 %v728
        %v730 = vpop.f32.mrf.mxu0
        %v731 = vadd.f32 %v671, %v730
        %732 = vdwg.mxu0
        %s733 = scalar_lea.vmem %s188, %s202
        %v734 = vld [vmem:[%s733] sm:$0xff]
        %v735 = vld [vmem:[%s733 + $0x8] sm:$0xff]
        %v736 = vld [vmem:[%s733 + $0x10] sm:$0xff]
        %v737 = vld [vmem:[%s733 + $0x18] sm:$0xff]
        %v738 = vld [vmem:[%s733 + $0x20] sm:$0xff]
        %v739 = vld [vmem:[%s733 + $0x28] sm:$0xff]
        %v740 = vld [vmem:[%s733 + $0x30] sm:$0xff]
        %v741 = vld [vmem:[%s733 + $0x38] sm:$0xff]
        %v742 = vld [vmem:[%s733 + $0x40] sm:$0xff]
        %744 = vset.pattern.permute.xlu0 0
        %745 = vperm.xlu0 %744, %v734
        %v746 = vpop.permute.xlu0 %745
        %749 = vset.pattern.permute.xlu0 0
        %750 = vperm.xlu0 %749, %v735
        %v751 = vpop.permute.xlu0 %750
        %754 = vset.pattern.permute.xlu0 0
        %755 = vperm.xlu0 %754, %v736
        %v756 = vpop.permute.xlu0 %755
        %759 = vset.pattern.permute.xlu0 0
        %760 = vperm.xlu0 %759, %v737
        %v761 = vpop.permute.xlu0 %760
        %764 = vset.pattern.permute.xlu0 0
        %765 = vperm.xlu0 %764, %v738
        %v766 = vpop.permute.xlu0 %765
        %769 = vset.pattern.permute.xlu0 0
        %770 = vperm.xlu0 %769, %v739
        %v771 = vpop.permute.xlu0 %770
        %774 = vset.pattern.permute.xlu0 0
        %775 = vperm.xlu0 %774, %v740
        %v776 = vpop.permute.xlu0 %775
        %779 = vset.pattern.permute.xlu0 0
        %780 = vperm.xlu0 %779, %v741
        %v781 = vpop.permute.xlu0 %780
        %784 = vset.pattern.permute.xlu0 0
        %785 = vperm.xlu0 %784, %v742
        %v786 = vpop.permute.xlu0 %785
        %v788 = vmul.f32 %v699, %v746
        %v789 = vmul.f32 %v703, %v751
        %v790 = vmul.f32 %v707, %v756
        %v791 = vmul.f32 %v711, %v761
        %v792 = vmul.f32 %v715, %v766
        %v793 = vmul.f32 %v719, %v771
        %v794 = vmul.f32 %v723, %v776
        %v795 = vmul.f32 %v727, %v781
        %v796 = vmul.f32 %v731, %v786
        %v797 = vadd.f32 %v788, 0.0
        %v798 = vadd.f32 %v789, 0.0
        %v799 = vadd.f32 %v790, 0.0
        %v800 = vadd.f32 %v791, 0.0
        %v801 = vadd.f32 %v792, 0.0
        %v802 = vadd.f32 %v793, 0.0
        %v803 = vadd.f32 %v794, 0.0
        %v804 = vadd.f32 %v795, 0.0
        %v805 = vadd.f32 %v796, 0.0
        %s806 = scalar_lea.vmem %s2, 56
        %v807 = vld [vmem:[%s806] sm:$0xff]
        %v808 = vld [vmem:[%s806 + $0x8] sm:$0xff]
        %v809 = vld [vmem:[%s806 + $0x10] sm:$0xff]
        %v810 = vld [vmem:[%s806 + $0x18] sm:$0xff]
        %v811 = vld [vmem:[%s806 + $0x20] sm:$0xff]
        %v812 = vld [vmem:[%s806 + $0x28] sm:$0xff]
        %v813 = vld [vmem:[%s806 + $0x30] sm:$0x1]
        %v815 = vsel %vm257, %v813, 0
        %817 = vmatpush.msra.mxu0 0.0
        %818 = vmatpush.msra.mxu0 0.0
        %819 = vmatpush.msra.mxu0 0.0
        %820 = vmatpush.msra.mxu0 0.0
        %821 = vmatpush.msra.mxu0 0.0
        %822 = vmatpush.msra.mxu0 0.0
        %823 = vmatpush.msra.mxu0 0.0
        %824 = vmatpush.msra.mxu0 0.0
        %825 = vmatpush.msra.mxu0 0.0
        %v826 = vand.u32 %v815, 4294901760
        %827 = vmatpush.msra.mxu0 %v826
        %v828 = vand.u32 %v812, 4294901760
        %829 = vmatpush.msra.mxu0 %v828
        %v830 = vand.u32 %v811, 4294901760
        %831 = vmatpush.msra.mxu0 %v830
        %v832 = vand.u32 %v810, 4294901760
        %833 = vmatpush.msra.mxu0 %v832
        %v834 = vand.u32 %v809, 4294901760
        %835 = vmatpush.msra.mxu0 %v834
        %v836 = vand.u32 %v808, 4294901760
        %837 = vmatpush.msra.mxu0 %v836
        %v838 = vand.u32 %v807, 4294901760
        %839 = vmatpush.msra.mxu0 %v838
        %v840 = vand.u32 %v231, 4294901760
        %v841 = vsub.f32 %v231, %v840
        %v842 = vand.u32 %v841, 4294901760
        %v843 = vsub.f32 %v841, %v842
        %v844 = vand.u32 %v843, 4294901760
        %845 = vmatmul.f32.gmra.mxu0 %v844
        %v846 = vpop.f32.mrf.mxu0
        %v847 = vadd.f32 0.0, %v846
        %v848 = vand.u32 %v234, 4294901760
        %v849 = vsub.f32 %v234, %v848
        %v850 = vand.u32 %v849, 4294901760
        %v851 = vsub.f32 %v849, %v850
        %v852 = vand.u32 %v851, 4294901760
        %853 = vmatmul.f32.gmra.mxu0 %v852
        %v854 = vpop.f32.mrf.mxu0
        %v855 = vadd.f32 0.0, %v854
        %v856 = vand.u32 %v237, 4294901760
        %v857 = vsub.f32 %v237, %v856
        %v858 = vand.u32 %v857, 4294901760
        %v859 = vsub.f32 %v857, %v858
        %v860 = vand.u32 %v859, 4294901760
        %861 = vmatmul.f32.gmra.mxu0 %v860
        %v862 = vpop.f32.mrf.mxu0
        %v863 = vadd.f32 0.0, %v862
        %v864 = vand.u32 %v240, 4294901760
        %v865 = vsub.f32 %v240, %v864
        %v866 = vand.u32 %v865, 4294901760
        %v867 = vsub.f32 %v865, %v866
        %v868 = vand.u32 %v867, 4294901760
        %869 = vmatmul.f32.gmra.mxu0 %v868
        %v870 = vpop.f32.mrf.mxu0
        %v871 = vadd.f32 0.0, %v870
        %v872 = vand.u32 %v243, 4294901760
        %v873 = vsub.f32 %v243, %v872
        %v874 = vand.u32 %v873, 4294901760
        %v875 = vsub.f32 %v873, %v874
        %v876 = vand.u32 %v875, 4294901760
        %877 = vmatmul.f32.gmra.mxu0 %v876
        %v878 = vpop.f32.mrf.mxu0
        %v879 = vadd.f32 0.0, %v878
        %v880 = vand.u32 %v246, 4294901760
        %v881 = vsub.f32 %v246, %v880
        %v882 = vand.u32 %v881, 4294901760
        %v883 = vsub.f32 %v881, %v882
        %v884 = vand.u32 %v883, 4294901760
        %885 = vmatmul.f32.gmra.mxu0 %v884
        %v886 = vpop.f32.mrf.mxu0
        %v887 = vadd.f32 0.0, %v886
        %v888 = vand.u32 %v249, 4294901760
        %v889 = vsub.f32 %v249, %v888
        %v890 = vand.u32 %v889, 4294901760
        %v891 = vsub.f32 %v889, %v890
        %v892 = vand.u32 %v891, 4294901760
        %893 = vmatmul.f32.gmra.mxu0 %v892
        %v894 = vpop.f32.mrf.mxu0
        %v895 = vadd.f32 0.0, %v894
        %v896 = vand.u32 %v252, 4294901760
        %v897 = vsub.f32 %v252, %v896
        %v898 = vand.u32 %v897, 4294901760
        %v899 = vsub.f32 %v897, %v898
        %v900 = vand.u32 %v899, 4294901760
        %901 = vmatmul.f32.gmra.mxu0 %v900
        %v902 = vpop.f32.mrf.mxu0
        %v903 = vadd.f32 0.0, %v902
        %v904 = vand.u32 %v255, 4294901760
        %v905 = vsub.f32 %v255, %v904
        %v906 = vand.u32 %v905, 4294901760
        %v907 = vsub.f32 %v905, %v906
        %v908 = vand.u32 %v907, 4294901760
        %909 = vmatmul.f32.gmra.mxu0 %v908
        %v910 = vpop.f32.mrf.mxu0
        %v911 = vadd.f32 0.0, %v910
        %912 = vdwg.mxu0
        %913 = vmatpush.msra.mxu0 0.0
        %914 = vmatpush.msra.mxu0 0.0
        %915 = vmatpush.msra.mxu0 0.0
        %916 = vmatpush.msra.mxu0 0.0
        %917 = vmatpush.msra.mxu0 0.0
        %918 = vmatpush.msra.mxu0 0.0
        %919 = vmatpush.msra.mxu0 0.0
        %920 = vmatpush.msra.mxu0 0.0
        %921 = vmatpush.msra.mxu0 0.0
        %v922 = vand.u32 %v815, 4294901760
        %v923 = vsub.f32 %v815, %v922
        %v924 = vand.u32 %v923, 4294901760
        %v925 = vsub.f32 %v923, %v924
        %v926 = vand.u32 %v925, 4294901760
        %927 = vmatpush.msra.mxu0 %v926
        %v928 = vand.u32 %v812, 4294901760
        %v929 = vsub.f32 %v812, %v928
        %v930 = vand.u32 %v929, 4294901760
        %v931 = vsub.f32 %v929, %v930
        %v932 = vand.u32 %v931, 4294901760
        %933 = vmatpush.msra.mxu0 %v932
        %v934 = vand.u32 %v811, 4294901760
        %v935 = vsub.f32 %v811, %v934
        %v936 = vand.u32 %v935, 4294901760
        %v937 = vsub.f32 %v935, %v936
        %v938 = vand.u32 %v937, 4294901760
        %939 = vmatpush.msra.mxu0 %v938
        %v940 = vand.u32 %v810, 4294901760
        %v941 = vsub.f32 %v810, %v940
        %v942 = vand.u32 %v941, 4294901760
        %v943 = vsub.f32 %v941, %v942
        %v944 = vand.u32 %v943, 4294901760
        %945 = vmatpush.msra.mxu0 %v944
        %v946 = vand.u32 %v809, 4294901760
        %v947 = vsub.f32 %v809, %v946
        %v948 = vand.u32 %v947, 4294901760
        %v949 = vsub.f32 %v947, %v948
        %v950 = vand.u32 %v949, 4294901760
        %951 = vmatpush.msra.mxu0 %v950
        %v952 = vand.u32 %v808, 4294901760
        %v953 = vsub.f32 %v808, %v952
        %v954 = vand.u32 %v953, 4294901760
        %v955 = vsub.f32 %v953, %v954
        %v956 = vand.u32 %v955, 4294901760
        %957 = vmatpush.msra.mxu0 %v956
        %v958 = vand.u32 %v807, 4294901760
        %v959 = vsub.f32 %v807, %v958
        %v960 = vand.u32 %v959, 4294901760
        %v961 = vsub.f32 %v959, %v960
        %v962 = vand.u32 %v961, 4294901760
        %963 = vmatpush.msra.mxu0 %v962
        %v964 = vand.u32 %v231, 4294901760
        %965 = vmatmul.f32.gmra.mxu0 %v964
        %v966 = vpop.f32.mrf.mxu0
        %v967 = vadd.f32 %v847, %v966
        %v968 = vand.u32 %v234, 4294901760
        %969 = vmatmul.f32.gmra.mxu0 %v968
        %v970 = vpop.f32.mrf.mxu0
        %v971 = vadd.f32 %v855, %v970
        %v972 = vand.u32 %v237, 4294901760
        %973 = vmatmul.f32.gmra.mxu0 %v972
        %v974 = vpop.f32.mrf.mxu0
        %v975 = vadd.f32 %v863, %v974
        %v976 = vand.u32 %v240, 4294901760
        %977 = vmatmul.f32.gmra.mxu0 %v976
        %v978 = vpop.f32.mrf.mxu0
        %v979 = vadd.f32 %v871, %v978
        %v980 = vand.u32 %v243, 4294901760
        %981 = vmatmul.f32.gmra.mxu0 %v980
        %v982 = vpop.f32.mrf.mxu0
        %v983 = vadd.f32 %v879, %v982
        %v984 = vand.u32 %v246, 4294901760
        %985 = vmatmul.f32.gmra.mxu0 %v984
        %v986 = vpop.f32.mrf.mxu0
        %v987 = vadd.f32 %v887, %v986
        %v988 = vand.u32 %v249, 4294901760
        %989 = vmatmul.f32.gmra.mxu0 %v988
        %v990 = vpop.f32.mrf.mxu0
        %v991 = vadd.f32 %v895, %v990
        %v992 = vand.u32 %v252, 4294901760
        %993 = vmatmul.f32.gmra.mxu0 %v992
        %v994 = vpop.f32.mrf.mxu0
        %v995 = vadd.f32 %v903, %v994
        %v996 = vand.u32 %v255, 4294901760
        %997 = vmatmul.f32.gmra.mxu0 %v996
        %v998 = vpop.f32.mrf.mxu0
        %v999 = vadd.f32 %v911, %v998
        %1000 = vdwg.mxu0
        %1001 = vmatpush.msra.mxu0 0.0
        %1002 = vmatpush.msra.mxu0 0.0
        %1003 = vmatpush.msra.mxu0 0.0
        %1004 = vmatpush.msra.mxu0 0.0
        %1005 = vmatpush.msra.mxu0 0.0
        %1006 = vmatpush.msra.mxu0 0.0
        %1007 = vmatpush.msra.mxu0 0.0
        %1008 = vmatpush.msra.mxu0 0.0
        %1009 = vmatpush.msra.mxu0 0.0
        %v1010 = vand.u32 %v815, 4294901760
        %v1011 = vsub.f32 %v815, %v1010
        %1012 = vmatpush.msra.mxu0 %v1011
        %v1013 = vand.u32 %v812, 4294901760
        %v1014 = vsub.f32 %v812, %v1013
        %1015 = vmatpush.msra.mxu0 %v1014
        %v1016 = vand.u32 %v811, 4294901760
        %v1017 = vsub.f32 %v811, %v1016
        %1018 = vmatpush.msra.mxu0 %v1017
        %v1019 = vand.u32 %v810, 4294901760
        %v1020 = vsub.f32 %v810, %v1019
        %1021 = vmatpush.msra.mxu0 %v1020
        %v1022 = vand.u32 %v809, 4294901760
        %v1023 = vsub.f32 %v809, %v1022
        %1024 = vmatpush.msra.mxu0 %v1023
        %v1025 = vand.u32 %v808, 4294901760
        %v1026 = vsub.f32 %v808, %v1025
        %1027 = vmatpush.msra.mxu0 %v1026
        %v1028 = vand.u32 %v807, 4294901760
        %v1029 = vsub.f32 %v807, %v1028
        %1030 = vmatpush.msra.mxu0 %v1029
        %v1031 = vand.u32 %v231, 4294901760
        %v1032 = vsub.f32 %v231, %v1031
        %1033 = vmatmul.f32.gmra.mxu0 %v1032
        %v1034 = vpop.f32.mrf.mxu0
        %v1035 = vadd.f32 %v967, %v1034
        %v1036 = vand.u32 %v234, 4294901760
        %v1037 = vsub.f32 %v234, %v1036
        %1038 = vmatmul.f32.gmra.mxu0 %v1037
        %v1039 = vpop.f32.mrf.mxu0
        %v1040 = vadd.f32 %v971, %v1039
        %v1041 = vand.u32 %v237, 4294901760
        %v1042 = vsub.f32 %v237, %v1041
        %1043 = vmatmul.f32.gmra.mxu0 %v1042
        %v1044 = vpop.f32.mrf.mxu0
        %v1045 = vadd.f32 %v975, %v1044
        %v1046 = vand.u32 %v240, 4294901760
        %v1047 = vsub.f32 %v240, %v1046
        %1048 = vmatmul.f32.gmra.mxu0 %v1047
        %v1049 = vpop.f32.mrf.mxu0
        %v1050 = vadd.f32 %v979, %v1049
        %v1051 = vand.u32 %v243, 4294901760
        %v1052 = vsub.f32 %v243, %v1051
        %1053 = vmatmul.f32.gmra.mxu0 %v1052
        %v1054 = vpop.f32.mrf.mxu0
        %v1055 = vadd.f32 %v983, %v1054
        %v1056 = vand.u32 %v246, 4294901760
        %v1057 = vsub.f32 %v246, %v1056
        %1058 = vmatmul.f32.gmra.mxu0 %v1057
        %v1059 = vpop.f32.mrf.mxu0
        %v1060 = vadd.f32 %v987, %v1059
        %v1061 = vand.u32 %v249, 4294901760
        %v1062 = vsub.f32 %v249, %v1061
        %1063 = vmatmul.f32.gmra.mxu0 %v1062
        %v1064 = vpop.f32.mrf.mxu0
        %v1065 = vadd.f32 %v991, %v1064
        %v1066 = vand.u32 %v252, 4294901760
        %v1067 = vsub.f32 %v252, %v1066
        %1068 = vmatmul.f32.gmra.mxu0 %v1067
        %v1069 = vpop.f32.mrf.mxu0
        %v1070 = vadd.f32 %v995, %v1069
        %v1071 = vand.u32 %v255, 4294901760
        %v1072 = vsub.f32 %v255, %v1071
        %1073 = vmatmul.f32.gmra.mxu0 %v1072
        %v1074 = vpop.f32.mrf.mxu0
        %v1075 = vadd.f32 %v999, %v1074
        %1076 = vdwg.mxu0
        %1077 = vmatpush.msra.mxu0 0.0
        %1078 = vmatpush.msra.mxu0 0.0
        %1079 = vmatpush.msra.mxu0 0.0
        %1080 = vmatpush.msra.mxu0 0.0
        %1081 = vmatpush.msra.mxu0 0.0
        %1082 = vmatpush.msra.mxu0 0.0
        %1083 = vmatpush.msra.mxu0 0.0
        %1084 = vmatpush.msra.mxu0 0.0
        %1085 = vmatpush.msra.mxu0 0.0
        %v1086 = vand.u32 %v815, 4294901760
        %1087 = vmatpush.msra.mxu0 %v1086
        %v1088 = vand.u32 %v812, 4294901760
        %1089 = vmatpush.msra.mxu0 %v1088
        %v1090 = vand.u32 %v811, 4294901760
        %1091 = vmatpush.msra.mxu0 %v1090
        %v1092 = vand.u32 %v810, 4294901760
        %1093 = vmatpush.msra.mxu0 %v1092
        %v1094 = vand.u32 %v809, 4294901760
        %1095 = vmatpush.msra.mxu0 %v1094
        %v1096 = vand.u32 %v808, 4294901760
        %1097 = vmatpush.msra.mxu0 %v1096
        %v1098 = vand.u32 %v807, 4294901760
        %1099 = vmatpush.msra.mxu0 %v1098
        %v1100 = vand.u32 %v231, 4294901760
        %v1101 = vsub.f32 %v231, %v1100
        %v1102 = vand.u32 %v1101, 4294901760
        %1103 = vmatmul.f32.gmra.mxu0 %v1102
        %v1104 = vpop.f32.mrf.mxu0
        %v1105 = vadd.f32 %v1035, %v1104
        %v1106 = vand.u32 %v234, 4294901760
        %v1107 = vsub.f32 %v234, %v1106
        %v1108 = vand.u32 %v1107, 4294901760
        %1109 = vmatmul.f32.gmra.mxu0 %v1108
        %v1110 = vpop.f32.mrf.mxu0
        %v1111 = vadd.f32 %v1040, %v1110
        %v1112 = vand.u32 %v237, 4294901760
        %v1113 = vsub.f32 %v237, %v1112
        %v1114 = vand.u32 %v1113, 4294901760
        %1115 = vmatmul.f32.gmra.mxu0 %v1114
        %v1116 = vpop.f32.mrf.mxu0
        %v1117 = vadd.f32 %v1045, %v1116
        %v1118 = vand.u32 %v240, 4294901760
        %v1119 = vsub.f32 %v240, %v1118
        %v1120 = vand.u32 %v1119, 4294901760
        %1121 = vmatmul.f32.gmra.mxu0 %v1120
        %v1122 = vpop.f32.mrf.mxu0
        %v1123 = vadd.f32 %v1050, %v1122
        %v1124 = vand.u32 %v243, 4294901760
        %v1125 = vsub.f32 %v243, %v1124
        %v1126 = vand.u32 %v1125, 4294901760
        %1127 = vmatmul.f32.gmra.mxu0 %v1126
        %v1128 = vpop.f32.mrf.mxu0
        %v1129 = vadd.f32 %v1055, %v1128
        %v1130 = vand.u32 %v246, 4294901760
        %v1131 = vsub.f32 %v246, %v1130
        %v1132 = vand.u32 %v1131, 4294901760
        %1133 = vmatmul.f32.gmra.mxu0 %v1132
        %v1134 = vpop.f32.mrf.mxu0
        %v1135 = vadd.f32 %v1060, %v1134
        %v1136 = vand.u32 %v249, 4294901760
        %v1137 = vsub.f32 %v249, %v1136
        %v1138 = vand.u32 %v1137, 4294901760
        %1139 = vmatmul.f32.gmra.mxu0 %v1138
        %v1140 = vpop.f32.mrf.mxu0
        %v1141 = vadd.f32 %v1065, %v1140
        %v1142 = vand.u32 %v252, 4294901760
        %v1143 = vsub.f32 %v252, %v1142
        %v1144 = vand.u32 %v1143, 4294901760
        %1145 = vmatmul.f32.gmra.mxu0 %v1144
        %v1146 = vpop.f32.mrf.mxu0
        %v1147 = vadd.f32 %v1070, %v1146
        %v1148 = vand.u32 %v255, 4294901760
        %v1149 = vsub.f32 %v255, %v1148
        %v1150 = vand.u32 %v1149, 4294901760
        %1151 = vmatmul.f32.gmra.mxu0 %v1150
        %v1152 = vpop.f32.mrf.mxu0
        %v1153 = vadd.f32 %v1075, %v1152
        %1154 = vdwg.mxu0
        %1155 = vmatpush.msra.mxu0 0.0
        %1156 = vmatpush.msra.mxu0 0.0
        %1157 = vmatpush.msra.mxu0 0.0
        %1158 = vmatpush.msra.mxu0 0.0
        %1159 = vmatpush.msra.mxu0 0.0
        %1160 = vmatpush.msra.mxu0 0.0
        %1161 = vmatpush.msra.mxu0 0.0
        %1162 = vmatpush.msra.mxu0 0.0
        %1163 = vmatpush.msra.mxu0 0.0
        %v1164 = vand.u32 %v815, 4294901760
        %v1165 = vsub.f32 %v815, %v1164
        %v1166 = vand.u32 %v1165, 4294901760
        %1167 = vmatpush.msra.mxu0 %v1166
        %v1168 = vand.u32 %v812, 4294901760
        %v1169 = vsub.f32 %v812, %v1168
        %v1170 = vand.u32 %v1169, 4294901760
        %1171 = vmatpush.msra.mxu0 %v1170
        %v1172 = vand.u32 %v811, 4294901760
        %v1173 = vsub.f32 %v811, %v1172
        %v1174 = vand.u32 %v1173, 4294901760
        %1175 = vmatpush.msra.mxu0 %v1174
        %v1176 = vand.u32 %v810, 4294901760
        %v1177 = vsub.f32 %v810, %v1176
        %v1178 = vand.u32 %v1177, 4294901760
        %1179 = vmatpush.msra.mxu0 %v1178
        %v1180 = vand.u32 %v809, 4294901760
        %v1181 = vsub.f32 %v809, %v1180
        %v1182 = vand.u32 %v1181, 4294901760
        %1183 = vmatpush.msra.mxu0 %v1182
        %v1184 = vand.u32 %v808, 4294901760
        %v1185 = vsub.f32 %v808, %v1184
        %v1186 = vand.u32 %v1185, 4294901760
        %1187 = vmatpush.msra.mxu0 %v1186
        %v1188 = vand.u32 %v807, 4294901760
        %v1189 = vsub.f32 %v807, %v1188
        %v1190 = vand.u32 %v1189, 4294901760
        %1191 = vmatpush.msra.mxu0 %v1190
        %v1192 = vand.u32 %v231, 4294901760
        %1193 = vmatmul.f32.gmra.mxu0 %v1192
        %v1194 = vpop.f32.mrf.mxu0
        %v1195 = vadd.f32 %v1105, %v1194
        %v1196 = vand.u32 %v234, 4294901760
        %1197 = vmatmul.f32.gmra.mxu0 %v1196
        %v1198 = vpop.f32.mrf.mxu0
        %v1199 = vadd.f32 %v1111, %v1198
        %v1200 = vand.u32 %v237, 4294901760
        %1201 = vmatmul.f32.gmra.mxu0 %v1200
        %v1202 = vpop.f32.mrf.mxu0
        %v1203 = vadd.f32 %v1117, %v1202
        %v1204 = vand.u32 %v240, 4294901760
        %1205 = vmatmul.f32.gmra.mxu0 %v1204
        %v1206 = vpop.f32.mrf.mxu0
        %v1207 = vadd.f32 %v1123, %v1206
        %v1208 = vand.u32 %v243, 4294901760
        %1209 = vmatmul.f32.gmra.mxu0 %v1208
        %v1210 = vpop.f32.mrf.mxu0
        %v1211 = vadd.f32 %v1129, %v1210
        %v1212 = vand.u32 %v246, 4294901760
        %1213 = vmatmul.f32.gmra.mxu0 %v1212
        %v1214 = vpop.f32.mrf.mxu0
        %v1215 = vadd.f32 %v1135, %v1214
        %v1216 = vand.u32 %v249, 4294901760
        %1217 = vmatmul.f32.gmra.mxu0 %v1216
        %v1218 = vpop.f32.mrf.mxu0
        %v1219 = vadd.f32 %v1141, %v1218
        %v1220 = vand.u32 %v252, 4294901760
        %1221 = vmatmul.f32.gmra.mxu0 %v1220
        %v1222 = vpop.f32.mrf.mxu0
        %v1223 = vadd.f32 %v1147, %v1222
        %v1224 = vand.u32 %v255, 4294901760
        %1225 = vmatmul.f32.gmra.mxu0 %v1224
        %v1226 = vpop.f32.mrf.mxu0
        %v1227 = vadd.f32 %v1153, %v1226
        %1228 = vdwg.mxu0
        %1229 = vmatpush.msra.mxu0 0.0
        %1230 = vmatpush.msra.mxu0 0.0
        %1231 = vmatpush.msra.mxu0 0.0
        %1232 = vmatpush.msra.mxu0 0.0
        %1233 = vmatpush.msra.mxu0 0.0
        %1234 = vmatpush.msra.mxu0 0.0
        %1235 = vmatpush.msra.mxu0 0.0
        %1236 = vmatpush.msra.mxu0 0.0
        %1237 = vmatpush.msra.mxu0 0.0
        %v1238 = vand.u32 %v815, 4294901760
        %1239 = vmatpush.msra.mxu0 %v1238
        %v1240 = vand.u32 %v812, 4294901760
        %1241 = vmatpush.msra.mxu0 %v1240
        %v1242 = vand.u32 %v811, 4294901760
        %1243 = vmatpush.msra.mxu0 %v1242
        %v1244 = vand.u32 %v810, 4294901760
        %1245 = vmatpush.msra.mxu0 %v1244
        %v1246 = vand.u32 %v809, 4294901760
        %1247 = vmatpush.msra.mxu0 %v1246
        %v1248 = vand.u32 %v808, 4294901760
        %1249 = vmatpush.msra.mxu0 %v1248
        %v1250 = vand.u32 %v807, 4294901760
        %1251 = vmatpush.msra.mxu0 %v1250
        %v1252 = vand.u32 %v231, 4294901760
        %1253 = vmatmul.f32.gmra.mxu0 %v1252
        %v1254 = vpop.f32.mrf.mxu0
        %v1255 = vadd.f32 %v1195, %v1254
        %v1256 = vand.u32 %v234, 4294901760
        %1257 = vmatmul.f32.gmra.mxu0 %v1256
        %v1258 = vpop.f32.mrf.mxu0
        %v1259 = vadd.f32 %v1199, %v1258
        %v1260 = vand.u32 %v237, 4294901760
        %1261 = vmatmul.f32.gmra.mxu0 %v1260
        %v1262 = vpop.f32.mrf.mxu0
        %v1263 = vadd.f32 %v1203, %v1262
        %v1264 = vand.u32 %v240, 4294901760
        %1265 = vmatmul.f32.gmra.mxu0 %v1264
        %v1266 = vpop.f32.mrf.mxu0
        %v1267 = vadd.f32 %v1207, %v1266
        %v1268 = vand.u32 %v243, 4294901760
        %1269 = vmatmul.f32.gmra.mxu0 %v1268
        %v1270 = vpop.f32.mrf.mxu0
        %v1271 = vadd.f32 %v1211, %v1270
        %v1272 = vand.u32 %v246, 4294901760
        %1273 = vmatmul.f32.gmra.mxu0 %v1272
        %v1274 = vpop.f32.mrf.mxu0
        %v1275 = vadd.f32 %v1215, %v1274
        %v1276 = vand.u32 %v249, 4294901760
        %1277 = vmatmul.f32.gmra.mxu0 %v1276
        %v1278 = vpop.f32.mrf.mxu0
        %v1279 = vadd.f32 %v1219, %v1278
        %v1280 = vand.u32 %v252, 4294901760
        %1281 = vmatmul.f32.gmra.mxu0 %v1280
        %v1282 = vpop.f32.mrf.mxu0
        %v1283 = vadd.f32 %v1223, %v1282
        %v1284 = vand.u32 %v255, 4294901760
        %1285 = vmatmul.f32.gmra.mxu0 %v1284
        %v1286 = vpop.f32.mrf.mxu0
        %v1287 = vadd.f32 %v1227, %v1286
        %1288 = vdwg.mxu0
        %1289 = vset.pattern.permute.xlu0 1
        %1290 = vperm.xlu0 %1289, %v734
        %v1291 = vpop.permute.xlu0 %1290
        %1293 = vset.pattern.permute.xlu0 1
        %1294 = vperm.xlu0 %1293, %v735
        %v1295 = vpop.permute.xlu0 %1294
        %1297 = vset.pattern.permute.xlu0 1
        %1298 = vperm.xlu0 %1297, %v736
        %v1299 = vpop.permute.xlu0 %1298
        %1301 = vset.pattern.permute.xlu0 1
        %1302 = vperm.xlu0 %1301, %v737
        %v1303 = vpop.permute.xlu0 %1302
        %1305 = vset.pattern.permute.xlu0 1
        %1306 = vperm.xlu0 %1305, %v738
        %v1307 = vpop.permute.xlu0 %1306
        %1309 = vset.pattern.permute.xlu0 1
        %1310 = vperm.xlu0 %1309, %v739
        %v1311 = vpop.permute.xlu0 %1310
        %1313 = vset.pattern.permute.xlu0 1
        %1314 = vperm.xlu0 %1313, %v740
        %v1315 = vpop.permute.xlu0 %1314
        %1317 = vset.pattern.permute.xlu0 1
        %1318 = vperm.xlu0 %1317, %v741
        %v1319 = vpop.permute.xlu0 %1318
        %1321 = vset.pattern.permute.xlu0 1
        %1322 = vperm.xlu0 %1321, %v742
        %v1323 = vpop.permute.xlu0 %1322
        %v1325 = vmul.f32 %v1255, %v1291
        %v1326 = vmul.f32 %v1259, %v1295
        %v1327 = vmul.f32 %v1263, %v1299
        %v1328 = vmul.f32 %v1267, %v1303
        %v1329 = vmul.f32 %v1271, %v1307
        %v1330 = vmul.f32 %v1275, %v1311
        %v1331 = vmul.f32 %v1279, %v1315
        %v1332 = vmul.f32 %v1283, %v1319
        %v1333 = vmul.f32 %v1287, %v1323
        %v1334 = vadd.f32 %v797, %v1325
        %v1335 = vadd.f32 %v798, %v1326
        %v1336 = vadd.f32 %v799, %v1327
        %v1337 = vadd.f32 %v800, %v1328
        %v1338 = vadd.f32 %v801, %v1329
        %v1339 = vadd.f32 %v802, %v1330
        %v1340 = vadd.f32 %v803, %v1331
        %v1341 = vadd.f32 %v804, %v1332
        %v1342 = vadd.f32 %v805, %v1333
        %s1343 = scalar_lea.vmem %s2, 112
        %v1344 = vld [vmem:[%s1343] sm:$0xff]
        %v1345 = vld [vmem:[%s1343 + $0x8] sm:$0xff]
        %v1346 = vld [vmem:[%s1343 + $0x10] sm:$0xff]
        %v1347 = vld [vmem:[%s1343 + $0x18] sm:$0xff]
        %v1348 = vld [vmem:[%s1343 + $0x20] sm:$0xff]
        %v1349 = vld [vmem:[%s1343 + $0x28] sm:$0xff]
        %v1350 = vld [vmem:[%s1343 + $0x30] sm:$0x1]
        %v1352 = vsel %vm257, %v1350, 0
        %1354 = vmatpush.msra.mxu0 0.0
        %1355 = vmatpush.msra.mxu0 0.0
        %1356 = vmatpush.msra.mxu0 0.0
        %1357 = vmatpush.msra.mxu0 0.0
        %1358 = vmatpush.msra.mxu0 0.0
        %1359 = vmatpush.msra.mxu0 0.0
        %1360 = vmatpush.msra.mxu0 0.0
        %1361 = vmatpush.msra.mxu0 0.0
        %1362 = vmatpush.msra.mxu0 0.0
        %v1363 = vand.u32 %v1352, 4294901760
        %1364 = vmatpush.msra.mxu0 %v1363
        %v1365 = vand.u32 %v1349, 4294901760
        %1366 = vmatpush.msra.mxu0 %v1365
        %v1367 = vand.u32 %v1348, 4294901760
        %1368 = vmatpush.msra.mxu0 %v1367
        %v1369 = vand.u32 %v1347, 4294901760
        %1370 = vmatpush.msra.mxu0 %v1369
        %v1371 = vand.u32 %v1346, 4294901760
        %1372 = vmatpush.msra.mxu0 %v1371
        %v1373 = vand.u32 %v1345, 4294901760
        %1374 = vmatpush.msra.mxu0 %v1373
        %v1375 = vand.u32 %v1344, 4294901760
        %1376 = vmatpush.msra.mxu0 %v1375
        %v1377 = vand.u32 %v231, 4294901760
        %v1378 = vsub.f32 %v231, %v1377
        %v1379 = vand.u32 %v1378, 4294901760
        %v1380 = vsub.f32 %v1378, %v1379
        %v1381 = vand.u32 %v1380, 4294901760
        %1382 = vmatmul.f32.gmra.mxu0 %v1381
        %v1383 = vpop.f32.mrf.mxu0
        %v1384 = vadd.f32 0.0, %v1383
        %v1385 = vand.u32 %v234, 4294901760
        %v1386 = vsub.f32 %v234, %v1385
        %v1387 = vand.u32 %v1386, 4294901760
        %v1388 = vsub.f32 %v1386, %v1387
        %v1389 = vand.u32 %v1388, 4294901760
        %1390 = vmatmul.f32.gmra.mxu0 %v1389
        %v1391 = vpop.f32.mrf.mxu0
        %v1392 = vadd.f32 0.0, %v1391
        %v1393 = vand.u32 %v237, 4294901760
        %v1394 = vsub.f32 %v237, %v1393
        %v1395 = vand.u32 %v1394, 4294901760
        %v1396 = vsub.f32 %v1394, %v1395
        %v1397 = vand.u32 %v1396, 4294901760
        %1398 = vmatmul.f32.gmra.mxu0 %v1397
        %v1399 = vpop.f32.mrf.mxu0
        %v1400 = vadd.f32 0.0, %v1399
        %v1401 = vand.u32 %v240, 4294901760
        %v1402 = vsub.f32 %v240, %v1401
        %v1403 = vand.u32 %v1402, 4294901760
        %v1404 = vsub.f32 %v1402, %v1403
        %v1405 = vand.u32 %v1404, 4294901760
        %1406 = vmatmul.f32.gmra.mxu0 %v1405
        %v1407 = vpop.f32.mrf.mxu0
        %v1408 = vadd.f32 0.0, %v1407
        %v1409 = vand.u32 %v243, 4294901760
        %v1410 = vsub.f32 %v243, %v1409
        %v1411 = vand.u32 %v1410, 4294901760
        %v1412 = vsub.f32 %v1410, %v1411
        %v1413 = vand.u32 %v1412, 4294901760
        %1414 = vmatmul.f32.gmra.mxu0 %v1413
        %v1415 = vpop.f32.mrf.mxu0
        %v1416 = vadd.f32 0.0, %v1415
        %v1417 = vand.u32 %v246, 4294901760
        %v1418 = vsub.f32 %v246, %v1417
        %v1419 = vand.u32 %v1418, 4294901760
        %v1420 = vsub.f32 %v1418, %v1419
        %v1421 = vand.u32 %v1420, 4294901760
        %1422 = vmatmul.f32.gmra.mxu0 %v1421
        %v1423 = vpop.f32.mrf.mxu0
        %v1424 = vadd.f32 0.0, %v1423
        %v1425 = vand.u32 %v249, 4294901760
        %v1426 = vsub.f32 %v249, %v1425
        %v1427 = vand.u32 %v1426, 4294901760
        %v1428 = vsub.f32 %v1426, %v1427
        %v1429 = vand.u32 %v1428, 4294901760
        %1430 = vmatmul.f32.gmra.mxu0 %v1429
        %v1431 = vpop.f32.mrf.mxu0
        %v1432 = vadd.f32 0.0, %v1431
        %v1433 = vand.u32 %v252, 4294901760
        %v1434 = vsub.f32 %v252, %v1433
        %v1435 = vand.u32 %v1434, 4294901760
        %v1436 = vsub.f32 %v1434, %v1435
        %v1437 = vand.u32 %v1436, 4294901760
        %1438 = vmatmul.f32.gmra.mxu0 %v1437
        %v1439 = vpop.f32.mrf.mxu0
        %v1440 = vadd.f32 0.0, %v1439
        %v1441 = vand.u32 %v255, 4294901760
        %v1442 = vsub.f32 %v255, %v1441
        %v1443 = vand.u32 %v1442, 4294901760
        %v1444 = vsub.f32 %v1442, %v1443
        %v1445 = vand.u32 %v1444, 4294901760
        %1446 = vmatmul.f32.gmra.mxu0 %v1445
        %v1447 = vpop.f32.mrf.mxu0
        %v1448 = vadd.f32 0.0, %v1447
        %1449 = vdwg.mxu0
        %1450 = vmatpush.msra.mxu0 0.0
        %1451 = vmatpush.msra.mxu0 0.0
        %1452 = vmatpush.msra.mxu0 0.0
        %1453 = vmatpush.msra.mxu0 0.0
        %1454 = vmatpush.msra.mxu0 0.0
        %1455 = vmatpush.msra.mxu0 0.0
        %1456 = vmatpush.msra.mxu0 0.0
        %1457 = vmatpush.msra.mxu0 0.0
        %1458 = vmatpush.msra.mxu0 0.0
        %v1459 = vand.u32 %v1352, 4294901760
        %v1460 = vsub.f32 %v1352, %v1459
        %v1461 = vand.u32 %v1460, 4294901760
        %v1462 = vsub.f32 %v1460, %v1461
        %v1463 = vand.u32 %v1462, 4294901760
        %1464 = vmatpush.msra.mxu0 %v1463
        %v1465 = vand.u32 %v1349, 4294901760
        %v1466 = vsub.f32 %v1349, %v1465
        %v1467 = vand.u32 %v1466, 4294901760
        %v1468 = vsub.f32 %v1466, %v1467
        %v1469 = vand.u32 %v1468, 4294901760
        %1470 = vmatpush.msra.mxu0 %v1469
        %v1471 = vand.u32 %v1348, 4294901760
        %v1472 = vsub.f32 %v1348, %v1471
        %v1473 = vand.u32 %v1472, 4294901760
        %v1474 = vsub.f32 %v1472, %v1473
        %v1475 = vand.u32 %v1474, 4294901760
        %1476 = vmatpush.msra.mxu0 %v1475
        %v1477 = vand.u32 %v1347, 4294901760
        %v1478 = vsub.f32 %v1347, %v1477
        %v1479 = vand.u32 %v1478, 4294901760
        %v1480 = vsub.f32 %v1478, %v1479
        %v1481 = vand.u32 %v1480, 4294901760
        %1482 = vmatpush.msra.mxu0 %v1481
        %v1483 = vand.u32 %v1346, 4294901760
        %v1484 = vsub.f32 %v1346, %v1483
        %v1485 = vand.u32 %v1484, 4294901760
        %v1486 = vsub.f32 %v1484, %v1485
        %v1487 = vand.u32 %v1486, 4294901760
        %1488 = vmatpush.msra.mxu0 %v1487
        %v1489 = vand.u32 %v1345, 4294901760
        %v1490 = vsub.f32 %v1345, %v1489
        %v1491 = vand.u32 %v1490, 4294901760
        %v1492 = vsub.f32 %v1490, %v1491
        %v1493 = vand.u32 %v1492, 4294901760
        %1494 = vmatpush.msra.mxu0 %v1493
        %v1495 = vand.u32 %v1344, 4294901760
        %v1496 = vsub.f32 %v1344, %v1495
        %v1497 = vand.u32 %v1496, 4294901760
        %v1498 = vsub.f32 %v1496, %v1497
        %v1499 = vand.u32 %v1498, 4294901760
        %1500 = vmatpush.msra.mxu0 %v1499
        %v1501 = vand.u32 %v231, 4294901760
        %1502 = vmatmul.f32.gmra.mxu0 %v1501
        %v1503 = vpop.f32.mrf.mxu0
        %v1504 = vadd.f32 %v1384, %v1503
        %v1505 = vand.u32 %v234, 4294901760
        %1506 = vmatmul.f32.gmra.mxu0 %v1505
        %v1507 = vpop.f32.mrf.mxu0
        %v1508 = vadd.f32 %v1392, %v1507
        %v1509 = vand.u32 %v237, 4294901760
        %1510 = vmatmul.f32.gmra.mxu0 %v1509
        %v1511 = vpop.f32.mrf.mxu0
        %v1512 = vadd.f32 %v1400, %v1511
        %v1513 = vand.u32 %v240, 4294901760
        %1514 = vmatmul.f32.gmra.mxu0 %v1513
        %v1515 = vpop.f32.mrf.mxu0
        %v1516 = vadd.f32 %v1408, %v1515
        %v1517 = vand.u32 %v243, 4294901760
        %1518 = vmatmul.f32.gmra.mxu0 %v1517
        %v1519 = vpop.f32.mrf.mxu0
        %v1520 = vadd.f32 %v1416, %v1519
        %v1521 = vand.u32 %v246, 4294901760
        %1522 = vmatmul.f32.gmra.mxu0 %v1521
        %v1523 = vpop.f32.mrf.mxu0
        %v1524 = vadd.f32 %v1424, %v1523
        %v1525 = vand.u32 %v249, 4294901760
        %1526 = vmatmul.f32.gmra.mxu0 %v1525
        %v1527 = vpop.f32.mrf.mxu0
        %v1528 = vadd.f32 %v1432, %v1527
        %v1529 = vand.u32 %v252, 4294901760
        %1530 = vmatmul.f32.gmra.mxu0 %v1529
        %v1531 = vpop.f32.mrf.mxu0
        %v1532 = vadd.f32 %v1440, %v1531
        %v1533 = vand.u32 %v255, 4294901760
        %1534 = vmatmul.f32.gmra.mxu0 %v1533
        %v1535 = vpop.f32.mrf.mxu0
        %v1536 = vadd.f32 %v1448, %v1535
        %1537 = vdwg.mxu0
        %1538 = vmatpush.msra.mxu0 0.0
        %1539 = vmatpush.msra.mxu0 0.0
        %1540 = vmatpush.msra.mxu0 0.0
        %1541 = vmatpush.msra.mxu0 0.0
        %1542 = vmatpush.msra.mxu0 0.0
        %1543 = vmatpush.msra.mxu0 0.0
        %1544 = vmatpush.msra.mxu0 0.0
        %1545 = vmatpush.msra.mxu0 0.0
        %1546 = vmatpush.msra.mxu0 0.0
        %v1547 = vand.u32 %v1352, 4294901760
        %v1548 = vsub.f32 %v1352, %v1547
        %1549 = vmatpush.msra.mxu0 %v1548
        %v1550 = vand.u32 %v1349, 4294901760
        %v1551 = vsub.f32 %v1349, %v1550
        %1552 = vmatpush.msra.mxu0 %v1551
        %v1553 = vand.u32 %v1348, 4294901760
        %v1554 = vsub.f32 %v1348, %v1553
        %1555 = vmatpush.msra.mxu0 %v1554
        %v1556 = vand.u32 %v1347, 4294901760
        %v1557 = vsub.f32 %v1347, %v1556
        %1558 = vmatpush.msra.mxu0 %v1557
        %v1559 = vand.u32 %v1346, 4294901760
        %v1560 = vsub.f32 %v1346, %v1559
        %1561 = vmatpush.msra.mxu0 %v1560
        %v1562 = vand.u32 %v1345, 4294901760
        %v1563 = vsub.f32 %v1345, %v1562
        %1564 = vmatpush.msra.mxu0 %v1563
        %v1565 = vand.u32 %v1344, 4294901760
        %v1566 = vsub.f32 %v1344, %v1565
        %1567 = vmatpush.msra.mxu0 %v1566
        %v1568 = vand.u32 %v231, 4294901760
        %v1569 = vsub.f32 %v231, %v1568
        %1570 = vmatmul.f32.gmra.mxu0 %v1569
        %v1571 = vpop.f32.mrf.mxu0
        %v1572 = vadd.f32 %v1504, %v1571
        %v1573 = vand.u32 %v234, 4294901760
        %v1574 = vsub.f32 %v234, %v1573
        %1575 = vmatmul.f32.gmra.mxu0 %v1574
        %v1576 = vpop.f32.mrf.mxu0
        %v1577 = vadd.f32 %v1508, %v1576
        %v1578 = vand.u32 %v237, 4294901760
        %v1579 = vsub.f32 %v237, %v1578
        %1580 = vmatmul.f32.gmra.mxu0 %v1579
        %v1581 = vpop.f32.mrf.mxu0
        %v1582 = vadd.f32 %v1512, %v1581
        %v1583 = vand.u32 %v240, 4294901760
        %v1584 = vsub.f32 %v240, %v1583
        %1585 = vmatmul.f32.gmra.mxu0 %v1584
        %v1586 = vpop.f32.mrf.mxu0
        %v1587 = vadd.f32 %v1516, %v1586
        %v1588 = vand.u32 %v243, 4294901760
        %v1589 = vsub.f32 %v243, %v1588
        %1590 = vmatmul.f32.gmra.mxu0 %v1589
        %v1591 = vpop.f32.mrf.mxu0
        %v1592 = vadd.f32 %v1520, %v1591
        %v1593 = vand.u32 %v246, 4294901760
        %v1594 = vsub.f32 %v246, %v1593
        %1595 = vmatmul.f32.gmra.mxu0 %v1594
        %v1596 = vpop.f32.mrf.mxu0
        %v1597 = vadd.f32 %v1524, %v1596
        %v1598 = vand.u32 %v249, 4294901760
        %v1599 = vsub.f32 %v249, %v1598
        %1600 = vmatmul.f32.gmra.mxu0 %v1599
        %v1601 = vpop.f32.mrf.mxu0
        %v1602 = vadd.f32 %v1528, %v1601
        %v1603 = vand.u32 %v252, 4294901760
        %v1604 = vsub.f32 %v252, %v1603
        %1605 = vmatmul.f32.gmra.mxu0 %v1604
        %v1606 = vpop.f32.mrf.mxu0
        %v1607 = vadd.f32 %v1532, %v1606
        %v1608 = vand.u32 %v255, 4294901760
        %v1609 = vsub.f32 %v255, %v1608
        %1610 = vmatmul.f32.gmra.mxu0 %v1609
        %v1611 = vpop.f32.mrf.mxu0
        %v1612 = vadd.f32 %v1536, %v1611
        %1613 = vdwg.mxu0
        %1614 = vmatpush.msra.mxu0 0.0
        %1615 = vmatpush.msra.mxu0 0.0
        %1616 = vmatpush.msra.mxu0 0.0
        %1617 = vmatpush.msra.mxu0 0.0
        %1618 = vmatpush.msra.mxu0 0.0
        %1619 = vmatpush.msra.mxu0 0.0
        %1620 = vmatpush.msra.mxu0 0.0
        %1621 = vmatpush.msra.mxu0 0.0
        %1622 = vmatpush.msra.mxu0 0.0
        %v1623 = vand.u32 %v1352, 4294901760
        %1624 = vmatpush.msra.mxu0 %v1623
        %v1625 = vand.u32 %v1349, 4294901760
        %1626 = vmatpush.msra.mxu0 %v1625
        %v1627 = vand.u32 %v1348, 4294901760
        %1628 = vmatpush.msra.mxu0 %v1627
        %v1629 = vand.u32 %v1347, 4294901760
        %1630 = vmatpush.msra.mxu0 %v1629
        %v1631 = vand.u32 %v1346, 4294901760
        %1632 = vmatpush.msra.mxu0 %v1631
        %v1633 = vand.u32 %v1345, 4294901760
        %1634 = vmatpush.msra.mxu0 %v1633
        %v1635 = vand.u32 %v1344, 4294901760
        %1636 = vmatpush.msra.mxu0 %v1635
        %v1637 = vand.u32 %v231, 4294901760
        %v1638 = vsub.f32 %v231, %v1637
        %v1639 = vand.u32 %v1638, 4294901760
        %1640 = vmatmul.f32.gmra.mxu0 %v1639
        %v1641 = vpop.f32.mrf.mxu0
        %v1642 = vadd.f32 %v1572, %v1641
        %v1643 = vand.u32 %v234, 4294901760
        %v1644 = vsub.f32 %v234, %v1643
        %v1645 = vand.u32 %v1644, 4294901760
        %1646 = vmatmul.f32.gmra.mxu0 %v1645
        %v1647 = vpop.f32.mrf.mxu0
        %v1648 = vadd.f32 %v1577, %v1647
        %v1649 = vand.u32 %v237, 4294901760
        %v1650 = vsub.f32 %v237, %v1649
        %v1651 = vand.u32 %v1650, 4294901760
        %1652 = vmatmul.f32.gmra.mxu0 %v1651
        %v1653 = vpop.f32.mrf.mxu0
        %v1654 = vadd.f32 %v1582, %v1653
        %v1655 = vand.u32 %v240, 4294901760
        %v1656 = vsub.f32 %v240, %v1655
        %v1657 = vand.u32 %v1656, 4294901760
        %1658 = vmatmul.f32.gmra.mxu0 %v1657
        %v1659 = vpop.f32.mrf.mxu0
        %v1660 = vadd.f32 %v1587, %v1659
        %v1661 = vand.u32 %v243, 4294901760
        %v1662 = vsub.f32 %v243, %v1661
        %v1663 = vand.u32 %v1662, 4294901760
        %1664 = vmatmul.f32.gmra.mxu0 %v1663
        %v1665 = vpop.f32.mrf.mxu0
        %v1666 = vadd.f32 %v1592, %v1665
        %v1667 = vand.u32 %v246, 4294901760
        %v1668 = vsub.f32 %v246, %v1667
        %v1669 = vand.u32 %v1668, 4294901760
        %1670 = vmatmul.f32.gmra.mxu0 %v1669
        %v1671 = vpop.f32.mrf.mxu0
        %v1672 = vadd.f32 %v1597, %v1671
        %v1673 = vand.u32 %v249, 4294901760
        %v1674 = vsub.f32 %v249, %v1673
        %v1675 = vand.u32 %v1674, 4294901760
        %1676 = vmatmul.f32.gmra.mxu0 %v1675
        %v1677 = vpop.f32.mrf.mxu0
        %v1678 = vadd.f32 %v1602, %v1677
        %v1679 = vand.u32 %v252, 4294901760
        %v1680 = vsub.f32 %v252, %v1679
        %v1681 = vand.u32 %v1680, 4294901760
        %1682 = vmatmul.f32.gmra.mxu0 %v1681
        %v1683 = vpop.f32.mrf.mxu0
        %v1684 = vadd.f32 %v1607, %v1683
        %v1685 = vand.u32 %v255, 4294901760
        %v1686 = vsub.f32 %v255, %v1685
        %v1687 = vand.u32 %v1686, 4294901760
        %1688 = vmatmul.f32.gmra.mxu0 %v1687
        %v1689 = vpop.f32.mrf.mxu0
        %v1690 = vadd.f32 %v1612, %v1689
        %1691 = vdwg.mxu0
        %1692 = vmatpush.msra.mxu0 0.0
        %1693 = vmatpush.msra.mxu0 0.0
        %1694 = vmatpush.msra.mxu0 0.0
        %1695 = vmatpush.msra.mxu0 0.0
        %1696 = vmatpush.msra.mxu0 0.0
        %1697 = vmatpush.msra.mxu0 0.0
        %1698 = vmatpush.msra.mxu0 0.0
        %1699 = vmatpush.msra.mxu0 0.0
        %1700 = vmatpush.msra.mxu0 0.0
        %v1701 = vand.u32 %v1352, 4294901760
        %v1702 = vsub.f32 %v1352, %v1701
        %v1703 = vand.u32 %v1702, 4294901760
        %1704 = vmatpush.msra.mxu0 %v1703
        %v1705 = vand.u32 %v1349, 4294901760
        %v1706 = vsub.f32 %v1349, %v1705
        %v1707 = vand.u32 %v1706, 4294901760
        %1708 = vmatpush.msra.mxu0 %v1707
        %v1709 = vand.u32 %v1348, 4294901760
        %v1710 = vsub.f32 %v1348, %v1709
        %v1711 = vand.u32 %v1710, 4294901760
        %1712 = vmatpush.msra.mxu0 %v1711
        %v1713 = vand.u32 %v1347, 4294901760
        %v1714 = vsub.f32 %v1347, %v1713
        %v1715 = vand.u32 %v1714, 4294901760
        %1716 = vmatpush.msra.mxu0 %v1715
        %v1717 = vand.u32 %v1346, 4294901760
        %v1718 = vsub.f32 %v1346, %v1717
        %v1719 = vand.u32 %v1718, 4294901760
        %1720 = vmatpush.msra.mxu0 %v1719
        %v1721 = vand.u32 %v1345, 4294901760
        %v1722 = vsub.f32 %v1345, %v1721
        %v1723 = vand.u32 %v1722, 4294901760
        %1724 = vmatpush.msra.mxu0 %v1723
        %v1725 = vand.u32 %v1344, 4294901760
        %v1726 = vsub.f32 %v1344, %v1725
        %v1727 = vand.u32 %v1726, 4294901760
        %1728 = vmatpush.msra.mxu0 %v1727
        %v1729 = vand.u32 %v231, 4294901760
        %1730 = vmatmul.f32.gmra.mxu0 %v1729
        %v1731 = vpop.f32.mrf.mxu0
        %v1732 = vadd.f32 %v1642, %v1731
        %v1733 = vand.u32 %v234, 4294901760
        %1734 = vmatmul.f32.gmra.mxu0 %v1733
        %v1735 = vpop.f32.mrf.mxu0
        %v1736 = vadd.f32 %v1648, %v1735
        %v1737 = vand.u32 %v237, 4294901760
        %1738 = vmatmul.f32.gmra.mxu0 %v1737
        %v1739 = vpop.f32.mrf.mxu0
        %v1740 = vadd.f32 %v1654, %v1739
        %v1741 = vand.u32 %v240, 4294901760
        %1742 = vmatmul.f32.gmra.mxu0 %v1741
        %v1743 = vpop.f32.mrf.mxu0
        %v1744 = vadd.f32 %v1660, %v1743
        %v1745 = vand.u32 %v243, 4294901760
        %1746 = vmatmul.f32.gmra.mxu0 %v1745
        %v1747 = vpop.f32.mrf.mxu0
        %v1748 = vadd.f32 %v1666, %v1747
        %v1749 = vand.u32 %v246, 4294901760
        %1750 = vmatmul.f32.gmra.mxu0 %v1749
        %v1751 = vpop.f32.mrf.mxu0
        %v1752 = vadd.f32 %v1672, %v1751
        %v1753 = vand.u32 %v249, 4294901760
        %1754 = vmatmul.f32.gmra.mxu0 %v1753
        %v1755 = vpop.f32.mrf.mxu0
        %v1756 = vadd.f32 %v1678, %v1755
        %v1757 = vand.u32 %v252, 4294901760
        %1758 = vmatmul.f32.gmra.mxu0 %v1757
        %v1759 = vpop.f32.mrf.mxu0
        %v1760 = vadd.f32 %v1684, %v1759
        %v1761 = vand.u32 %v255, 4294901760
        %1762 = vmatmul.f32.gmra.mxu0 %v1761
        %v1763 = vpop.f32.mrf.mxu0
        %v1764 = vadd.f32 %v1690, %v1763
        %1765 = vdwg.mxu0
        %1766 = vmatpush.msra.mxu0 0.0
        %1767 = vmatpush.msra.mxu0 0.0
        %1768 = vmatpush.msra.mxu0 0.0
        %1769 = vmatpush.msra.mxu0 0.0
        %1770 = vmatpush.msra.mxu0 0.0
        %1771 = vmatpush.msra.mxu0 0.0
        %1772 = vmatpush.msra.mxu0 0.0
        %1773 = vmatpush.msra.mxu0 0.0
        %1774 = vmatpush.msra.mxu0 0.0
        %v1775 = vand.u32 %v1352, 4294901760
        %1776 = vmatpush.msra.mxu0 %v1775
        %v1777 = vand.u32 %v1349, 4294901760
        %1778 = vmatpush.msra.mxu0 %v1777
        %v1779 = vand.u32 %v1348, 4294901760
        %1780 = vmatpush.msra.mxu0 %v1779
        %v1781 = vand.u32 %v1347, 4294901760
        %1782 = vmatpush.msra.mxu0 %v1781
        %v1783 = vand.u32 %v1346, 4294901760
        %1784 = vmatpush.msra.mxu0 %v1783
        %v1785 = vand.u32 %v1345, 4294901760
        %1786 = vmatpush.msra.mxu0 %v1785
        %v1787 = vand.u32 %v1344, 4294901760
        %1788 = vmatpush.msra.mxu0 %v1787
        %v1789 = vand.u32 %v231, 4294901760
        %1790 = vmatmul.f32.gmra.mxu0 %v1789
        %v1791 = vpop.f32.mrf.mxu0
        %v1792 = vadd.f32 %v1732, %v1791
        %v1793 = vand.u32 %v234, 4294901760
        %1794 = vmatmul.f32.gmra.mxu0 %v1793
        %v1795 = vpop.f32.mrf.mxu0
        %v1796 = vadd.f32 %v1736, %v1795
        %v1797 = vand.u32 %v237, 4294901760
        %1798 = vmatmul.f32.gmra.mxu0 %v1797
        %v1799 = vpop.f32.mrf.mxu0
        %v1800 = vadd.f32 %v1740, %v1799
        %v1801 = vand.u32 %v240, 4294901760
        %1802 = vmatmul.f32.gmra.mxu0 %v1801
        %v1803 = vpop.f32.mrf.mxu0
        %v1804 = vadd.f32 %v1744, %v1803
        %v1805 = vand.u32 %v243, 4294901760
        %1806 = vmatmul.f32.gmra.mxu0 %v1805
        %v1807 = vpop.f32.mrf.mxu0
        %v1808 = vadd.f32 %v1748, %v1807
        %v1809 = vand.u32 %v246, 4294901760
        %1810 = vmatmul.f32.gmra.mxu0 %v1809
        %v1811 = vpop.f32.mrf.mxu0
        %v1812 = vadd.f32 %v1752, %v1811
        %v1813 = vand.u32 %v249, 4294901760
        %1814 = vmatmul.f32.gmra.mxu0 %v1813
        %v1815 = vpop.f32.mrf.mxu0
        %v1816 = vadd.f32 %v1756, %v1815
        %v1817 = vand.u32 %v252, 4294901760
        %1818 = vmatmul.f32.gmra.mxu0 %v1817
        %v1819 = vpop.f32.mrf.mxu0
        %v1820 = vadd.f32 %v1760, %v1819
        %v1821 = vand.u32 %v255, 4294901760
        %1822 = vmatmul.f32.gmra.mxu0 %v1821
        %v1823 = vpop.f32.mrf.mxu0
        %v1824 = vadd.f32 %v1764, %v1823
        %1825 = vdwg.mxu0
        %1826 = vset.pattern.permute.xlu0 2
        %1827 = vperm.xlu0 %1826, %v734
        %v1828 = vpop.permute.xlu0 %1827
        %1830 = vset.pattern.permute.xlu0 2
        %1831 = vperm.xlu0 %1830, %v735
        %v1832 = vpop.permute.xlu0 %1831
        %1834 = vset.pattern.permute.xlu0 2
        %1835 = vperm.xlu0 %1834, %v736
        %v1836 = vpop.permute.xlu0 %1835
        %1838 = vset.pattern.permute.xlu0 2
        %1839 = vperm.xlu0 %1838, %v737
        %v1840 = vpop.permute.xlu0 %1839
        %1842 = vset.pattern.permute.xlu0 2
        %1843 = vperm.xlu0 %1842, %v738
        %v1844 = vpop.permute.xlu0 %1843
        %1846 = vset.pattern.permute.xlu0 2
        %1847 = vperm.xlu0 %1846, %v739
        %v1848 = vpop.permute.xlu0 %1847
        %1850 = vset.pattern.permute.xlu0 2
        %1851 = vperm.xlu0 %1850, %v740
        %v1852 = vpop.permute.xlu0 %1851
        %1854 = vset.pattern.permute.xlu0 2
        %1855 = vperm.xlu0 %1854, %v741
        %v1856 = vpop.permute.xlu0 %1855
        %1858 = vset.pattern.permute.xlu0 2
        %1859 = vperm.xlu0 %1858, %v742
        %v1860 = vpop.permute.xlu0 %1859
        %v1862 = vmul.f32 %v1792, %v1828
        %v1863 = vmul.f32 %v1796, %v1832
        %v1864 = vmul.f32 %v1800, %v1836
        %v1865 = vmul.f32 %v1804, %v1840
        %v1866 = vmul.f32 %v1808, %v1844
        %v1867 = vmul.f32 %v1812, %v1848
        %v1868 = vmul.f32 %v1816, %v1852
        %v1869 = vmul.f32 %v1820, %v1856
        %v1870 = vmul.f32 %v1824, %v1860
        %v1871 = vadd.f32 %v1334, %v1862
        %v1872 = vadd.f32 %v1335, %v1863
        %v1873 = vadd.f32 %v1336, %v1864
        %v1874 = vadd.f32 %v1337, %v1865
        %v1875 = vadd.f32 %v1338, %v1866
        %v1876 = vadd.f32 %v1339, %v1867
        %v1877 = vadd.f32 %v1340, %v1868
        %v1878 = vadd.f32 %v1341, %v1869
        %v1879 = vadd.f32 %v1342, %v1870
        %s1880 = scalar_lea.vmem %s2, 168
        %v1881 = vld [vmem:[%s1880] sm:$0xff]
        %v1882 = vld [vmem:[%s1880 + $0x8] sm:$0xff]
        %v1883 = vld [vmem:[%s1880 + $0x10] sm:$0xff]
        %v1884 = vld [vmem:[%s1880 + $0x18] sm:$0xff]
        %v1885 = vld [vmem:[%s1880 + $0x20] sm:$0xff]
        %v1886 = vld [vmem:[%s1880 + $0x28] sm:$0xff]
        %v1887 = vld [vmem:[%s1880 + $0x30] sm:$0x1]
        %v1889 = vsel %vm257, %v1887, 0
        %1891 = vmatpush.msra.mxu0 0.0
        %1892 = vmatpush.msra.mxu0 0.0
        %1893 = vmatpush.msra.mxu0 0.0
        %1894 = vmatpush.msra.mxu0 0.0
        %1895 = vmatpush.msra.mxu0 0.0
        %1896 = vmatpush.msra.mxu0 0.0
        %1897 = vmatpush.msra.mxu0 0.0
        %1898 = vmatpush.msra.mxu0 0.0
        %1899 = vmatpush.msra.mxu0 0.0
        %v1900 = vand.u32 %v1889, 4294901760
        %1901 = vmatpush.msra.mxu0 %v1900
        %v1902 = vand.u32 %v1886, 4294901760
        %1903 = vmatpush.msra.mxu0 %v1902
        %v1904 = vand.u32 %v1885, 4294901760
        %1905 = vmatpush.msra.mxu0 %v1904
        %v1906 = vand.u32 %v1884, 4294901760
        %1907 = vmatpush.msra.mxu0 %v1906
        %v1908 = vand.u32 %v1883, 4294901760
        %1909 = vmatpush.msra.mxu0 %v1908
        %v1910 = vand.u32 %v1882, 4294901760
        %1911 = vmatpush.msra.mxu0 %v1910
        %v1912 = vand.u32 %v1881, 4294901760
        %1913 = vmatpush.msra.mxu0 %v1912
        %v1914 = vand.u32 %v231, 4294901760
        %v1915 = vsub.f32 %v231, %v1914
        %v1916 = vand.u32 %v1915, 4294901760
        %v1917 = vsub.f32 %v1915, %v1916
        %v1918 = vand.u32 %v1917, 4294901760
        %1919 = vmatmul.f32.gmra.mxu0 %v1918
        %v1920 = vpop.f32.mrf.mxu0
        %v1921 = vadd.f32 0.0, %v1920
        %v1922 = vand.u32 %v234, 4294901760
        %v1923 = vsub.f32 %v234, %v1922
        %v1924 = vand.u32 %v1923, 4294901760
        %v1925 = vsub.f32 %v1923, %v1924
        %v1926 = vand.u32 %v1925, 4294901760
        %1927 = vmatmul.f32.gmra.mxu0 %v1926
        %v1928 = vpop.f32.mrf.mxu0
        %v1929 = vadd.f32 0.0, %v1928
        %v1930 = vand.u32 %v237, 4294901760
        %v1931 = vsub.f32 %v237, %v1930
        %v1932 = vand.u32 %v1931, 4294901760
        %v1933 = vsub.f32 %v1931, %v1932
        %v1934 = vand.u32 %v1933, 4294901760
        %1935 = vmatmul.f32.gmra.mxu0 %v1934
        %v1936 = vpop.f32.mrf.mxu0
        %v1937 = vadd.f32 0.0, %v1936
        %v1938 = vand.u32 %v240, 4294901760
        %v1939 = vsub.f32 %v240, %v1938
        %v1940 = vand.u32 %v1939, 4294901760
        %v1941 = vsub.f32 %v1939, %v1940
        %v1942 = vand.u32 %v1941, 4294901760
        %1943 = vmatmul.f32.gmra.mxu0 %v1942
        %v1944 = vpop.f32.mrf.mxu0
        %v1945 = vadd.f32 0.0, %v1944
        %v1946 = vand.u32 %v243, 4294901760
        %v1947 = vsub.f32 %v243, %v1946
        %v1948 = vand.u32 %v1947, 4294901760
        %v1949 = vsub.f32 %v1947, %v1948
        %v1950 = vand.u32 %v1949, 4294901760
        %1951 = vmatmul.f32.gmra.mxu0 %v1950
        %v1952 = vpop.f32.mrf.mxu0
        %v1953 = vadd.f32 0.0, %v1952
        %v1954 = vand.u32 %v246, 4294901760
        %v1955 = vsub.f32 %v246, %v1954
        %v1956 = vand.u32 %v1955, 4294901760
        %v1957 = vsub.f32 %v1955, %v1956
        %v1958 = vand.u32 %v1957, 4294901760
        %1959 = vmatmul.f32.gmra.mxu0 %v1958
        %v1960 = vpop.f32.mrf.mxu0
        %v1961 = vadd.f32 0.0, %v1960
        %v1962 = vand.u32 %v249, 4294901760
        %v1963 = vsub.f32 %v249, %v1962
        %v1964 = vand.u32 %v1963, 4294901760
        %v1965 = vsub.f32 %v1963, %v1964
        %v1966 = vand.u32 %v1965, 4294901760
        %1967 = vmatmul.f32.gmra.mxu0 %v1966
        %v1968 = vpop.f32.mrf.mxu0
        %v1969 = vadd.f32 0.0, %v1968
        %v1970 = vand.u32 %v252, 4294901760
        %v1971 = vsub.f32 %v252, %v1970
        %v1972 = vand.u32 %v1971, 4294901760
        %v1973 = vsub.f32 %v1971, %v1972
        %v1974 = vand.u32 %v1973, 4294901760
        %1975 = vmatmul.f32.gmra.mxu0 %v1974
        %v1976 = vpop.f32.mrf.mxu0
        %v1977 = vadd.f32 0.0, %v1976
        %v1978 = vand.u32 %v255, 4294901760
        %v1979 = vsub.f32 %v255, %v1978
        %v1980 = vand.u32 %v1979, 4294901760
        %v1981 = vsub.f32 %v1979, %v1980
        %v1982 = vand.u32 %v1981, 4294901760
        %1983 = vmatmul.f32.gmra.mxu0 %v1982
        %v1984 = vpop.f32.mrf.mxu0
        %v1985 = vadd.f32 0.0, %v1984
        %1986 = vdwg.mxu0
        %1987 = vmatpush.msra.mxu0 0.0
        %1988 = vmatpush.msra.mxu0 0.0
        %1989 = vmatpush.msra.mxu0 0.0
        %1990 = vmatpush.msra.mxu0 0.0
        %1991 = vmatpush.msra.mxu0 0.0
        %1992 = vmatpush.msra.mxu0 0.0
        %1993 = vmatpush.msra.mxu0 0.0
        %1994 = vmatpush.msra.mxu0 0.0
        %1995 = vmatpush.msra.mxu0 0.0
        %v1996 = vand.u32 %v1889, 4294901760
        %v1997 = vsub.f32 %v1889, %v1996
        %v1998 = vand.u32 %v1997, 4294901760
        %v1999 = vsub.f32 %v1997, %v1998
        %v2000 = vand.u32 %v1999, 4294901760
        %2001 = vmatpush.msra.mxu0 %v2000
        %v2002 = vand.u32 %v1886, 4294901760
        %v2003 = vsub.f32 %v1886, %v2002
        %v2004 = vand.u32 %v2003, 4294901760
        %v2005 = vsub.f32 %v2003, %v2004
        %v2006 = vand.u32 %v2005, 4294901760
        %2007 = vmatpush.msra.mxu0 %v2006
        %v2008 = vand.u32 %v1885, 4294901760
        %v2009 = vsub.f32 %v1885, %v2008
        %v2010 = vand.u32 %v2009, 4294901760
        %v2011 = vsub.f32 %v2009, %v2010
        %v2012 = vand.u32 %v2011, 4294901760
        %2013 = vmatpush.msra.mxu0 %v2012
        %v2014 = vand.u32 %v1884, 4294901760
        %v2015 = vsub.f32 %v1884, %v2014
        %v2016 = vand.u32 %v2015, 4294901760
        %v2017 = vsub.f32 %v2015, %v2016
        %v2018 = vand.u32 %v2017, 4294901760
        %2019 = vmatpush.msra.mxu0 %v2018
        %v2020 = vand.u32 %v1883, 4294901760
        %v2021 = vsub.f32 %v1883, %v2020
        %v2022 = vand.u32 %v2021, 4294901760
        %v2023 = vsub.f32 %v2021, %v2022
        %v2024 = vand.u32 %v2023, 4294901760
        %2025 = vmatpush.msra.mxu0 %v2024
        %v2026 = vand.u32 %v1882, 4294901760
        %v2027 = vsub.f32 %v1882, %v2026
        %v2028 = vand.u32 %v2027, 4294901760
        %v2029 = vsub.f32 %v2027, %v2028
        %v2030 = vand.u32 %v2029, 4294901760
        %2031 = vmatpush.msra.mxu0 %v2030
        %v2032 = vand.u32 %v1881, 4294901760
        %v2033 = vsub.f32 %v1881, %v2032
        %v2034 = vand.u32 %v2033, 4294901760
        %v2035 = vsub.f32 %v2033, %v2034
        %v2036 = vand.u32 %v2035, 4294901760
        %2037 = vmatpush.msra.mxu0 %v2036
        %v2038 = vand.u32 %v231, 4294901760
        %2039 = vmatmul.f32.gmra.mxu0 %v2038
        %v2040 = vpop.f32.mrf.mxu0
        %v2041 = vadd.f32 %v1921, %v2040
        %v2042 = vand.u32 %v234, 4294901760
        %2043 = vmatmul.f32.gmra.mxu0 %v2042
        %v2044 = vpop.f32.mrf.mxu0
        %v2045 = vadd.f32 %v1929, %v2044
        %v2046 = vand.u32 %v237, 4294901760
        %2047 = vmatmul.f32.gmra.mxu0 %v2046
        %v2048 = vpop.f32.mrf.mxu0
        %v2049 = vadd.f32 %v1937, %v2048
        %v2050 = vand.u32 %v240, 4294901760
        %2051 = vmatmul.f32.gmra.mxu0 %v2050
        %v2052 = vpop.f32.mrf.mxu0
        %v2053 = vadd.f32 %v1945, %v2052
        %v2054 = vand.u32 %v243, 4294901760
        %2055 = vmatmul.f32.gmra.mxu0 %v2054
        %v2056 = vpop.f32.mrf.mxu0
        %v2057 = vadd.f32 %v1953, %v2056
        %v2058 = vand.u32 %v246, 4294901760
        %2059 = vmatmul.f32.gmra.mxu0 %v2058
        %v2060 = vpop.f32.mrf.mxu0
        %v2061 = vadd.f32 %v1961, %v2060
        %v2062 = vand.u32 %v249, 4294901760
        %2063 = vmatmul.f32.gmra.mxu0 %v2062
        %v2064 = vpop.f32.mrf.mxu0
        %v2065 = vadd.f32 %v1969, %v2064
        %v2066 = vand.u32 %v252, 4294901760
        %2067 = vmatmul.f32.gmra.mxu0 %v2066
        %v2068 = vpop.f32.mrf.mxu0
        %v2069 = vadd.f32 %v1977, %v2068
        %v2070 = vand.u32 %v255, 4294901760
        %2071 = vmatmul.f32.gmra.mxu0 %v2070
        %v2072 = vpop.f32.mrf.mxu0
        %v2073 = vadd.f32 %v1985, %v2072
        %2074 = vdwg.mxu0
        %2075 = vmatpush.msra.mxu0 0.0
        %2076 = vmatpush.msra.mxu0 0.0
        %2077 = vmatpush.msra.mxu0 0.0
        %2078 = vmatpush.msra.mxu0 0.0
        %2079 = vmatpush.msra.mxu0 0.0
        %2080 = vmatpush.msra.mxu0 0.0
        %2081 = vmatpush.msra.mxu0 0.0
        %2082 = vmatpush.msra.mxu0 0.0
        %2083 = vmatpush.msra.mxu0 0.0
        %v2084 = vand.u32 %v1889, 4294901760
        %v2085 = vsub.f32 %v1889, %v2084
        %2086 = vmatpush.msra.mxu0 %v2085
        %v2087 = vand.u32 %v1886, 4294901760
        %v2088 = vsub.f32 %v1886, %v2087
        %2089 = vmatpush.msra.mxu0 %v2088
        %v2090 = vand.u32 %v1885, 4294901760
        %v2091 = vsub.f32 %v1885, %v2090
        %2092 = vmatpush.msra.mxu0 %v2091
        %v2093 = vand.u32 %v1884, 4294901760
        %v2094 = vsub.f32 %v1884, %v2093
        %2095 = vmatpush.msra.mxu0 %v2094
        %v2096 = vand.u32 %v1883, 4294901760
        %v2097 = vsub.f32 %v1883, %v2096
        %2098 = vmatpush.msra.mxu0 %v2097
        %v2099 = vand.u32 %v1882, 4294901760
        %v2100 = vsub.f32 %v1882, %v2099
        %2101 = vmatpush.msra.mxu0 %v2100
        %v2102 = vand.u32 %v1881, 4294901760
        %v2103 = vsub.f32 %v1881, %v2102
        %2104 = vmatpush.msra.mxu0 %v2103
        %v2105 = vand.u32 %v231, 4294901760
        %v2106 = vsub.f32 %v231, %v2105
        %2107 = vmatmul.f32.gmra.mxu0 %v2106
        %v2108 = vpop.f32.mrf.mxu0
        %v2109 = vadd.f32 %v2041, %v2108
        %v2110 = vand.u32 %v234, 4294901760
        %v2111 = vsub.f32 %v234, %v2110
        %2112 = vmatmul.f32.gmra.mxu0 %v2111
        %v2113 = vpop.f32.mrf.mxu0
        %v2114 = vadd.f32 %v2045, %v2113
        %v2115 = vand.u32 %v237, 4294901760
        %v2116 = vsub.f32 %v237, %v2115
        %2117 = vmatmul.f32.gmra.mxu0 %v2116
        %v2118 = vpop.f32.mrf.mxu0
        %v2119 = vadd.f32 %v2049, %v2118
        %v2120 = vand.u32 %v240, 4294901760
        %v2121 = vsub.f32 %v240, %v2120
        %2122 = vmatmul.f32.gmra.mxu0 %v2121
        %v2123 = vpop.f32.mrf.mxu0
        %v2124 = vadd.f32 %v2053, %v2123
        %v2125 = vand.u32 %v243, 4294901760
        %v2126 = vsub.f32 %v243, %v2125
        %2127 = vmatmul.f32.gmra.mxu0 %v2126
        %v2128 = vpop.f32.mrf.mxu0
        %v2129 = vadd.f32 %v2057, %v2128
        %v2130 = vand.u32 %v246, 4294901760
        %v2131 = vsub.f32 %v246, %v2130
        %2132 = vmatmul.f32.gmra.mxu0 %v2131
        %v2133 = vpop.f32.mrf.mxu0
        %v2134 = vadd.f32 %v2061, %v2133
        %v2135 = vand.u32 %v249, 4294901760
        %v2136 = vsub.f32 %v249, %v2135
        %2137 = vmatmul.f32.gmra.mxu0 %v2136
        %v2138 = vpop.f32.mrf.mxu0
        %v2139 = vadd.f32 %v2065, %v2138
        %v2140 = vand.u32 %v252, 4294901760
        %v2141 = vsub.f32 %v252, %v2140
        %2142 = vmatmul.f32.gmra.mxu0 %v2141
        %v2143 = vpop.f32.mrf.mxu0
        %v2144 = vadd.f32 %v2069, %v2143
        %v2145 = vand.u32 %v255, 4294901760
        %v2146 = vsub.f32 %v255, %v2145
        %2147 = vmatmul.f32.gmra.mxu0 %v2146
        %v2148 = vpop.f32.mrf.mxu0
        %v2149 = vadd.f32 %v2073, %v2148
        %2150 = vdwg.mxu0
        %2151 = vmatpush.msra.mxu0 0.0
        %2152 = vmatpush.msra.mxu0 0.0
        %2153 = vmatpush.msra.mxu0 0.0
        %2154 = vmatpush.msra.mxu0 0.0
        %2155 = vmatpush.msra.mxu0 0.0
        %2156 = vmatpush.msra.mxu0 0.0
        %2157 = vmatpush.msra.mxu0 0.0
        %2158 = vmatpush.msra.mxu0 0.0
        %2159 = vmatpush.msra.mxu0 0.0
        %v2160 = vand.u32 %v1889, 4294901760
        %2161 = vmatpush.msra.mxu0 %v2160
        %v2162 = vand.u32 %v1886, 4294901760
        %2163 = vmatpush.msra.mxu0 %v2162
        %v2164 = vand.u32 %v1885, 4294901760
        %2165 = vmatpush.msra.mxu0 %v2164
        %v2166 = vand.u32 %v1884, 4294901760
        %2167 = vmatpush.msra.mxu0 %v2166
        %v2168 = vand.u32 %v1883, 4294901760
        %2169 = vmatpush.msra.mxu0 %v2168
        %v2170 = vand.u32 %v1882, 4294901760
        %2171 = vmatpush.msra.mxu0 %v2170
        %v2172 = vand.u32 %v1881, 4294901760
        %2173 = vmatpush.msra.mxu0 %v2172
        %v2174 = vand.u32 %v231, 4294901760
        %v2175 = vsub.f32 %v231, %v2174
        %v2176 = vand.u32 %v2175, 4294901760
        %2177 = vmatmul.f32.gmra.mxu0 %v2176
        %v2178 = vpop.f32.mrf.mxu0
        %v2179 = vadd.f32 %v2109, %v2178
        %v2180 = vand.u32 %v234, 4294901760
        %v2181 = vsub.f32 %v234, %v2180
        %v2182 = vand.u32 %v2181, 4294901760
        %2183 = vmatmul.f32.gmra.mxu0 %v2182
        %v2184 = vpop.f32.mrf.mxu0
        %v2185 = vadd.f32 %v2114, %v2184
        %v2186 = vand.u32 %v237, 4294901760
        %v2187 = vsub.f32 %v237, %v2186
        %v2188 = vand.u32 %v2187, 4294901760
        %2189 = vmatmul.f32.gmra.mxu0 %v2188
        %v2190 = vpop.f32.mrf.mxu0
        %v2191 = vadd.f32 %v2119, %v2190
        %v2192 = vand.u32 %v240, 4294901760
        %v2193 = vsub.f32 %v240, %v2192
        %v2194 = vand.u32 %v2193, 4294901760
        %2195 = vmatmul.f32.gmra.mxu0 %v2194
        %v2196 = vpop.f32.mrf.mxu0
        %v2197 = vadd.f32 %v2124, %v2196
        %v2198 = vand.u32 %v243, 4294901760
        %v2199 = vsub.f32 %v243, %v2198
        %v2200 = vand.u32 %v2199, 4294901760
        %2201 = vmatmul.f32.gmra.mxu0 %v2200
        %v2202 = vpop.f32.mrf.mxu0
        %v2203 = vadd.f32 %v2129, %v2202
        %v2204 = vand.u32 %v246, 4294901760
        %v2205 = vsub.f32 %v246, %v2204
        %v2206 = vand.u32 %v2205, 4294901760
        %2207 = vmatmul.f32.gmra.mxu0 %v2206
        %v2208 = vpop.f32.mrf.mxu0
        %v2209 = vadd.f32 %v2134, %v2208
        %v2210 = vand.u32 %v249, 4294901760
        %v2211 = vsub.f32 %v249, %v2210
        %v2212 = vand.u32 %v2211, 4294901760
        %2213 = vmatmul.f32.gmra.mxu0 %v2212
        %v2214 = vpop.f32.mrf.mxu0
        %v2215 = vadd.f32 %v2139, %v2214
        %v2216 = vand.u32 %v252, 4294901760
        %v2217 = vsub.f32 %v252, %v2216
        %v2218 = vand.u32 %v2217, 4294901760
        %2219 = vmatmul.f32.gmra.mxu0 %v2218
        %v2220 = vpop.f32.mrf.mxu0
        %v2221 = vadd.f32 %v2144, %v2220
        %v2222 = vand.u32 %v255, 4294901760
        %v2223 = vsub.f32 %v255, %v2222
        %v2224 = vand.u32 %v2223, 4294901760
        %2225 = vmatmul.f32.gmra.mxu0 %v2224
        %v2226 = vpop.f32.mrf.mxu0
        %v2227 = vadd.f32 %v2149, %v2226
        %2228 = vdwg.mxu0
        %2229 = vmatpush.msra.mxu0 0.0
        %2230 = vmatpush.msra.mxu0 0.0
        %2231 = vmatpush.msra.mxu0 0.0
        %2232 = vmatpush.msra.mxu0 0.0
        %2233 = vmatpush.msra.mxu0 0.0
        %2234 = vmatpush.msra.mxu0 0.0
        %2235 = vmatpush.msra.mxu0 0.0
        %2236 = vmatpush.msra.mxu0 0.0
        %2237 = vmatpush.msra.mxu0 0.0
        %v2238 = vand.u32 %v1889, 4294901760
        %v2239 = vsub.f32 %v1889, %v2238
        %v2240 = vand.u32 %v2239, 4294901760
        %2241 = vmatpush.msra.mxu0 %v2240
        %v2242 = vand.u32 %v1886, 4294901760
        %v2243 = vsub.f32 %v1886, %v2242
        %v2244 = vand.u32 %v2243, 4294901760
        %2245 = vmatpush.msra.mxu0 %v2244
        %v2246 = vand.u32 %v1885, 4294901760
        %v2247 = vsub.f32 %v1885, %v2246
        %v2248 = vand.u32 %v2247, 4294901760
        %2249 = vmatpush.msra.mxu0 %v2248
        %v2250 = vand.u32 %v1884, 4294901760
        %v2251 = vsub.f32 %v1884, %v2250
        %v2252 = vand.u32 %v2251, 4294901760
        %2253 = vmatpush.msra.mxu0 %v2252
        %v2254 = vand.u32 %v1883, 4294901760
        %v2255 = vsub.f32 %v1883, %v2254
        %v2256 = vand.u32 %v2255, 4294901760
        %2257 = vmatpush.msra.mxu0 %v2256
        %v2258 = vand.u32 %v1882, 4294901760
        %v2259 = vsub.f32 %v1882, %v2258
        %v2260 = vand.u32 %v2259, 4294901760
        %2261 = vmatpush.msra.mxu0 %v2260
        %v2262 = vand.u32 %v1881, 4294901760
        %v2263 = vsub.f32 %v1881, %v2262
        %v2264 = vand.u32 %v2263, 4294901760
        %2265 = vmatpush.msra.mxu0 %v2264
        %v2266 = vand.u32 %v231, 4294901760
        %2267 = vmatmul.f32.gmra.mxu0 %v2266
        %v2268 = vpop.f32.mrf.mxu0
        %v2269 = vadd.f32 %v2179, %v2268
        %v2270 = vand.u32 %v234, 4294901760
        %2271 = vmatmul.f32.gmra.mxu0 %v2270
        %v2272 = vpop.f32.mrf.mxu0
        %v2273 = vadd.f32 %v2185, %v2272
        %v2274 = vand.u32 %v237, 4294901760
        %2275 = vmatmul.f32.gmra.mxu0 %v2274
        %v2276 = vpop.f32.mrf.mxu0
        %v2277 = vadd.f32 %v2191, %v2276
        %v2278 = vand.u32 %v240, 4294901760
        %2279 = vmatmul.f32.gmra.mxu0 %v2278
        %v2280 = vpop.f32.mrf.mxu0
        %v2281 = vadd.f32 %v2197, %v2280
        %v2282 = vand.u32 %v243, 4294901760
        %2283 = vmatmul.f32.gmra.mxu0 %v2282
        %v2284 = vpop.f32.mrf.mxu0
        %v2285 = vadd.f32 %v2203, %v2284
        %v2286 = vand.u32 %v246, 4294901760
        %2287 = vmatmul.f32.gmra.mxu0 %v2286
        %v2288 = vpop.f32.mrf.mxu0
        %v2289 = vadd.f32 %v2209, %v2288
        %v2290 = vand.u32 %v249, 4294901760
        %2291 = vmatmul.f32.gmra.mxu0 %v2290
        %v2292 = vpop.f32.mrf.mxu0
        %v2293 = vadd.f32 %v2215, %v2292
        %v2294 = vand.u32 %v252, 4294901760
        %2295 = vmatmul.f32.gmra.mxu0 %v2294
        %v2296 = vpop.f32.mrf.mxu0
        %v2297 = vadd.f32 %v2221, %v2296
        %v2298 = vand.u32 %v255, 4294901760
        %2299 = vmatmul.f32.gmra.mxu0 %v2298
        %v2300 = vpop.f32.mrf.mxu0
        %v2301 = vadd.f32 %v2227, %v2300
        %2302 = vdwg.mxu0
        %2303 = vmatpush.msra.mxu0 0.0
        %2304 = vmatpush.msra.mxu0 0.0
        %2305 = vmatpush.msra.mxu0 0.0
        %2306 = vmatpush.msra.mxu0 0.0
        %2307 = vmatpush.msra.mxu0 0.0
        %2308 = vmatpush.msra.mxu0 0.0
        %2309 = vmatpush.msra.mxu0 0.0
        %2310 = vmatpush.msra.mxu0 0.0
        %2311 = vmatpush.msra.mxu0 0.0
        %v2312 = vand.u32 %v1889, 4294901760
        %2313 = vmatpush.msra.mxu0 %v2312
        %v2314 = vand.u32 %v1886, 4294901760
        %2315 = vmatpush.msra.mxu0 %v2314
        %v2316 = vand.u32 %v1885, 4294901760
        %2317 = vmatpush.msra.mxu0 %v2316
        %v2318 = vand.u32 %v1884, 4294901760
        %2319 = vmatpush.msra.mxu0 %v2318
        %v2320 = vand.u32 %v1883, 4294901760
        %2321 = vmatpush.msra.mxu0 %v2320
        %v2322 = vand.u32 %v1882, 4294901760
        %2323 = vmatpush.msra.mxu0 %v2322
        %v2324 = vand.u32 %v1881, 4294901760
        %2325 = vmatpush.msra.mxu0 %v2324
        %v2326 = vand.u32 %v231, 4294901760
        %2327 = vmatmul.f32.gmra.mxu0 %v2326
        %v2328 = vpop.f32.mrf.mxu0
        %v2329 = vadd.f32 %v2269, %v2328
        %v2330 = vand.u32 %v234, 4294901760
        %2331 = vmatmul.f32.gmra.mxu0 %v2330
        %v2332 = vpop.f32.mrf.mxu0
        %v2333 = vadd.f32 %v2273, %v2332
        %v2334 = vand.u32 %v237, 4294901760
        %2335 = vmatmul.f32.gmra.mxu0 %v2334
        %v2336 = vpop.f32.mrf.mxu0
        %v2337 = vadd.f32 %v2277, %v2336
        %v2338 = vand.u32 %v240, 4294901760
        %2339 = vmatmul.f32.gmra.mxu0 %v2338
        %v2340 = vpop.f32.mrf.mxu0
        %v2341 = vadd.f32 %v2281, %v2340
        %v2342 = vand.u32 %v243, 4294901760
        %2343 = vmatmul.f32.gmra.mxu0 %v2342
        %v2344 = vpop.f32.mrf.mxu0
        %v2345 = vadd.f32 %v2285, %v2344
        %v2346 = vand.u32 %v246, 4294901760
        %2347 = vmatmul.f32.gmra.mxu0 %v2346
        %v2348 = vpop.f32.mrf.mxu0
        %v2349 = vadd.f32 %v2289, %v2348
        %v2350 = vand.u32 %v249, 4294901760
        %2351 = vmatmul.f32.gmra.mxu0 %v2350
        %v2352 = vpop.f32.mrf.mxu0
        %v2353 = vadd.f32 %v2293, %v2352
        %v2354 = vand.u32 %v252, 4294901760
        %2355 = vmatmul.f32.gmra.mxu0 %v2354
        %v2356 = vpop.f32.mrf.mxu0
        %v2357 = vadd.f32 %v2297, %v2356
        %v2358 = vand.u32 %v255, 4294901760
        %2359 = vmatmul.f32.gmra.mxu0 %v2358
        %v2360 = vpop.f32.mrf.mxu0
        %v2361 = vadd.f32 %v2301, %v2360
        %2362 = vdwg.mxu0
        %2363 = vset.pattern.permute.xlu0 3
        %2364 = vperm.xlu0 %2363, %v734
        %v2365 = vpop.permute.xlu0 %2364
        %2367 = vset.pattern.permute.xlu0 3
        %2368 = vperm.xlu0 %2367, %v735
        %v2369 = vpop.permute.xlu0 %2368
        %2371 = vset.pattern.permute.xlu0 3
        %2372 = vperm.xlu0 %2371, %v736
        %v2373 = vpop.permute.xlu0 %2372
        %2375 = vset.pattern.permute.xlu0 3
        %2376 = vperm.xlu0 %2375, %v737
        %v2377 = vpop.permute.xlu0 %2376
        %2379 = vset.pattern.permute.xlu0 3
        %2380 = vperm.xlu0 %2379, %v738
        %v2381 = vpop.permute.xlu0 %2380
        %2383 = vset.pattern.permute.xlu0 3
        %2384 = vperm.xlu0 %2383, %v739
        %v2385 = vpop.permute.xlu0 %2384
        %2387 = vset.pattern.permute.xlu0 3
        %2388 = vperm.xlu0 %2387, %v740
        %v2389 = vpop.permute.xlu0 %2388
        %2391 = vset.pattern.permute.xlu0 3
        %2392 = vperm.xlu0 %2391, %v741
        %v2393 = vpop.permute.xlu0 %2392
        %2395 = vset.pattern.permute.xlu0 3
        %2396 = vperm.xlu0 %2395, %v742
        %v2397 = vpop.permute.xlu0 %2396
        %v2399 = vmul.f32 %v2329, %v2365
        %v2400 = vmul.f32 %v2333, %v2369
        %v2401 = vmul.f32 %v2337, %v2373
        %v2402 = vmul.f32 %v2341, %v2377
        %v2403 = vmul.f32 %v2345, %v2381
        %v2404 = vmul.f32 %v2349, %v2385
        %v2405 = vmul.f32 %v2353, %v2389
        %v2406 = vmul.f32 %v2357, %v2393
        %v2407 = vmul.f32 %v2361, %v2397
        %v2408 = vadd.f32 %v1871, %v2399
        %v2409 = vadd.f32 %v1872, %v2400
        %v2410 = vadd.f32 %v1873, %v2401
        %v2411 = vadd.f32 %v1874, %v2402
        %v2412 = vadd.f32 %v1875, %v2403
        %v2413 = vadd.f32 %v1876, %v2404
        %v2414 = vadd.f32 %v1877, %v2405
        %v2415 = vadd.f32 %v1878, %v2406
        %v2416 = vadd.f32 %v1879, %v2407
        %s2417 = scalar_lea.vmem %s2, 224
        %v2418 = vld [vmem:[%s2417] sm:$0xff]
        %v2419 = vld [vmem:[%s2417 + $0x8] sm:$0xff]
        %v2420 = vld [vmem:[%s2417 + $0x10] sm:$0xff]
        %v2421 = vld [vmem:[%s2417 + $0x18] sm:$0xff]
        %v2422 = vld [vmem:[%s2417 + $0x20] sm:$0xff]
        %v2423 = vld [vmem:[%s2417 + $0x28] sm:$0xff]
        %v2424 = vld [vmem:[%s2417 + $0x30] sm:$0x1]
        %v2426 = vsel %vm257, %v2424, 0
        %2428 = vmatpush.msra.mxu0 0.0
        %2429 = vmatpush.msra.mxu0 0.0
        %2430 = vmatpush.msra.mxu0 0.0
        %2431 = vmatpush.msra.mxu0 0.0
        %2432 = vmatpush.msra.mxu0 0.0
        %2433 = vmatpush.msra.mxu0 0.0
        %2434 = vmatpush.msra.mxu0 0.0
        %2435 = vmatpush.msra.mxu0 0.0
        %2436 = vmatpush.msra.mxu0 0.0
        %v2437 = vand.u32 %v2426, 4294901760
        %2438 = vmatpush.msra.mxu0 %v2437
        %v2439 = vand.u32 %v2423, 4294901760
        %2440 = vmatpush.msra.mxu0 %v2439
        %v2441 = vand.u32 %v2422, 4294901760
        %2442 = vmatpush.msra.mxu0 %v2441
        %v2443 = vand.u32 %v2421, 4294901760
        %2444 = vmatpush.msra.mxu0 %v2443
        %v2445 = vand.u32 %v2420, 4294901760
        %2446 = vmatpush.msra.mxu0 %v2445
        %v2447 = vand.u32 %v2419, 4294901760
        %2448 = vmatpush.msra.mxu0 %v2447
        %v2449 = vand.u32 %v2418, 4294901760
        %2450 = vmatpush.msra.mxu0 %v2449
        %v2451 = vand.u32 %v231, 4294901760
        %v2452 = vsub.f32 %v231, %v2451
        %v2453 = vand.u32 %v2452, 4294901760
        %v2454 = vsub.f32 %v2452, %v2453
        %v2455 = vand.u32 %v2454, 4294901760
        %2456 = vmatmul.f32.gmra.mxu0 %v2455
        %v2457 = vpop.f32.mrf.mxu0
        %v2458 = vadd.f32 0.0, %v2457
        %v2459 = vand.u32 %v234, 4294901760
        %v2460 = vsub.f32 %v234, %v2459
        %v2461 = vand.u32 %v2460, 4294901760
        %v2462 = vsub.f32 %v2460, %v2461
        %v2463 = vand.u32 %v2462, 4294901760
        %2464 = vmatmul.f32.gmra.mxu0 %v2463
        %v2465 = vpop.f32.mrf.mxu0
        %v2466 = vadd.f32 0.0, %v2465
        %v2467 = vand.u32 %v237, 4294901760
        %v2468 = vsub.f32 %v237, %v2467
        %v2469 = vand.u32 %v2468, 4294901760
        %v2470 = vsub.f32 %v2468, %v2469
        %v2471 = vand.u32 %v2470, 4294901760
        %2472 = vmatmul.f32.gmra.mxu0 %v2471
        %v2473 = vpop.f32.mrf.mxu0
        %v2474 = vadd.f32 0.0, %v2473
        %v2475 = vand.u32 %v240, 4294901760
        %v2476 = vsub.f32 %v240, %v2475
        %v2477 = vand.u32 %v2476, 4294901760
        %v2478 = vsub.f32 %v2476, %v2477
        %v2479 = vand.u32 %v2478, 4294901760
        %2480 = vmatmul.f32.gmra.mxu0 %v2479
        %v2481 = vpop.f32.mrf.mxu0
        %v2482 = vadd.f32 0.0, %v2481
        %v2483 = vand.u32 %v243, 4294901760
        %v2484 = vsub.f32 %v243, %v2483
        %v2485 = vand.u32 %v2484, 4294901760
        %v2486 = vsub.f32 %v2484, %v2485
        %v2487 = vand.u32 %v2486, 4294901760
        %2488 = vmatmul.f32.gmra.mxu0 %v2487
        %v2489 = vpop.f32.mrf.mxu0
        %v2490 = vadd.f32 0.0, %v2489
        %v2491 = vand.u32 %v246, 4294901760
        %v2492 = vsub.f32 %v246, %v2491
        %v2493 = vand.u32 %v2492, 4294901760
        %v2494 = vsub.f32 %v2492, %v2493
        %v2495 = vand.u32 %v2494, 4294901760
        %2496 = vmatmul.f32.gmra.mxu0 %v2495
        %v2497 = vpop.f32.mrf.mxu0
        %v2498 = vadd.f32 0.0, %v2497
        %v2499 = vand.u32 %v249, 4294901760
        %v2500 = vsub.f32 %v249, %v2499
        %v2501 = vand.u32 %v2500, 4294901760
        %v2502 = vsub.f32 %v2500, %v2501
        %v2503 = vand.u32 %v2502, 4294901760
        %2504 = vmatmul.f32.gmra.mxu0 %v2503
        %v2505 = vpop.f32.mrf.mxu0
        %v2506 = vadd.f32 0.0, %v2505
        %v2507 = vand.u32 %v252, 4294901760
        %v2508 = vsub.f32 %v252, %v2507
        %v2509 = vand.u32 %v2508, 4294901760
        %v2510 = vsub.f32 %v2508, %v2509
        %v2511 = vand.u32 %v2510, 4294901760
        %2512 = vmatmul.f32.gmra.mxu0 %v2511
        %v2513 = vpop.f32.mrf.mxu0
        %v2514 = vadd.f32 0.0, %v2513
        %v2515 = vand.u32 %v255, 4294901760
        %v2516 = vsub.f32 %v255, %v2515
        %v2517 = vand.u32 %v2516, 4294901760
        %v2518 = vsub.f32 %v2516, %v2517
        %v2519 = vand.u32 %v2518, 4294901760
        %2520 = vmatmul.f32.gmra.mxu0 %v2519
        %v2521 = vpop.f32.mrf.mxu0
        %v2522 = vadd.f32 0.0, %v2521
        %2523 = vdwg.mxu0
        %2524 = vmatpush.msra.mxu0 0.0
        %2525 = vmatpush.msra.mxu0 0.0
        %2526 = vmatpush.msra.mxu0 0.0
        %2527 = vmatpush.msra.mxu0 0.0
        %2528 = vmatpush.msra.mxu0 0.0
        %2529 = vmatpush.msra.mxu0 0.0
        %2530 = vmatpush.msra.mxu0 0.0
        %2531 = vmatpush.msra.mxu0 0.0
        %2532 = vmatpush.msra.mxu0 0.0
        %v2533 = vand.u32 %v2426, 4294901760
        %v2534 = vsub.f32 %v2426, %v2533
        %v2535 = vand.u32 %v2534, 4294901760
        %v2536 = vsub.f32 %v2534, %v2535
        %v2537 = vand.u32 %v2536, 4294901760
        %2538 = vmatpush.msra.mxu0 %v2537
        %v2539 = vand.u32 %v2423, 4294901760
        %v2540 = vsub.f32 %v2423, %v2539
        %v2541 = vand.u32 %v2540, 4294901760
        %v2542 = vsub.f32 %v2540, %v2541
        %v2543 = vand.u32 %v2542, 4294901760
        %2544 = vmatpush.msra.mxu0 %v2543
        %v2545 = vand.u32 %v2422, 4294901760
        %v2546 = vsub.f32 %v2422, %v2545
        %v2547 = vand.u32 %v2546, 4294901760
        %v2548 = vsub.f32 %v2546, %v2547
        %v2549 = vand.u32 %v2548, 4294901760
        %2550 = vmatpush.msra.mxu0 %v2549
        %v2551 = vand.u32 %v2421, 4294901760
        %v2552 = vsub.f32 %v2421, %v2551
        %v2553 = vand.u32 %v2552, 4294901760
        %v2554 = vsub.f32 %v2552, %v2553
        %v2555 = vand.u32 %v2554, 4294901760
        %2556 = vmatpush.msra.mxu0 %v2555
        %v2557 = vand.u32 %v2420, 4294901760
        %v2558 = vsub.f32 %v2420, %v2557
        %v2559 = vand.u32 %v2558, 4294901760
        %v2560 = vsub.f32 %v2558, %v2559
        %v2561 = vand.u32 %v2560, 4294901760
        %2562 = vmatpush.msra.mxu0 %v2561
        %v2563 = vand.u32 %v2419, 4294901760
        %v2564 = vsub.f32 %v2419, %v2563
        %v2565 = vand.u32 %v2564, 4294901760
        %v2566 = vsub.f32 %v2564, %v2565
        %v2567 = vand.u32 %v2566, 4294901760
        %2568 = vmatpush.msra.mxu0 %v2567
        %v2569 = vand.u32 %v2418, 4294901760
        %v2570 = vsub.f32 %v2418, %v2569
        %v2571 = vand.u32 %v2570, 4294901760
        %v2572 = vsub.f32 %v2570, %v2571
        %v2573 = vand.u32 %v2572, 4294901760
        %2574 = vmatpush.msra.mxu0 %v2573
        %v2575 = vand.u32 %v231, 4294901760
        %2576 = vmatmul.f32.gmra.mxu0 %v2575
        %v2577 = vpop.f32.mrf.mxu0
        %v2578 = vadd.f32 %v2458, %v2577
        %v2579 = vand.u32 %v234, 4294901760
        %2580 = vmatmul.f32.gmra.mxu0 %v2579
        %v2581 = vpop.f32.mrf.mxu0
        %v2582 = vadd.f32 %v2466, %v2581
        %v2583 = vand.u32 %v237, 4294901760
        %2584 = vmatmul.f32.gmra.mxu0 %v2583
        %v2585 = vpop.f32.mrf.mxu0
        %v2586 = vadd.f32 %v2474, %v2585
        %v2587 = vand.u32 %v240, 4294901760
        %2588 = vmatmul.f32.gmra.mxu0 %v2587
        %v2589 = vpop.f32.mrf.mxu0
        %v2590 = vadd.f32 %v2482, %v2589
        %v2591 = vand.u32 %v243, 4294901760
        %2592 = vmatmul.f32.gmra.mxu0 %v2591
        %v2593 = vpop.f32.mrf.mxu0
        %v2594 = vadd.f32 %v2490, %v2593
        %v2595 = vand.u32 %v246, 4294901760
        %2596 = vmatmul.f32.gmra.mxu0 %v2595
        %v2597 = vpop.f32.mrf.mxu0
        %v2598 = vadd.f32 %v2498, %v2597
        %v2599 = vand.u32 %v249, 4294901760
        %2600 = vmatmul.f32.gmra.mxu0 %v2599
        %v2601 = vpop.f32.mrf.mxu0
        %v2602 = vadd.f32 %v2506, %v2601
        %v2603 = vand.u32 %v252, 4294901760
        %2604 = vmatmul.f32.gmra.mxu0 %v2603
        %v2605 = vpop.f32.mrf.mxu0
        %v2606 = vadd.f32 %v2514, %v2605
        %v2607 = vand.u32 %v255, 4294901760
        %2608 = vmatmul.f32.gmra.mxu0 %v2607
        %v2609 = vpop.f32.mrf.mxu0
        %v2610 = vadd.f32 %v2522, %v2609
        %2611 = vdwg.mxu0
        %2612 = vmatpush.msra.mxu0 0.0
        %2613 = vmatpush.msra.mxu0 0.0
        %2614 = vmatpush.msra.mxu0 0.0
        %2615 = vmatpush.msra.mxu0 0.0
        %2616 = vmatpush.msra.mxu0 0.0
        %2617 = vmatpush.msra.mxu0 0.0
        %2618 = vmatpush.msra.mxu0 0.0
        %2619 = vmatpush.msra.mxu0 0.0
        %2620 = vmatpush.msra.mxu0 0.0
        %v2621 = vand.u32 %v2426, 4294901760
        %v2622 = vsub.f32 %v2426, %v2621
        %2623 = vmatpush.msra.mxu0 %v2622
        %v2624 = vand.u32 %v2423, 4294901760
        %v2625 = vsub.f32 %v2423, %v2624
        %2626 = vmatpush.msra.mxu0 %v2625
        %v2627 = vand.u32 %v2422, 4294901760
        %v2628 = vsub.f32 %v2422, %v2627
        %2629 = vmatpush.msra.mxu0 %v2628
        %v2630 = vand.u32 %v2421, 4294901760
        %v2631 = vsub.f32 %v2421, %v2630
        %2632 = vmatpush.msra.mxu0 %v2631
        %v2633 = vand.u32 %v2420, 4294901760
        %v2634 = vsub.f32 %v2420, %v2633
        %2635 = vmatpush.msra.mxu0 %v2634
        %v2636 = vand.u32 %v2419, 4294901760
        %v2637 = vsub.f32 %v2419, %v2636
        %2638 = vmatpush.msra.mxu0 %v2637
        %v2639 = vand.u32 %v2418, 4294901760
        %v2640 = vsub.f32 %v2418, %v2639
        %2641 = vmatpush.msra.mxu0 %v2640
        %v2642 = vand.u32 %v231, 4294901760
        %v2643 = vsub.f32 %v231, %v2642
        %2644 = vmatmul.f32.gmra.mxu0 %v2643
        %v2645 = vpop.f32.mrf.mxu0
        %v2646 = vadd.f32 %v2578, %v2645
        %v2647 = vand.u32 %v234, 4294901760
        %v2648 = vsub.f32 %v234, %v2647
        %2649 = vmatmul.f32.gmra.mxu0 %v2648
        %v2650 = vpop.f32.mrf.mxu0
        %v2651 = vadd.f32 %v2582, %v2650
        %v2652 = vand.u32 %v237, 4294901760
        %v2653 = vsub.f32 %v237, %v2652
        %2654 = vmatmul.f32.gmra.mxu0 %v2653
        %v2655 = vpop.f32.mrf.mxu0
        %v2656 = vadd.f32 %v2586, %v2655
        %v2657 = vand.u32 %v240, 4294901760
        %v2658 = vsub.f32 %v240, %v2657
        %2659 = vmatmul.f32.gmra.mxu0 %v2658
        %v2660 = vpop.f32.mrf.mxu0
        %v2661 = vadd.f32 %v2590, %v2660
        %v2662 = vand.u32 %v243, 4294901760
        %v2663 = vsub.f32 %v243, %v2662
        %2664 = vmatmul.f32.gmra.mxu0 %v2663
        %v2665 = vpop.f32.mrf.mxu0
        %v2666 = vadd.f32 %v2594, %v2665
        %v2667 = vand.u32 %v246, 4294901760
        %v2668 = vsub.f32 %v246, %v2667
        %2669 = vmatmul.f32.gmra.mxu0 %v2668
        %v2670 = vpop.f32.mrf.mxu0
        %v2671 = vadd.f32 %v2598, %v2670
        %v2672 = vand.u32 %v249, 4294901760
        %v2673 = vsub.f32 %v249, %v2672
        %2674 = vmatmul.f32.gmra.mxu0 %v2673
        %v2675 = vpop.f32.mrf.mxu0
        %v2676 = vadd.f32 %v2602, %v2675
        %v2677 = vand.u32 %v252, 4294901760
        %v2678 = vsub.f32 %v252, %v2677
        %2679 = vmatmul.f32.gmra.mxu0 %v2678
        %v2680 = vpop.f32.mrf.mxu0
        %v2681 = vadd.f32 %v2606, %v2680
        %v2682 = vand.u32 %v255, 4294901760
        %v2683 = vsub.f32 %v255, %v2682
        %2684 = vmatmul.f32.gmra.mxu0 %v2683
        %v2685 = vpop.f32.mrf.mxu0
        %v2686 = vadd.f32 %v2610, %v2685
        %2687 = vdwg.mxu0
        %2688 = vmatpush.msra.mxu0 0.0
        %2689 = vmatpush.msra.mxu0 0.0
        %2690 = vmatpush.msra.mxu0 0.0
        %2691 = vmatpush.msra.mxu0 0.0
        %2692 = vmatpush.msra.mxu0 0.0
        %2693 = vmatpush.msra.mxu0 0.0
        %2694 = vmatpush.msra.mxu0 0.0
        %2695 = vmatpush.msra.mxu0 0.0
        %2696 = vmatpush.msra.mxu0 0.0
        %v2697 = vand.u32 %v2426, 4294901760
        %2698 = vmatpush.msra.mxu0 %v2697
        %v2699 = vand.u32 %v2423, 4294901760
        %2700 = vmatpush.msra.mxu0 %v2699
        %v2701 = vand.u32 %v2422, 4294901760
        %2702 = vmatpush.msra.mxu0 %v2701
        %v2703 = vand.u32 %v2421, 4294901760
        %2704 = vmatpush.msra.mxu0 %v2703
        %v2705 = vand.u32 %v2420, 4294901760
        %2706 = vmatpush.msra.mxu0 %v2705
        %v2707 = vand.u32 %v2419, 4294901760
        %2708 = vmatpush.msra.mxu0 %v2707
        %v2709 = vand.u32 %v2418, 4294901760
        %2710 = vmatpush.msra.mxu0 %v2709
        %v2711 = vand.u32 %v231, 4294901760
        %v2712 = vsub.f32 %v231, %v2711
        %v2713 = vand.u32 %v2712, 4294901760
        %2714 = vmatmul.f32.gmra.mxu0 %v2713
        %v2715 = vpop.f32.mrf.mxu0
        %v2716 = vadd.f32 %v2646, %v2715
        %v2717 = vand.u32 %v234, 4294901760
        %v2718 = vsub.f32 %v234, %v2717
        %v2719 = vand.u32 %v2718, 4294901760
        %2720 = vmatmul.f32.gmra.mxu0 %v2719
        %v2721 = vpop.f32.mrf.mxu0
        %v2722 = vadd.f32 %v2651, %v2721
        %v2723 = vand.u32 %v237, 4294901760
        %v2724 = vsub.f32 %v237, %v2723
        %v2725 = vand.u32 %v2724, 4294901760
        %2726 = vmatmul.f32.gmra.mxu0 %v2725
        %v2727 = vpop.f32.mrf.mxu0
        %v2728 = vadd.f32 %v2656, %v2727
        %v2729 = vand.u32 %v240, 4294901760
        %v2730 = vsub.f32 %v240, %v2729
        %v2731 = vand.u32 %v2730, 4294901760
        %2732 = vmatmul.f32.gmra.mxu0 %v2731
        %v2733 = vpop.f32.mrf.mxu0
        %v2734 = vadd.f32 %v2661, %v2733
        %v2735 = vand.u32 %v243, 4294901760
        %v2736 = vsub.f32 %v243, %v2735
        %v2737 = vand.u32 %v2736, 4294901760
        %2738 = vmatmul.f32.gmra.mxu0 %v2737
        %v2739 = vpop.f32.mrf.mxu0
        %v2740 = vadd.f32 %v2666, %v2739
        %v2741 = vand.u32 %v246, 4294901760
        %v2742 = vsub.f32 %v246, %v2741
        %v2743 = vand.u32 %v2742, 4294901760
        %2744 = vmatmul.f32.gmra.mxu0 %v2743
        %v2745 = vpop.f32.mrf.mxu0
        %v2746 = vadd.f32 %v2671, %v2745
        %v2747 = vand.u32 %v249, 4294901760
        %v2748 = vsub.f32 %v249, %v2747
        %v2749 = vand.u32 %v2748, 4294901760
        %2750 = vmatmul.f32.gmra.mxu0 %v2749
        %v2751 = vpop.f32.mrf.mxu0
        %v2752 = vadd.f32 %v2676, %v2751
        %v2753 = vand.u32 %v252, 4294901760
        %v2754 = vsub.f32 %v252, %v2753
        %v2755 = vand.u32 %v2754, 4294901760
        %2756 = vmatmul.f32.gmra.mxu0 %v2755
        %v2757 = vpop.f32.mrf.mxu0
        %v2758 = vadd.f32 %v2681, %v2757
        %v2759 = vand.u32 %v255, 4294901760
        %v2760 = vsub.f32 %v255, %v2759
        %v2761 = vand.u32 %v2760, 4294901760
        %2762 = vmatmul.f32.gmra.mxu0 %v2761
        %v2763 = vpop.f32.mrf.mxu0
        %v2764 = vadd.f32 %v2686, %v2763
        %2765 = vdwg.mxu0
        %2766 = vmatpush.msra.mxu0 0.0
        %2767 = vmatpush.msra.mxu0 0.0
        %2768 = vmatpush.msra.mxu0 0.0
        %2769 = vmatpush.msra.mxu0 0.0
        %2770 = vmatpush.msra.mxu0 0.0
        %2771 = vmatpush.msra.mxu0 0.0
        %2772 = vmatpush.msra.mxu0 0.0
        %2773 = vmatpush.msra.mxu0 0.0
        %2774 = vmatpush.msra.mxu0 0.0
        %v2775 = vand.u32 %v2426, 4294901760
        %v2776 = vsub.f32 %v2426, %v2775
        %v2777 = vand.u32 %v2776, 4294901760
        %2778 = vmatpush.msra.mxu0 %v2777
        %v2779 = vand.u32 %v2423, 4294901760
        %v2780 = vsub.f32 %v2423, %v2779
        %v2781 = vand.u32 %v2780, 4294901760
        %2782 = vmatpush.msra.mxu0 %v2781
        %v2783 = vand.u32 %v2422, 4294901760
        %v2784 = vsub.f32 %v2422, %v2783
        %v2785 = vand.u32 %v2784, 4294901760
        %2786 = vmatpush.msra.mxu0 %v2785
        %v2787 = vand.u32 %v2421, 4294901760
        %v2788 = vsub.f32 %v2421, %v2787
        %v2789 = vand.u32 %v2788, 4294901760
        %2790 = vmatpush.msra.mxu0 %v2789
        %v2791 = vand.u32 %v2420, 4294901760
        %v2792 = vsub.f32 %v2420, %v2791
        %v2793 = vand.u32 %v2792, 4294901760
        %2794 = vmatpush.msra.mxu0 %v2793
        %v2795 = vand.u32 %v2419, 4294901760
        %v2796 = vsub.f32 %v2419, %v2795
        %v2797 = vand.u32 %v2796, 4294901760
        %2798 = vmatpush.msra.mxu0 %v2797
        %v2799 = vand.u32 %v2418, 4294901760
        %v2800 = vsub.f32 %v2418, %v2799
        %v2801 = vand.u32 %v2800, 4294901760
        %2802 = vmatpush.msra.mxu0 %v2801
        %v2803 = vand.u32 %v231, 4294901760
        %2804 = vmatmul.f32.gmra.mxu0 %v2803
        %v2805 = vpop.f32.mrf.mxu0
        %v2806 = vadd.f32 %v2716, %v2805
        %v2807 = vand.u32 %v234, 4294901760
        %2808 = vmatmul.f32.gmra.mxu0 %v2807
        %v2809 = vpop.f32.mrf.mxu0
        %v2810 = vadd.f32 %v2722, %v2809
        %v2811 = vand.u32 %v237, 4294901760
        %2812 = vmatmul.f32.gmra.mxu0 %v2811
        %v2813 = vpop.f32.mrf.mxu0
        %v2814 = vadd.f32 %v2728, %v2813
        %v2815 = vand.u32 %v240, 4294901760
        %2816 = vmatmul.f32.gmra.mxu0 %v2815
        %v2817 = vpop.f32.mrf.mxu0
        %v2818 = vadd.f32 %v2734, %v2817
        %v2819 = vand.u32 %v243, 4294901760
        %2820 = vmatmul.f32.gmra.mxu0 %v2819
        %v2821 = vpop.f32.mrf.mxu0
        %v2822 = vadd.f32 %v2740, %v2821
        %v2823 = vand.u32 %v246, 4294901760
        %2824 = vmatmul.f32.gmra.mxu0 %v2823
        %v2825 = vpop.f32.mrf.mxu0
        %v2826 = vadd.f32 %v2746, %v2825
        %v2827 = vand.u32 %v249, 4294901760
        %2828 = vmatmul.f32.gmra.mxu0 %v2827
        %v2829 = vpop.f32.mrf.mxu0
        %v2830 = vadd.f32 %v2752, %v2829
        %v2831 = vand.u32 %v252, 4294901760
        %2832 = vmatmul.f32.gmra.mxu0 %v2831
        %v2833 = vpop.f32.mrf.mxu0
        %v2834 = vadd.f32 %v2758, %v2833
        %v2835 = vand.u32 %v255, 4294901760
        %2836 = vmatmul.f32.gmra.mxu0 %v2835
        %v2837 = vpop.f32.mrf.mxu0
        %v2838 = vadd.f32 %v2764, %v2837
        %2839 = vdwg.mxu0
        %2840 = vmatpush.msra.mxu0 0.0
        %2841 = vmatpush.msra.mxu0 0.0
        %2842 = vmatpush.msra.mxu0 0.0
        %2843 = vmatpush.msra.mxu0 0.0
        %2844 = vmatpush.msra.mxu0 0.0
        %2845 = vmatpush.msra.mxu0 0.0
        %2846 = vmatpush.msra.mxu0 0.0
        %2847 = vmatpush.msra.mxu0 0.0
        %2848 = vmatpush.msra.mxu0 0.0
        %v2849 = vand.u32 %v2426, 4294901760
        %2850 = vmatpush.msra.mxu0 %v2849
        %v2851 = vand.u32 %v2423, 4294901760
        %2852 = vmatpush.msra.mxu0 %v2851
        %v2853 = vand.u32 %v2422, 4294901760
        %2854 = vmatpush.msra.mxu0 %v2853
        %v2855 = vand.u32 %v2421, 4294901760
        %2856 = vmatpush.msra.mxu0 %v2855
        %v2857 = vand.u32 %v2420, 4294901760
        %2858 = vmatpush.msra.mxu0 %v2857
        %v2859 = vand.u32 %v2419, 4294901760
        %2860 = vmatpush.msra.mxu0 %v2859
        %v2861 = vand.u32 %v2418, 4294901760
        %2862 = vmatpush.msra.mxu0 %v2861
        %v2863 = vand.u32 %v231, 4294901760
        %2864 = vmatmul.f32.gmra.mxu0 %v2863
        %v2865 = vpop.f32.mrf.mxu0
        %v2866 = vadd.f32 %v2806, %v2865
        %v2867 = vand.u32 %v234, 4294901760
        %2868 = vmatmul.f32.gmra.mxu0 %v2867
        %v2869 = vpop.f32.mrf.mxu0
        %v2870 = vadd.f32 %v2810, %v2869
        %v2871 = vand.u32 %v237, 4294901760
        %2872 = vmatmul.f32.gmra.mxu0 %v2871
        %v2873 = vpop.f32.mrf.mxu0
        %v2874 = vadd.f32 %v2814, %v2873
        %v2875 = vand.u32 %v240, 4294901760
        %2876 = vmatmul.f32.gmra.mxu0 %v2875
        %v2877 = vpop.f32.mrf.mxu0
        %v2878 = vadd.f32 %v2818, %v2877
        %v2879 = vand.u32 %v243, 4294901760
        %2880 = vmatmul.f32.gmra.mxu0 %v2879
        %v2881 = vpop.f32.mrf.mxu0
        %v2882 = vadd.f32 %v2822, %v2881
        %v2883 = vand.u32 %v246, 4294901760
        %2884 = vmatmul.f32.gmra.mxu0 %v2883
        %v2885 = vpop.f32.mrf.mxu0
        %v2886 = vadd.f32 %v2826, %v2885
        %v2887 = vand.u32 %v249, 4294901760
        %2888 = vmatmul.f32.gmra.mxu0 %v2887
        %v2889 = vpop.f32.mrf.mxu0
        %v2890 = vadd.f32 %v2830, %v2889
        %v2891 = vand.u32 %v252, 4294901760
        %2892 = vmatmul.f32.gmra.mxu0 %v2891
        %v2893 = vpop.f32.mrf.mxu0
        %v2894 = vadd.f32 %v2834, %v2893
        %v2895 = vand.u32 %v255, 4294901760
        %2896 = vmatmul.f32.gmra.mxu0 %v2895
        %v2897 = vpop.f32.mrf.mxu0
        %v2898 = vadd.f32 %v2838, %v2897
        %2899 = vdwg.mxu0
        %2900 = vset.pattern.permute.xlu0 4
        %2901 = vperm.xlu0 %2900, %v734
        %v2902 = vpop.permute.xlu0 %2901
        %2904 = vset.pattern.permute.xlu0 4
        %2905 = vperm.xlu0 %2904, %v735
        %v2906 = vpop.permute.xlu0 %2905
        %2908 = vset.pattern.permute.xlu0 4
        %2909 = vperm.xlu0 %2908, %v736
        %v2910 = vpop.permute.xlu0 %2909
        %2912 = vset.pattern.permute.xlu0 4
        %2913 = vperm.xlu0 %2912, %v737
        %v2914 = vpop.permute.xlu0 %2913
        %2916 = vset.pattern.permute.xlu0 4
        %2917 = vperm.xlu0 %2916, %v738
        %v2918 = vpop.permute.xlu0 %2917
        %2920 = vset.pattern.permute.xlu0 4
        %2921 = vperm.xlu0 %2920, %v739
        %v2922 = vpop.permute.xlu0 %2921
        %2924 = vset.pattern.permute.xlu0 4
        %2925 = vperm.xlu0 %2924, %v740
        %v2926 = vpop.permute.xlu0 %2925
        %2928 = vset.pattern.permute.xlu0 4
        %2929 = vperm.xlu0 %2928, %v741
        %v2930 = vpop.permute.xlu0 %2929
        %2932 = vset.pattern.permute.xlu0 4
        %2933 = vperm.xlu0 %2932, %v742
        %v2934 = vpop.permute.xlu0 %2933
        %v2936 = vmul.f32 %v2866, %v2902
        %v2937 = vmul.f32 %v2870, %v2906
        %v2938 = vmul.f32 %v2874, %v2910
        %v2939 = vmul.f32 %v2878, %v2914
        %v2940 = vmul.f32 %v2882, %v2918
        %v2941 = vmul.f32 %v2886, %v2922
        %v2942 = vmul.f32 %v2890, %v2926
        %v2943 = vmul.f32 %v2894, %v2930
        %v2944 = vmul.f32 %v2898, %v2934
        %v2945 = vadd.f32 %v2408, %v2936
        %v2946 = vadd.f32 %v2409, %v2937
        %v2947 = vadd.f32 %v2410, %v2938
        %v2948 = vadd.f32 %v2411, %v2939
        %v2949 = vadd.f32 %v2412, %v2940
        %v2950 = vadd.f32 %v2413, %v2941
        %v2951 = vadd.f32 %v2414, %v2942
        %v2952 = vadd.f32 %v2415, %v2943
        %v2953 = vadd.f32 %v2416, %v2944
        %s2954 = scalar_lea.vmem %s2, 280
        %v2955 = vld [vmem:[%s2954] sm:$0xff]
        %v2956 = vld [vmem:[%s2954 + $0x8] sm:$0xff]
        %v2957 = vld [vmem:[%s2954 + $0x10] sm:$0xff]
        %v2958 = vld [vmem:[%s2954 + $0x18] sm:$0xff]
        %v2959 = vld [vmem:[%s2954 + $0x20] sm:$0xff]
        %v2960 = vld [vmem:[%s2954 + $0x28] sm:$0xff]
        %v2961 = vld [vmem:[%s2954 + $0x30] sm:$0x1]
        %v2963 = vsel %vm257, %v2961, 0
        %2965 = vmatpush.msra.mxu0 0.0
        %2966 = vmatpush.msra.mxu0 0.0
        %2967 = vmatpush.msra.mxu0 0.0
        %2968 = vmatpush.msra.mxu0 0.0
        %2969 = vmatpush.msra.mxu0 0.0
        %2970 = vmatpush.msra.mxu0 0.0
        %2971 = vmatpush.msra.mxu0 0.0
        %2972 = vmatpush.msra.mxu0 0.0
        %2973 = vmatpush.msra.mxu0 0.0
        %v2974 = vand.u32 %v2963, 4294901760
        %2975 = vmatpush.msra.mxu0 %v2974
        %v2976 = vand.u32 %v2960, 4294901760
        %2977 = vmatpush.msra.mxu0 %v2976
        %v2978 = vand.u32 %v2959, 4294901760
        %2979 = vmatpush.msra.mxu0 %v2978
        %v2980 = vand.u32 %v2958, 4294901760
        %2981 = vmatpush.msra.mxu0 %v2980
        %v2982 = vand.u32 %v2957, 4294901760
        %2983 = vmatpush.msra.mxu0 %v2982
        %v2984 = vand.u32 %v2956, 4294901760
        %2985 = vmatpush.msra.mxu0 %v2984
        %v2986 = vand.u32 %v2955, 4294901760
        %2987 = vmatpush.msra.mxu0 %v2986
        %v2988 = vand.u32 %v231, 4294901760
        %v2989 = vsub.f32 %v231, %v2988
        %v2990 = vand.u32 %v2989, 4294901760
        %v2991 = vsub.f32 %v2989, %v2990
        %v2992 = vand.u32 %v2991, 4294901760
        %2993 = vmatmul.f32.gmra.mxu0 %v2992
        %v2994 = vpop.f32.mrf.mxu0
        %v2995 = vadd.f32 0.0, %v2994
        %v2996 = vand.u32 %v234, 4294901760
        %v2997 = vsub.f32 %v234, %v2996
        %v2998 = vand.u32 %v2997, 4294901760
        %v2999 = vsub.f32 %v2997, %v2998
        %v3000 = vand.u32 %v2999, 4294901760
        %3001 = vmatmul.f32.gmra.mxu0 %v3000
        %v3002 = vpop.f32.mrf.mxu0
        %v3003 = vadd.f32 0.0, %v3002
        %v3004 = vand.u32 %v237, 4294901760
        %v3005 = vsub.f32 %v237, %v3004
        %v3006 = vand.u32 %v3005, 4294901760
        %v3007 = vsub.f32 %v3005, %v3006
        %v3008 = vand.u32 %v3007, 4294901760
        %3009 = vmatmul.f32.gmra.mxu0 %v3008
        %v3010 = vpop.f32.mrf.mxu0
        %v3011 = vadd.f32 0.0, %v3010
        %v3012 = vand.u32 %v240, 4294901760
        %v3013 = vsub.f32 %v240, %v3012
        %v3014 = vand.u32 %v3013, 4294901760
        %v3015 = vsub.f32 %v3013, %v3014
        %v3016 = vand.u32 %v3015, 4294901760
        %3017 = vmatmul.f32.gmra.mxu0 %v3016
        %v3018 = vpop.f32.mrf.mxu0
        %v3019 = vadd.f32 0.0, %v3018
        %v3020 = vand.u32 %v243, 4294901760
        %v3021 = vsub.f32 %v243, %v3020
        %v3022 = vand.u32 %v3021, 4294901760
        %v3023 = vsub.f32 %v3021, %v3022
        %v3024 = vand.u32 %v3023, 4294901760
        %3025 = vmatmul.f32.gmra.mxu0 %v3024
        %v3026 = vpop.f32.mrf.mxu0
        %v3027 = vadd.f32 0.0, %v3026
        %v3028 = vand.u32 %v246, 4294901760
        %v3029 = vsub.f32 %v246, %v3028
        %v3030 = vand.u32 %v3029, 4294901760
        %v3031 = vsub.f32 %v3029, %v3030
        %v3032 = vand.u32 %v3031, 4294901760
        %3033 = vmatmul.f32.gmra.mxu0 %v3032
        %v3034 = vpop.f32.mrf.mxu0
        %v3035 = vadd.f32 0.0, %v3034
        %v3036 = vand.u32 %v249, 4294901760
        %v3037 = vsub.f32 %v249, %v3036
        %v3038 = vand.u32 %v3037, 4294901760
        %v3039 = vsub.f32 %v3037, %v3038
        %v3040 = vand.u32 %v3039, 4294901760
        %3041 = vmatmul.f32.gmra.mxu0 %v3040
        %v3042 = vpop.f32.mrf.mxu0
        %v3043 = vadd.f32 0.0, %v3042
        %v3044 = vand.u32 %v252, 4294901760
        %v3045 = vsub.f32 %v252, %v3044
        %v3046 = vand.u32 %v3045, 4294901760
        %v3047 = vsub.f32 %v3045, %v3046
        %v3048 = vand.u32 %v3047, 4294901760
        %3049 = vmatmul.f32.gmra.mxu0 %v3048
        %v3050 = vpop.f32.mrf.mxu0
        %v3051 = vadd.f32 0.0, %v3050
        %v3052 = vand.u32 %v255, 4294901760
        %v3053 = vsub.f32 %v255, %v3052
        %v3054 = vand.u32 %v3053, 4294901760
        %v3055 = vsub.f32 %v3053, %v3054
        %v3056 = vand.u32 %v3055, 4294901760
        %3057 = vmatmul.f32.gmra.mxu0 %v3056
        %v3058 = vpop.f32.mrf.mxu0
        %v3059 = vadd.f32 0.0, %v3058
        %3060 = vdwg.mxu0
        %3061 = vmatpush.msra.mxu0 0.0
        %3062 = vmatpush.msra.mxu0 0.0
        %3063 = vmatpush.msra.mxu0 0.0
        %3064 = vmatpush.msra.mxu0 0.0
        %3065 = vmatpush.msra.mxu0 0.0
        %3066 = vmatpush.msra.mxu0 0.0
        %3067 = vmatpush.msra.mxu0 0.0
        %3068 = vmatpush.msra.mxu0 0.0
        %3069 = vmatpush.msra.mxu0 0.0
        %v3070 = vand.u32 %v2963, 4294901760
        %v3071 = vsub.f32 %v2963, %v3070
        %v3072 = vand.u32 %v3071, 4294901760
        %v3073 = vsub.f32 %v3071, %v3072
        %v3074 = vand.u32 %v3073, 4294901760
        %3075 = vmatpush.msra.mxu0 %v3074
        %v3076 = vand.u32 %v2960, 4294901760
        %v3077 = vsub.f32 %v2960, %v3076
        %v3078 = vand.u32 %v3077, 4294901760
        %v3079 = vsub.f32 %v3077, %v3078
        %v3080 = vand.u32 %v3079, 4294901760
        %3081 = vmatpush.msra.mxu0 %v3080
        %v3082 = vand.u32 %v2959, 4294901760
        %v3083 = vsub.f32 %v2959, %v3082
        %v3084 = vand.u32 %v3083, 4294901760
        %v3085 = vsub.f32 %v3083, %v3084
        %v3086 = vand.u32 %v3085, 4294901760
        %3087 = vmatpush.msra.mxu0 %v3086
        %v3088 = vand.u32 %v2958, 4294901760
        %v3089 = vsub.f32 %v2958, %v3088
        %v3090 = vand.u32 %v3089, 4294901760
        %v3091 = vsub.f32 %v3089, %v3090
        %v3092 = vand.u32 %v3091, 4294901760
        %3093 = vmatpush.msra.mxu0 %v3092
        %v3094 = vand.u32 %v2957, 4294901760
        %v3095 = vsub.f32 %v2957, %v3094
        %v3096 = vand.u32 %v3095, 4294901760
        %v3097 = vsub.f32 %v3095, %v3096
        %v3098 = vand.u32 %v3097, 4294901760
        %3099 = vmatpush.msra.mxu0 %v3098
        %v3100 = vand.u32 %v2956, 4294901760
        %v3101 = vsub.f32 %v2956, %v3100
        %v3102 = vand.u32 %v3101, 4294901760
        %v3103 = vsub.f32 %v3101, %v3102
        %v3104 = vand.u32 %v3103, 4294901760
        %3105 = vmatpush.msra.mxu0 %v3104
        %v3106 = vand.u32 %v2955, 4294901760
        %v3107 = vsub.f32 %v2955, %v3106
        %v3108 = vand.u32 %v3107, 4294901760
        %v3109 = vsub.f32 %v3107, %v3108
        %v3110 = vand.u32 %v3109, 4294901760
        %3111 = vmatpush.msra.mxu0 %v3110
        %v3112 = vand.u32 %v231, 4294901760
        %3113 = vmatmul.f32.gmra.mxu0 %v3112
        %v3114 = vpop.f32.mrf.mxu0
        %v3115 = vadd.f32 %v2995, %v3114
        %v3116 = vand.u32 %v234, 4294901760
        %3117 = vmatmul.f32.gmra.mxu0 %v3116
        %v3118 = vpop.f32.mrf.mxu0
        %v3119 = vadd.f32 %v3003, %v3118
        %v3120 = vand.u32 %v237, 4294901760
        %3121 = vmatmul.f32.gmra.mxu0 %v3120
        %v3122 = vpop.f32.mrf.mxu0
        %v3123 = vadd.f32 %v3011, %v3122
        %v3124 = vand.u32 %v240, 4294901760
        %3125 = vmatmul.f32.gmra.mxu0 %v3124
        %v3126 = vpop.f32.mrf.mxu0
        %v3127 = vadd.f32 %v3019, %v3126
        %v3128 = vand.u32 %v243, 4294901760
        %3129 = vmatmul.f32.gmra.mxu0 %v3128
        %v3130 = vpop.f32.mrf.mxu0
        %v3131 = vadd.f32 %v3027, %v3130
        %v3132 = vand.u32 %v246, 4294901760
        %3133 = vmatmul.f32.gmra.mxu0 %v3132
        %v3134 = vpop.f32.mrf.mxu0
        %v3135 = vadd.f32 %v3035, %v3134
        %v3136 = vand.u32 %v249, 4294901760
        %3137 = vmatmul.f32.gmra.mxu0 %v3136
        %v3138 = vpop.f32.mrf.mxu0
        %v3139 = vadd.f32 %v3043, %v3138
        %v3140 = vand.u32 %v252, 4294901760
        %3141 = vmatmul.f32.gmra.mxu0 %v3140
        %v3142 = vpop.f32.mrf.mxu0
        %v3143 = vadd.f32 %v3051, %v3142
        %v3144 = vand.u32 %v255, 4294901760
        %3145 = vmatmul.f32.gmra.mxu0 %v3144
        %v3146 = vpop.f32.mrf.mxu0
        %v3147 = vadd.f32 %v3059, %v3146
        %3148 = vdwg.mxu0
        %3149 = vmatpush.msra.mxu0 0.0
        %3150 = vmatpush.msra.mxu0 0.0
        %3151 = vmatpush.msra.mxu0 0.0
        %3152 = vmatpush.msra.mxu0 0.0
        %3153 = vmatpush.msra.mxu0 0.0
        %3154 = vmatpush.msra.mxu0 0.0
        %3155 = vmatpush.msra.mxu0 0.0
        %3156 = vmatpush.msra.mxu0 0.0
        %3157 = vmatpush.msra.mxu0 0.0
        %v3158 = vand.u32 %v2963, 4294901760
        %v3159 = vsub.f32 %v2963, %v3158
        %3160 = vmatpush.msra.mxu0 %v3159
        %v3161 = vand.u32 %v2960, 4294901760
        %v3162 = vsub.f32 %v2960, %v3161
        %3163 = vmatpush.msra.mxu0 %v3162
        %v3164 = vand.u32 %v2959, 4294901760
        %v3165 = vsub.f32 %v2959, %v3164
        %3166 = vmatpush.msra.mxu0 %v3165
        %v3167 = vand.u32 %v2958, 4294901760
        %v3168 = vsub.f32 %v2958, %v3167
        %3169 = vmatpush.msra.mxu0 %v3168
        %v3170 = vand.u32 %v2957, 4294901760
        %v3171 = vsub.f32 %v2957, %v3170
        %3172 = vmatpush.msra.mxu0 %v3171
        %v3173 = vand.u32 %v2956, 4294901760
        %v3174 = vsub.f32 %v2956, %v3173
        %3175 = vmatpush.msra.mxu0 %v3174
        %v3176 = vand.u32 %v2955, 4294901760
        %v3177 = vsub.f32 %v2955, %v3176
        %3178 = vmatpush.msra.mxu0 %v3177
        %v3179 = vand.u32 %v231, 4294901760
        %v3180 = vsub.f32 %v231, %v3179
        %3181 = vmatmul.f32.gmra.mxu0 %v3180
        %v3182 = vpop.f32.mrf.mxu0
        %v3183 = vadd.f32 %v3115, %v3182
        %v3184 = vand.u32 %v234, 4294901760
        %v3185 = vsub.f32 %v234, %v3184
        %3186 = vmatmul.f32.gmra.mxu0 %v3185
        %v3187 = vpop.f32.mrf.mxu0
        %v3188 = vadd.f32 %v3119, %v3187
        %v3189 = vand.u32 %v237, 4294901760
        %v3190 = vsub.f32 %v237, %v3189
        %3191 = vmatmul.f32.gmra.mxu0 %v3190
        %v3192 = vpop.f32.mrf.mxu0
        %v3193 = vadd.f32 %v3123, %v3192
        %v3194 = vand.u32 %v240, 4294901760
        %v3195 = vsub.f32 %v240, %v3194
        %3196 = vmatmul.f32.gmra.mxu0 %v3195
        %v3197 = vpop.f32.mrf.mxu0
        %v3198 = vadd.f32 %v3127, %v3197
        %v3199 = vand.u32 %v243, 4294901760
        %v3200 = vsub.f32 %v243, %v3199
        %3201 = vmatmul.f32.gmra.mxu0 %v3200
        %v3202 = vpop.f32.mrf.mxu0
        %v3203 = vadd.f32 %v3131, %v3202
        %v3204 = vand.u32 %v246, 4294901760
        %v3205 = vsub.f32 %v246, %v3204
        %3206 = vmatmul.f32.gmra.mxu0 %v3205
        %v3207 = vpop.f32.mrf.mxu0
        %v3208 = vadd.f32 %v3135, %v3207
        %v3209 = vand.u32 %v249, 4294901760
        %v3210 = vsub.f32 %v249, %v3209
        %3211 = vmatmul.f32.gmra.mxu0 %v3210
        %v3212 = vpop.f32.mrf.mxu0
        %v3213 = vadd.f32 %v3139, %v3212
        %v3214 = vand.u32 %v252, 4294901760
        %v3215 = vsub.f32 %v252, %v3214
        %3216 = vmatmul.f32.gmra.mxu0 %v3215
        %v3217 = vpop.f32.mrf.mxu0
        %v3218 = vadd.f32 %v3143, %v3217
        %v3219 = vand.u32 %v255, 4294901760
        %v3220 = vsub.f32 %v255, %v3219
        %3221 = vmatmul.f32.gmra.mxu0 %v3220
        %v3222 = vpop.f32.mrf.mxu0
        %v3223 = vadd.f32 %v3147, %v3222
        %3224 = vdwg.mxu0
        %3225 = vmatpush.msra.mxu0 0.0
        %3226 = vmatpush.msra.mxu0 0.0
        %3227 = vmatpush.msra.mxu0 0.0
        %3228 = vmatpush.msra.mxu0 0.0
        %3229 = vmatpush.msra.mxu0 0.0
        %3230 = vmatpush.msra.mxu0 0.0
        %3231 = vmatpush.msra.mxu0 0.0
        %3232 = vmatpush.msra.mxu0 0.0
        %3233 = vmatpush.msra.mxu0 0.0
        %v3234 = vand.u32 %v2963, 4294901760
        %3235 = vmatpush.msra.mxu0 %v3234
        %v3236 = vand.u32 %v2960, 4294901760
        %3237 = vmatpush.msra.mxu0 %v3236
        %v3238 = vand.u32 %v2959, 4294901760
        %3239 = vmatpush.msra.mxu0 %v3238
        %v3240 = vand.u32 %v2958, 4294901760
        %3241 = vmatpush.msra.mxu0 %v3240
        %v3242 = vand.u32 %v2957, 4294901760
        %3243 = vmatpush.msra.mxu0 %v3242
        %v3244 = vand.u32 %v2956, 4294901760
        %3245 = vmatpush.msra.mxu0 %v3244
        %v3246 = vand.u32 %v2955, 4294901760
        %3247 = vmatpush.msra.mxu0 %v3246
        %v3248 = vand.u32 %v231, 4294901760
        %v3249 = vsub.f32 %v231, %v3248
        %v3250 = vand.u32 %v3249, 4294901760
        %3251 = vmatmul.f32.gmra.mxu0 %v3250
        %v3252 = vpop.f32.mrf.mxu0
        %v3253 = vadd.f32 %v3183, %v3252
        %v3254 = vand.u32 %v234, 4294901760
        %v3255 = vsub.f32 %v234, %v3254
        %v3256 = vand.u32 %v3255, 4294901760
        %3257 = vmatmul.f32.gmra.mxu0 %v3256
        %v3258 = vpop.f32.mrf.mxu0
        %v3259 = vadd.f32 %v3188, %v3258
        %v3260 = vand.u32 %v237, 4294901760
        %v3261 = vsub.f32 %v237, %v3260
        %v3262 = vand.u32 %v3261, 4294901760
        %3263 = vmatmul.f32.gmra.mxu0 %v3262
        %v3264 = vpop.f32.mrf.mxu0
        %v3265 = vadd.f32 %v3193, %v3264
        %v3266 = vand.u32 %v240, 4294901760
        %v3267 = vsub.f32 %v240, %v3266
        %v3268 = vand.u32 %v3267, 4294901760
        %3269 = vmatmul.f32.gmra.mxu0 %v3268
        %v3270 = vpop.f32.mrf.mxu0
        %v3271 = vadd.f32 %v3198, %v3270
        %v3272 = vand.u32 %v243, 4294901760
        %v3273 = vsub.f32 %v243, %v3272
        %v3274 = vand.u32 %v3273, 4294901760
        %3275 = vmatmul.f32.gmra.mxu0 %v3274
        %v3276 = vpop.f32.mrf.mxu0
        %v3277 = vadd.f32 %v3203, %v3276
        %v3278 = vand.u32 %v246, 4294901760
        %v3279 = vsub.f32 %v246, %v3278
        %v3280 = vand.u32 %v3279, 4294901760
        %3281 = vmatmul.f32.gmra.mxu0 %v3280
        %v3282 = vpop.f32.mrf.mxu0
        %v3283 = vadd.f32 %v3208, %v3282
        %v3284 = vand.u32 %v249, 4294901760
        %v3285 = vsub.f32 %v249, %v3284
        %v3286 = vand.u32 %v3285, 4294901760
        %3287 = vmatmul.f32.gmra.mxu0 %v3286
        %v3288 = vpop.f32.mrf.mxu0
        %v3289 = vadd.f32 %v3213, %v3288
        %v3290 = vand.u32 %v252, 4294901760
        %v3291 = vsub.f32 %v252, %v3290
        %v3292 = vand.u32 %v3291, 4294901760
        %3293 = vmatmul.f32.gmra.mxu0 %v3292
        %v3294 = vpop.f32.mrf.mxu0
        %v3295 = vadd.f32 %v3218, %v3294
        %v3296 = vand.u32 %v255, 4294901760
        %v3297 = vsub.f32 %v255, %v3296
        %v3298 = vand.u32 %v3297, 4294901760
        %3299 = vmatmul.f32.gmra.mxu0 %v3298
        %v3300 = vpop.f32.mrf.mxu0
        %v3301 = vadd.f32 %v3223, %v3300
        %3302 = vdwg.mxu0
        %3303 = vmatpush.msra.mxu0 0.0
        %3304 = vmatpush.msra.mxu0 0.0
        %3305 = vmatpush.msra.mxu0 0.0
        %3306 = vmatpush.msra.mxu0 0.0
        %3307 = vmatpush.msra.mxu0 0.0
        %3308 = vmatpush.msra.mxu0 0.0
        %3309 = vmatpush.msra.mxu0 0.0
        %3310 = vmatpush.msra.mxu0 0.0
        %3311 = vmatpush.msra.mxu0 0.0
        %v3312 = vand.u32 %v2963, 4294901760
        %v3313 = vsub.f32 %v2963, %v3312
        %v3314 = vand.u32 %v3313, 4294901760
        %3315 = vmatpush.msra.mxu0 %v3314
        %v3316 = vand.u32 %v2960, 4294901760
        %v3317 = vsub.f32 %v2960, %v3316
        %v3318 = vand.u32 %v3317, 4294901760
        %3319 = vmatpush.msra.mxu0 %v3318
        %v3320 = vand.u32 %v2959, 4294901760
        %v3321 = vsub.f32 %v2959, %v3320
        %v3322 = vand.u32 %v3321, 4294901760
        %3323 = vmatpush.msra.mxu0 %v3322
        %v3324 = vand.u32 %v2958, 4294901760
        %v3325 = vsub.f32 %v2958, %v3324
        %v3326 = vand.u32 %v3325, 4294901760
        %3327 = vmatpush.msra.mxu0 %v3326
        %v3328 = vand.u32 %v2957, 4294901760
        %v3329 = vsub.f32 %v2957, %v3328
        %v3330 = vand.u32 %v3329, 4294901760
        %3331 = vmatpush.msra.mxu0 %v3330
        %v3332 = vand.u32 %v2956, 4294901760
        %v3333 = vsub.f32 %v2956, %v3332
        %v3334 = vand.u32 %v3333, 4294901760
        %3335 = vmatpush.msra.mxu0 %v3334
        %v3336 = vand.u32 %v2955, 4294901760
        %v3337 = vsub.f32 %v2955, %v3336
        %v3338 = vand.u32 %v3337, 4294901760
        %3339 = vmatpush.msra.mxu0 %v3338
        %v3340 = vand.u32 %v231, 4294901760
        %3341 = vmatmul.f32.gmra.mxu0 %v3340
        %v3342 = vpop.f32.mrf.mxu0
        %v3343 = vadd.f32 %v3253, %v3342
        %v3344 = vand.u32 %v234, 4294901760
        %3345 = vmatmul.f32.gmra.mxu0 %v3344
        %v3346 = vpop.f32.mrf.mxu0
        %v3347 = vadd.f32 %v3259, %v3346
        %v3348 = vand.u32 %v237, 4294901760
        %3349 = vmatmul.f32.gmra.mxu0 %v3348
        %v3350 = vpop.f32.mrf.mxu0
        %v3351 = vadd.f32 %v3265, %v3350
        %v3352 = vand.u32 %v240, 4294901760
        %3353 = vmatmul.f32.gmra.mxu0 %v3352
        %v3354 = vpop.f32.mrf.mxu0
        %v3355 = vadd.f32 %v3271, %v3354
        %v3356 = vand.u32 %v243, 4294901760
        %3357 = vmatmul.f32.gmra.mxu0 %v3356
        %v3358 = vpop.f32.mrf.mxu0
        %v3359 = vadd.f32 %v3277, %v3358
        %v3360 = vand.u32 %v246, 4294901760
        %3361 = vmatmul.f32.gmra.mxu0 %v3360
        %v3362 = vpop.f32.mrf.mxu0
        %v3363 = vadd.f32 %v3283, %v3362
        %v3364 = vand.u32 %v249, 4294901760
        %3365 = vmatmul.f32.gmra.mxu0 %v3364
        %v3366 = vpop.f32.mrf.mxu0
        %v3367 = vadd.f32 %v3289, %v3366
        %v3368 = vand.u32 %v252, 4294901760
        %3369 = vmatmul.f32.gmra.mxu0 %v3368
        %v3370 = vpop.f32.mrf.mxu0
        %v3371 = vadd.f32 %v3295, %v3370
        %v3372 = vand.u32 %v255, 4294901760
        %3373 = vmatmul.f32.gmra.mxu0 %v3372
        %v3374 = vpop.f32.mrf.mxu0
        %v3375 = vadd.f32 %v3301, %v3374
        %3376 = vdwg.mxu0
        %3377 = vmatpush.msra.mxu0 0.0
        %3378 = vmatpush.msra.mxu0 0.0
        %3379 = vmatpush.msra.mxu0 0.0
        %3380 = vmatpush.msra.mxu0 0.0
        %3381 = vmatpush.msra.mxu0 0.0
        %3382 = vmatpush.msra.mxu0 0.0
        %3383 = vmatpush.msra.mxu0 0.0
        %3384 = vmatpush.msra.mxu0 0.0
        %3385 = vmatpush.msra.mxu0 0.0
        %v3386 = vand.u32 %v2963, 4294901760
        %3387 = vmatpush.msra.mxu0 %v3386
        %v3388 = vand.u32 %v2960, 4294901760
        %3389 = vmatpush.msra.mxu0 %v3388
        %v3390 = vand.u32 %v2959, 4294901760
        %3391 = vmatpush.msra.mxu0 %v3390
        %v3392 = vand.u32 %v2958, 4294901760
        %3393 = vmatpush.msra.mxu0 %v3392
        %v3394 = vand.u32 %v2957, 4294901760
        %3395 = vmatpush.msra.mxu0 %v3394
        %v3396 = vand.u32 %v2956, 4294901760
        %3397 = vmatpush.msra.mxu0 %v3396
        %v3398 = vand.u32 %v2955, 4294901760
        %3399 = vmatpush.msra.mxu0 %v3398
        %v3400 = vand.u32 %v231, 4294901760
        %3401 = vmatmul.f32.gmra.mxu0 %v3400
        %v3402 = vpop.f32.mrf.mxu0
        %v3403 = vadd.f32 %v3343, %v3402
        %v3404 = vand.u32 %v234, 4294901760
        %3405 = vmatmul.f32.gmra.mxu0 %v3404
        %v3406 = vpop.f32.mrf.mxu0
        %v3407 = vadd.f32 %v3347, %v3406
        %v3408 = vand.u32 %v237, 4294901760
        %3409 = vmatmul.f32.gmra.mxu0 %v3408
        %v3410 = vpop.f32.mrf.mxu0
        %v3411 = vadd.f32 %v3351, %v3410
        %v3412 = vand.u32 %v240, 4294901760
        %3413 = vmatmul.f32.gmra.mxu0 %v3412
        %v3414 = vpop.f32.mrf.mxu0
        %v3415 = vadd.f32 %v3355, %v3414
        %v3416 = vand.u32 %v243, 4294901760
        %3417 = vmatmul.f32.gmra.mxu0 %v3416
        %v3418 = vpop.f32.mrf.mxu0
        %v3419 = vadd.f32 %v3359, %v3418
        %v3420 = vand.u32 %v246, 4294901760
        %3421 = vmatmul.f32.gmra.mxu0 %v3420
        %v3422 = vpop.f32.mrf.mxu0
        %v3423 = vadd.f32 %v3363, %v3422
        %v3424 = vand.u32 %v249, 4294901760
        %3425 = vmatmul.f32.gmra.mxu0 %v3424
        %v3426 = vpop.f32.mrf.mxu0
        %v3427 = vadd.f32 %v3367, %v3426
        %v3428 = vand.u32 %v252, 4294901760
        %3429 = vmatmul.f32.gmra.mxu0 %v3428
        %v3430 = vpop.f32.mrf.mxu0
        %v3431 = vadd.f32 %v3371, %v3430
        %v3432 = vand.u32 %v255, 4294901760
        %3433 = vmatmul.f32.gmra.mxu0 %v3432
        %v3434 = vpop.f32.mrf.mxu0
        %v3435 = vadd.f32 %v3375, %v3434
        %3436 = vdwg.mxu0
        %3437 = vset.pattern.permute.xlu0 5
        %3438 = vperm.xlu0 %3437, %v734
        %v3439 = vpop.permute.xlu0 %3438
        %3441 = vset.pattern.permute.xlu0 5
        %3442 = vperm.xlu0 %3441, %v735
        %v3443 = vpop.permute.xlu0 %3442
        %3445 = vset.pattern.permute.xlu0 5
        %3446 = vperm.xlu0 %3445, %v736
        %v3447 = vpop.permute.xlu0 %3446
        %3449 = vset.pattern.permute.xlu0 5
        %3450 = vperm.xlu0 %3449, %v737
        %v3451 = vpop.permute.xlu0 %3450
        %3453 = vset.pattern.permute.xlu0 5
        %3454 = vperm.xlu0 %3453, %v738
        %v3455 = vpop.permute.xlu0 %3454
        %3457 = vset.pattern.permute.xlu0 5
        %3458 = vperm.xlu0 %3457, %v739
        %v3459 = vpop.permute.xlu0 %3458
        %3461 = vset.pattern.permute.xlu0 5
        %3462 = vperm.xlu0 %3461, %v740
        %v3463 = vpop.permute.xlu0 %3462
        %3465 = vset.pattern.permute.xlu0 5
        %3466 = vperm.xlu0 %3465, %v741
        %v3467 = vpop.permute.xlu0 %3466
        %3469 = vset.pattern.permute.xlu0 5
        %3470 = vperm.xlu0 %3469, %v742
        %v3471 = vpop.permute.xlu0 %3470
        %v3473 = vmul.f32 %v3403, %v3439
        %v3474 = vmul.f32 %v3407, %v3443
        %v3475 = vmul.f32 %v3411, %v3447
        %v3476 = vmul.f32 %v3415, %v3451
        %v3477 = vmul.f32 %v3419, %v3455
        %v3478 = vmul.f32 %v3423, %v3459
        %v3479 = vmul.f32 %v3427, %v3463
        %v3480 = vmul.f32 %v3431, %v3467
        %v3481 = vmul.f32 %v3435, %v3471
        %v3482 = vadd.f32 %v2945, %v3473
        %v3483 = vadd.f32 %v2946, %v3474
        %v3484 = vadd.f32 %v2947, %v3475
        %v3485 = vadd.f32 %v2948, %v3476
        %v3486 = vadd.f32 %v2949, %v3477
        %v3487 = vadd.f32 %v2950, %v3478
        %v3488 = vadd.f32 %v2951, %v3479
        %v3489 = vadd.f32 %v2952, %v3480
        %v3490 = vadd.f32 %v2953, %v3481
        %s3491 = scalar_lea.vmem %s2, 336
        %v3492 = vld [vmem:[%s3491] sm:$0xff]
        %v3493 = vld [vmem:[%s3491 + $0x8] sm:$0xff]
        %v3494 = vld [vmem:[%s3491 + $0x10] sm:$0xff]
        %v3495 = vld [vmem:[%s3491 + $0x18] sm:$0xff]
        %v3496 = vld [vmem:[%s3491 + $0x20] sm:$0xff]
        %v3497 = vld [vmem:[%s3491 + $0x28] sm:$0xff]
        %v3498 = vld [vmem:[%s3491 + $0x30] sm:$0x1]
        %v3500 = vsel %vm257, %v3498, 0
        %3502 = vmatpush.msra.mxu0 0.0
        %3503 = vmatpush.msra.mxu0 0.0
        %3504 = vmatpush.msra.mxu0 0.0
        %3505 = vmatpush.msra.mxu0 0.0
        %3506 = vmatpush.msra.mxu0 0.0
        %3507 = vmatpush.msra.mxu0 0.0
        %3508 = vmatpush.msra.mxu0 0.0
        %3509 = vmatpush.msra.mxu0 0.0
        %3510 = vmatpush.msra.mxu0 0.0
        %v3511 = vand.u32 %v3500, 4294901760
        %3512 = vmatpush.msra.mxu0 %v3511
        %v3513 = vand.u32 %v3497, 4294901760
        %3514 = vmatpush.msra.mxu0 %v3513
        %v3515 = vand.u32 %v3496, 4294901760
        %3516 = vmatpush.msra.mxu0 %v3515
        %v3517 = vand.u32 %v3495, 4294901760
        %3518 = vmatpush.msra.mxu0 %v3517
        %v3519 = vand.u32 %v3494, 4294901760
        %3520 = vmatpush.msra.mxu0 %v3519
        %v3521 = vand.u32 %v3493, 4294901760
        %3522 = vmatpush.msra.mxu0 %v3521
        %v3523 = vand.u32 %v3492, 4294901760
        %3524 = vmatpush.msra.mxu0 %v3523
        %v3525 = vand.u32 %v231, 4294901760
        %v3526 = vsub.f32 %v231, %v3525
        %v3527 = vand.u32 %v3526, 4294901760
        %v3528 = vsub.f32 %v3526, %v3527
        %v3529 = vand.u32 %v3528, 4294901760
        %3530 = vmatmul.f32.gmra.mxu0 %v3529
        %v3531 = vpop.f32.mrf.mxu0
        %v3532 = vadd.f32 0.0, %v3531
        %v3533 = vand.u32 %v234, 4294901760
        %v3534 = vsub.f32 %v234, %v3533
        %v3535 = vand.u32 %v3534, 4294901760
        %v3536 = vsub.f32 %v3534, %v3535
        %v3537 = vand.u32 %v3536, 4294901760
        %3538 = vmatmul.f32.gmra.mxu0 %v3537
        %v3539 = vpop.f32.mrf.mxu0
        %v3540 = vadd.f32 0.0, %v3539
        %v3541 = vand.u32 %v237, 4294901760
        %v3542 = vsub.f32 %v237, %v3541
        %v3543 = vand.u32 %v3542, 4294901760
        %v3544 = vsub.f32 %v3542, %v3543
        %v3545 = vand.u32 %v3544, 4294901760
        %3546 = vmatmul.f32.gmra.mxu0 %v3545
        %v3547 = vpop.f32.mrf.mxu0
        %v3548 = vadd.f32 0.0, %v3547
        %v3549 = vand.u32 %v240, 4294901760
        %v3550 = vsub.f32 %v240, %v3549
        %v3551 = vand.u32 %v3550, 4294901760
        %v3552 = vsub.f32 %v3550, %v3551
        %v3553 = vand.u32 %v3552, 4294901760
        %3554 = vmatmul.f32.gmra.mxu0 %v3553
        %v3555 = vpop.f32.mrf.mxu0
        %v3556 = vadd.f32 0.0, %v3555
        %v3557 = vand.u32 %v243, 4294901760
        %v3558 = vsub.f32 %v243, %v3557
        %v3559 = vand.u32 %v3558, 4294901760
        %v3560 = vsub.f32 %v3558, %v3559
        %v3561 = vand.u32 %v3560, 4294901760
        %3562 = vmatmul.f32.gmra.mxu0 %v3561
        %v3563 = vpop.f32.mrf.mxu0
        %v3564 = vadd.f32 0.0, %v3563
        %v3565 = vand.u32 %v246, 4294901760
        %v3566 = vsub.f32 %v246, %v3565
        %v3567 = vand.u32 %v3566, 4294901760
        %v3568 = vsub.f32 %v3566, %v3567
        %v3569 = vand.u32 %v3568, 4294901760
        %3570 = vmatmul.f32.gmra.mxu0 %v3569
        %v3571 = vpop.f32.mrf.mxu0
        %v3572 = vadd.f32 0.0, %v3571
        %v3573 = vand.u32 %v249, 4294901760
        %v3574 = vsub.f32 %v249, %v3573
        %v3575 = vand.u32 %v3574, 4294901760
        %v3576 = vsub.f32 %v3574, %v3575
        %v3577 = vand.u32 %v3576, 4294901760
        %3578 = vmatmul.f32.gmra.mxu0 %v3577
        %v3579 = vpop.f32.mrf.mxu0
        %v3580 = vadd.f32 0.0, %v3579
        %v3581 = vand.u32 %v252, 4294901760
        %v3582 = vsub.f32 %v252, %v3581
        %v3583 = vand.u32 %v3582, 4294901760
        %v3584 = vsub.f32 %v3582, %v3583
        %v3585 = vand.u32 %v3584, 4294901760
        %3586 = vmatmul.f32.gmra.mxu0 %v3585
        %v3587 = vpop.f32.mrf.mxu0
        %v3588 = vadd.f32 0.0, %v3587
        %v3589 = vand.u32 %v255, 4294901760
        %v3590 = vsub.f32 %v255, %v3589
        %v3591 = vand.u32 %v3590, 4294901760
        %v3592 = vsub.f32 %v3590, %v3591
        %v3593 = vand.u32 %v3592, 4294901760
        %3594 = vmatmul.f32.gmra.mxu0 %v3593
        %v3595 = vpop.f32.mrf.mxu0
        %v3596 = vadd.f32 0.0, %v3595
        %3597 = vdwg.mxu0
        %3598 = vmatpush.msra.mxu0 0.0
        %3599 = vmatpush.msra.mxu0 0.0
        %3600 = vmatpush.msra.mxu0 0.0
        %3601 = vmatpush.msra.mxu0 0.0
        %3602 = vmatpush.msra.mxu0 0.0
        %3603 = vmatpush.msra.mxu0 0.0
        %3604 = vmatpush.msra.mxu0 0.0
        %3605 = vmatpush.msra.mxu0 0.0
        %3606 = vmatpush.msra.mxu0 0.0
        %v3607 = vand.u32 %v3500, 4294901760
        %v3608 = vsub.f32 %v3500, %v3607
        %v3609 = vand.u32 %v3608, 4294901760
        %v3610 = vsub.f32 %v3608, %v3609
        %v3611 = vand.u32 %v3610, 4294901760
        %3612 = vmatpush.msra.mxu0 %v3611
        %v3613 = vand.u32 %v3497, 4294901760
        %v3614 = vsub.f32 %v3497, %v3613
        %v3615 = vand.u32 %v3614, 4294901760
        %v3616 = vsub.f32 %v3614, %v3615
        %v3617 = vand.u32 %v3616, 4294901760
        %3618 = vmatpush.msra.mxu0 %v3617
        %v3619 = vand.u32 %v3496, 4294901760
        %v3620 = vsub.f32 %v3496, %v3619
        %v3621 = vand.u32 %v3620, 4294901760
        %v3622 = vsub.f32 %v3620, %v3621
        %v3623 = vand.u32 %v3622, 4294901760
        %3624 = vmatpush.msra.mxu0 %v3623
        %v3625 = vand.u32 %v3495, 4294901760
        %v3626 = vsub.f32 %v3495, %v3625
        %v3627 = vand.u32 %v3626, 4294901760
        %v3628 = vsub.f32 %v3626, %v3627
        %v3629 = vand.u32 %v3628, 4294901760
        %3630 = vmatpush.msra.mxu0 %v3629
        %v3631 = vand.u32 %v3494, 4294901760
        %v3632 = vsub.f32 %v3494, %v3631
        %v3633 = vand.u32 %v3632, 4294901760
        %v3634 = vsub.f32 %v3632, %v3633
        %v3635 = vand.u32 %v3634, 4294901760
        %3636 = vmatpush.msra.mxu0 %v3635
        %v3637 = vand.u32 %v3493, 4294901760
        %v3638 = vsub.f32 %v3493, %v3637
        %v3639 = vand.u32 %v3638, 4294901760
        %v3640 = vsub.f32 %v3638, %v3639
        %v3641 = vand.u32 %v3640, 4294901760
        %3642 = vmatpush.msra.mxu0 %v3641
        %v3643 = vand.u32 %v3492, 4294901760
        %v3644 = vsub.f32 %v3492, %v3643
        %v3645 = vand.u32 %v3644, 4294901760
        %v3646 = vsub.f32 %v3644, %v3645
        %v3647 = vand.u32 %v3646, 4294901760
        %3648 = vmatpush.msra.mxu0 %v3647
        %v3649 = vand.u32 %v231, 4294901760
        %3650 = vmatmul.f32.gmra.mxu0 %v3649
        %v3651 = vpop.f32.mrf.mxu0
        %v3652 = vadd.f32 %v3532, %v3651
        %v3653 = vand.u32 %v234, 4294901760
        %3654 = vmatmul.f32.gmra.mxu0 %v3653
        %v3655 = vpop.f32.mrf.mxu0
        %v3656 = vadd.f32 %v3540, %v3655
        %v3657 = vand.u32 %v237, 4294901760
        %3658 = vmatmul.f32.gmra.mxu0 %v3657
        %v3659 = vpop.f32.mrf.mxu0
        %v3660 = vadd.f32 %v3548, %v3659
        %v3661 = vand.u32 %v240, 4294901760
        %3662 = vmatmul.f32.gmra.mxu0 %v3661
        %v3663 = vpop.f32.mrf.mxu0
        %v3664 = vadd.f32 %v3556, %v3663
        %v3665 = vand.u32 %v243, 4294901760
        %3666 = vmatmul.f32.gmra.mxu0 %v3665
        %v3667 = vpop.f32.mrf.mxu0
        %v3668 = vadd.f32 %v3564, %v3667
        %v3669 = vand.u32 %v246, 4294901760
        %3670 = vmatmul.f32.gmra.mxu0 %v3669
        %v3671 = vpop.f32.mrf.mxu0
        %v3672 = vadd.f32 %v3572, %v3671
        %v3673 = vand.u32 %v249, 4294901760
        %3674 = vmatmul.f32.gmra.mxu0 %v3673
        %v3675 = vpop.f32.mrf.mxu0
        %v3676 = vadd.f32 %v3580, %v3675
        %v3677 = vand.u32 %v252, 4294901760
        %3678 = vmatmul.f32.gmra.mxu0 %v3677
        %v3679 = vpop.f32.mrf.mxu0
        %v3680 = vadd.f32 %v3588, %v3679
        %v3681 = vand.u32 %v255, 4294901760
        %3682 = vmatmul.f32.gmra.mxu0 %v3681
        %v3683 = vpop.f32.mrf.mxu0
        %v3684 = vadd.f32 %v3596, %v3683
        %3685 = vdwg.mxu0
        %3686 = vmatpush.msra.mxu0 0.0
        %3687 = vmatpush.msra.mxu0 0.0
        %3688 = vmatpush.msra.mxu0 0.0
        %3689 = vmatpush.msra.mxu0 0.0
        %3690 = vmatpush.msra.mxu0 0.0
        %3691 = vmatpush.msra.mxu0 0.0
        %3692 = vmatpush.msra.mxu0 0.0
        %3693 = vmatpush.msra.mxu0 0.0
        %3694 = vmatpush.msra.mxu0 0.0
        %v3695 = vand.u32 %v3500, 4294901760
        %v3696 = vsub.f32 %v3500, %v3695
        %3697 = vmatpush.msra.mxu0 %v3696
        %v3698 = vand.u32 %v3497, 4294901760
        %v3699 = vsub.f32 %v3497, %v3698
        %3700 = vmatpush.msra.mxu0 %v3699
        %v3701 = vand.u32 %v3496, 4294901760
        %v3702 = vsub.f32 %v3496, %v3701
        %3703 = vmatpush.msra.mxu0 %v3702
        %v3704 = vand.u32 %v3495, 4294901760
        %v3705 = vsub.f32 %v3495, %v3704
        %3706 = vmatpush.msra.mxu0 %v3705
        %v3707 = vand.u32 %v3494, 4294901760
        %v3708 = vsub.f32 %v3494, %v3707
        %3709 = vmatpush.msra.mxu0 %v3708
        %v3710 = vand.u32 %v3493, 4294901760
        %v3711 = vsub.f32 %v3493, %v3710
        %3712 = vmatpush.msra.mxu0 %v3711
        %v3713 = vand.u32 %v3492, 4294901760
        %v3714 = vsub.f32 %v3492, %v3713
        %3715 = vmatpush.msra.mxu0 %v3714
        %v3716 = vand.u32 %v231, 4294901760
        %v3717 = vsub.f32 %v231, %v3716
        %3718 = vmatmul.f32.gmra.mxu0 %v3717
        %v3719 = vpop.f32.mrf.mxu0
        %v3720 = vadd.f32 %v3652, %v3719
        %v3721 = vand.u32 %v234, 4294901760
        %v3722 = vsub.f32 %v234, %v3721
        %3723 = vmatmul.f32.gmra.mxu0 %v3722
        %v3724 = vpop.f32.mrf.mxu0
        %v3725 = vadd.f32 %v3656, %v3724
        %v3726 = vand.u32 %v237, 4294901760
        %v3727 = vsub.f32 %v237, %v3726
        %3728 = vmatmul.f32.gmra.mxu0 %v3727
        %v3729 = vpop.f32.mrf.mxu0
        %v3730 = vadd.f32 %v3660, %v3729
        %v3731 = vand.u32 %v240, 4294901760
        %v3732 = vsub.f32 %v240, %v3731
        %3733 = vmatmul.f32.gmra.mxu0 %v3732
        %v3734 = vpop.f32.mrf.mxu0
        %v3735 = vadd.f32 %v3664, %v3734
        %v3736 = vand.u32 %v243, 4294901760
        %v3737 = vsub.f32 %v243, %v3736
        %3738 = vmatmul.f32.gmra.mxu0 %v3737
        %v3739 = vpop.f32.mrf.mxu0
        %v3740 = vadd.f32 %v3668, %v3739
        %v3741 = vand.u32 %v246, 4294901760
        %v3742 = vsub.f32 %v246, %v3741
        %3743 = vmatmul.f32.gmra.mxu0 %v3742
        %v3744 = vpop.f32.mrf.mxu0
        %v3745 = vadd.f32 %v3672, %v3744
        %v3746 = vand.u32 %v249, 4294901760
        %v3747 = vsub.f32 %v249, %v3746
        %3748 = vmatmul.f32.gmra.mxu0 %v3747
        %v3749 = vpop.f32.mrf.mxu0
        %v3750 = vadd.f32 %v3676, %v3749
        %v3751 = vand.u32 %v252, 4294901760
        %v3752 = vsub.f32 %v252, %v3751
        %3753 = vmatmul.f32.gmra.mxu0 %v3752
        %v3754 = vpop.f32.mrf.mxu0
        %v3755 = vadd.f32 %v3680, %v3754
        %v3756 = vand.u32 %v255, 4294901760
        %v3757 = vsub.f32 %v255, %v3756
        %3758 = vmatmul.f32.gmra.mxu0 %v3757
        %v3759 = vpop.f32.mrf.mxu0
        %v3760 = vadd.f32 %v3684, %v3759
        %3761 = vdwg.mxu0
        %3762 = vmatpush.msra.mxu0 0.0
        %3763 = vmatpush.msra.mxu0 0.0
        %3764 = vmatpush.msra.mxu0 0.0
        %3765 = vmatpush.msra.mxu0 0.0
        %3766 = vmatpush.msra.mxu0 0.0
        %3767 = vmatpush.msra.mxu0 0.0
        %3768 = vmatpush.msra.mxu0 0.0
        %3769 = vmatpush.msra.mxu0 0.0
        %3770 = vmatpush.msra.mxu0 0.0
        %v3771 = vand.u32 %v3500, 4294901760
        %3772 = vmatpush.msra.mxu0 %v3771
        %v3773 = vand.u32 %v3497, 4294901760
        %3774 = vmatpush.msra.mxu0 %v3773
        %v3775 = vand.u32 %v3496, 4294901760
        %3776 = vmatpush.msra.mxu0 %v3775
        %v3777 = vand.u32 %v3495, 4294901760
        %3778 = vmatpush.msra.mxu0 %v3777
        %v3779 = vand.u32 %v3494, 4294901760
        %3780 = vmatpush.msra.mxu0 %v3779
        %v3781 = vand.u32 %v3493, 4294901760
        %3782 = vmatpush.msra.mxu0 %v3781
        %v3783 = vand.u32 %v3492, 4294901760
        %3784 = vmatpush.msra.mxu0 %v3783
        %v3785 = vand.u32 %v231, 4294901760
        %v3786 = vsub.f32 %v231, %v3785
        %v3787 = vand.u32 %v3786, 4294901760
        %3788 = vmatmul.f32.gmra.mxu0 %v3787
        %v3789 = vpop.f32.mrf.mxu0
        %v3790 = vadd.f32 %v3720, %v3789
        %v3791 = vand.u32 %v234, 4294901760
        %v3792 = vsub.f32 %v234, %v3791
        %v3793 = vand.u32 %v3792, 4294901760
        %3794 = vmatmul.f32.gmra.mxu0 %v3793
        %v3795 = vpop.f32.mrf.mxu0
        %v3796 = vadd.f32 %v3725, %v3795
        %v3797 = vand.u32 %v237, 4294901760
        %v3798 = vsub.f32 %v237, %v3797
        %v3799 = vand.u32 %v3798, 4294901760
        %3800 = vmatmul.f32.gmra.mxu0 %v3799
        %v3801 = vpop.f32.mrf.mxu0
        %v3802 = vadd.f32 %v3730, %v3801
        %v3803 = vand.u32 %v240, 4294901760
        %v3804 = vsub.f32 %v240, %v3803
        %v3805 = vand.u32 %v3804, 4294901760
        %3806 = vmatmul.f32.gmra.mxu0 %v3805
        %v3807 = vpop.f32.mrf.mxu0
        %v3808 = vadd.f32 %v3735, %v3807
        %v3809 = vand.u32 %v243, 4294901760
        %v3810 = vsub.f32 %v243, %v3809
        %v3811 = vand.u32 %v3810, 4294901760
        %3812 = vmatmul.f32.gmra.mxu0 %v3811
        %v3813 = vpop.f32.mrf.mxu0
        %v3814 = vadd.f32 %v3740, %v3813
        %v3815 = vand.u32 %v246, 4294901760
        %v3816 = vsub.f32 %v246, %v3815
        %v3817 = vand.u32 %v3816, 4294901760
        %3818 = vmatmul.f32.gmra.mxu0 %v3817
        %v3819 = vpop.f32.mrf.mxu0
        %v3820 = vadd.f32 %v3745, %v3819
        %v3821 = vand.u32 %v249, 4294901760
        %v3822 = vsub.f32 %v249, %v3821
        %v3823 = vand.u32 %v3822, 4294901760
        %3824 = vmatmul.f32.gmra.mxu0 %v3823
        %v3825 = vpop.f32.mrf.mxu0
        %v3826 = vadd.f32 %v3750, %v3825
        %v3827 = vand.u32 %v252, 4294901760
        %v3828 = vsub.f32 %v252, %v3827
        %v3829 = vand.u32 %v3828, 4294901760
        %3830 = vmatmul.f32.gmra.mxu0 %v3829
        %v3831 = vpop.f32.mrf.mxu0
        %v3832 = vadd.f32 %v3755, %v3831
        %v3833 = vand.u32 %v255, 4294901760
        %v3834 = vsub.f32 %v255, %v3833
        %v3835 = vand.u32 %v3834, 4294901760
        %3836 = vmatmul.f32.gmra.mxu0 %v3835
        %v3837 = vpop.f32.mrf.mxu0
        %v3838 = vadd.f32 %v3760, %v3837
        %3839 = vdwg.mxu0
        %3840 = vmatpush.msra.mxu0 0.0
        %3841 = vmatpush.msra.mxu0 0.0
        %3842 = vmatpush.msra.mxu0 0.0
        %3843 = vmatpush.msra.mxu0 0.0
        %3844 = vmatpush.msra.mxu0 0.0
        %3845 = vmatpush.msra.mxu0 0.0
        %3846 = vmatpush.msra.mxu0 0.0
        %3847 = vmatpush.msra.mxu0 0.0
        %3848 = vmatpush.msra.mxu0 0.0
        %v3849 = vand.u32 %v3500, 4294901760
        %v3850 = vsub.f32 %v3500, %v3849
        %v3851 = vand.u32 %v3850, 4294901760
        %3852 = vmatpush.msra.mxu0 %v3851
        %v3853 = vand.u32 %v3497, 4294901760
        %v3854 = vsub.f32 %v3497, %v3853
        %v3855 = vand.u32 %v3854, 4294901760
        %3856 = vmatpush.msra.mxu0 %v3855
        %v3857 = vand.u32 %v3496, 4294901760
        %v3858 = vsub.f32 %v3496, %v3857
        %v3859 = vand.u32 %v3858, 4294901760
        %3860 = vmatpush.msra.mxu0 %v3859
        %v3861 = vand.u32 %v3495, 4294901760
        %v3862 = vsub.f32 %v3495, %v3861
        %v3863 = vand.u32 %v3862, 4294901760
        %3864 = vmatpush.msra.mxu0 %v3863
        %v3865 = vand.u32 %v3494, 4294901760
        %v3866 = vsub.f32 %v3494, %v3865
        %v3867 = vand.u32 %v3866, 4294901760
        %3868 = vmatpush.msra.mxu0 %v3867
        %v3869 = vand.u32 %v3493, 4294901760
        %v3870 = vsub.f32 %v3493, %v3869
        %v3871 = vand.u32 %v3870, 4294901760
        %3872 = vmatpush.msra.mxu0 %v3871
        %v3873 = vand.u32 %v3492, 4294901760
        %v3874 = vsub.f32 %v3492, %v3873
        %v3875 = vand.u32 %v3874, 4294901760
        %3876 = vmatpush.msra.mxu0 %v3875
        %v3877 = vand.u32 %v231, 4294901760
        %3878 = vmatmul.f32.gmra.mxu0 %v3877
        %v3879 = vpop.f32.mrf.mxu0
        %v3880 = vadd.f32 %v3790, %v3879
        %v3881 = vand.u32 %v234, 4294901760
        %3882 = vmatmul.f32.gmra.mxu0 %v3881
        %v3883 = vpop.f32.mrf.mxu0
        %v3884 = vadd.f32 %v3796, %v3883
        %v3885 = vand.u32 %v237, 4294901760
        %3886 = vmatmul.f32.gmra.mxu0 %v3885
        %v3887 = vpop.f32.mrf.mxu0
        %v3888 = vadd.f32 %v3802, %v3887
        %v3889 = vand.u32 %v240, 4294901760
        %3890 = vmatmul.f32.gmra.mxu0 %v3889
        %v3891 = vpop.f32.mrf.mxu0
        %v3892 = vadd.f32 %v3808, %v3891
        %v3893 = vand.u32 %v243, 4294901760
        %3894 = vmatmul.f32.gmra.mxu0 %v3893
        %v3895 = vpop.f32.mrf.mxu0
        %v3896 = vadd.f32 %v3814, %v3895
        %v3897 = vand.u32 %v246, 4294901760
        %3898 = vmatmul.f32.gmra.mxu0 %v3897
        %v3899 = vpop.f32.mrf.mxu0
        %v3900 = vadd.f32 %v3820, %v3899
        %v3901 = vand.u32 %v249, 4294901760
        %3902 = vmatmul.f32.gmra.mxu0 %v3901
        %v3903 = vpop.f32.mrf.mxu0
        %v3904 = vadd.f32 %v3826, %v3903
        %v3905 = vand.u32 %v252, 4294901760
        %3906 = vmatmul.f32.gmra.mxu0 %v3905
        %v3907 = vpop.f32.mrf.mxu0
        %v3908 = vadd.f32 %v3832, %v3907
        %v3909 = vand.u32 %v255, 4294901760
        %3910 = vmatmul.f32.gmra.mxu0 %v3909
        %v3911 = vpop.f32.mrf.mxu0
        %v3912 = vadd.f32 %v3838, %v3911
        %3913 = vdwg.mxu0
        %3914 = vmatpush.msra.mxu0 0.0
        %3915 = vmatpush.msra.mxu0 0.0
        %3916 = vmatpush.msra.mxu0 0.0
        %3917 = vmatpush.msra.mxu0 0.0
        %3918 = vmatpush.msra.mxu0 0.0
        %3919 = vmatpush.msra.mxu0 0.0
        %3920 = vmatpush.msra.mxu0 0.0
        %3921 = vmatpush.msra.mxu0 0.0
        %3922 = vmatpush.msra.mxu0 0.0
        %v3923 = vand.u32 %v3500, 4294901760
        %3924 = vmatpush.msra.mxu0 %v3923
        %v3925 = vand.u32 %v3497, 4294901760
        %3926 = vmatpush.msra.mxu0 %v3925
        %v3927 = vand.u32 %v3496, 4294901760
        %3928 = vmatpush.msra.mxu0 %v3927
        %v3929 = vand.u32 %v3495, 4294901760
        %3930 = vmatpush.msra.mxu0 %v3929
        %v3931 = vand.u32 %v3494, 4294901760
        %3932 = vmatpush.msra.mxu0 %v3931
        %v3933 = vand.u32 %v3493, 4294901760
        %3934 = vmatpush.msra.mxu0 %v3933
        %v3935 = vand.u32 %v3492, 4294901760
        %3936 = vmatpush.msra.mxu0 %v3935
        %v3937 = vand.u32 %v231, 4294901760
        %3938 = vmatmul.f32.gmra.mxu0 %v3937
        %v3939 = vpop.f32.mrf.mxu0
        %v3940 = vadd.f32 %v3880, %v3939
        %v3941 = vand.u32 %v234, 4294901760
        %3942 = vmatmul.f32.gmra.mxu0 %v3941
        %v3943 = vpop.f32.mrf.mxu0
        %v3944 = vadd.f32 %v3884, %v3943
        %v3945 = vand.u32 %v237, 4294901760
        %3946 = vmatmul.f32.gmra.mxu0 %v3945
        %v3947 = vpop.f32.mrf.mxu0
        %v3948 = vadd.f32 %v3888, %v3947
        %v3949 = vand.u32 %v240, 4294901760
        %3950 = vmatmul.f32.gmra.mxu0 %v3949
        %v3951 = vpop.f32.mrf.mxu0
        %v3952 = vadd.f32 %v3892, %v3951
        %v3953 = vand.u32 %v243, 4294901760
        %3954 = vmatmul.f32.gmra.mxu0 %v3953
        %v3955 = vpop.f32.mrf.mxu0
        %v3956 = vadd.f32 %v3896, %v3955
        %v3957 = vand.u32 %v246, 4294901760
        %3958 = vmatmul.f32.gmra.mxu0 %v3957
        %v3959 = vpop.f32.mrf.mxu0
        %v3960 = vadd.f32 %v3900, %v3959
        %v3961 = vand.u32 %v249, 4294901760
        %3962 = vmatmul.f32.gmra.mxu0 %v3961
        %v3963 = vpop.f32.mrf.mxu0
        %v3964 = vadd.f32 %v3904, %v3963
        %v3965 = vand.u32 %v252, 4294901760
        %3966 = vmatmul.f32.gmra.mxu0 %v3965
        %v3967 = vpop.f32.mrf.mxu0
        %v3968 = vadd.f32 %v3908, %v3967
        %v3969 = vand.u32 %v255, 4294901760
        %3970 = vmatmul.f32.gmra.mxu0 %v3969
        %v3971 = vpop.f32.mrf.mxu0
        %v3972 = vadd.f32 %v3912, %v3971
        %3973 = vdwg.mxu0
        %3974 = vset.pattern.permute.xlu0 6
        %3975 = vperm.xlu0 %3974, %v734
        %v3976 = vpop.permute.xlu0 %3975
        %3978 = vset.pattern.permute.xlu0 6
        %3979 = vperm.xlu0 %3978, %v735
        %v3980 = vpop.permute.xlu0 %3979
        %3982 = vset.pattern.permute.xlu0 6
        %3983 = vperm.xlu0 %3982, %v736
        %v3984 = vpop.permute.xlu0 %3983
        %3986 = vset.pattern.permute.xlu0 6
        %3987 = vperm.xlu0 %3986, %v737
        %v3988 = vpop.permute.xlu0 %3987
        %3990 = vset.pattern.permute.xlu0 6
        %3991 = vperm.xlu0 %3990, %v738
        %v3992 = vpop.permute.xlu0 %3991
        %3994 = vset.pattern.permute.xlu0 6
        %3995 = vperm.xlu0 %3994, %v739
        %v3996 = vpop.permute.xlu0 %3995
        %3998 = vset.pattern.permute.xlu0 6
        %3999 = vperm.xlu0 %3998, %v740
        %v4000 = vpop.permute.xlu0 %3999
        %4002 = vset.pattern.permute.xlu0 6
        %4003 = vperm.xlu0 %4002, %v741
        %v4004 = vpop.permute.xlu0 %4003
        %4006 = vset.pattern.permute.xlu0 6
        %4007 = vperm.xlu0 %4006, %v742
        %v4008 = vpop.permute.xlu0 %4007
        %v4010 = vmul.f32 %v3940, %v3976
        %v4011 = vmul.f32 %v3944, %v3980
        %v4012 = vmul.f32 %v3948, %v3984
        %v4013 = vmul.f32 %v3952, %v3988
        %v4014 = vmul.f32 %v3956, %v3992
        %v4015 = vmul.f32 %v3960, %v3996
        %v4016 = vmul.f32 %v3964, %v4000
        %v4017 = vmul.f32 %v3968, %v4004
        %v4018 = vmul.f32 %v3972, %v4008
        %v4019 = vadd.f32 %v3482, %v4010
        %v4020 = vadd.f32 %v3483, %v4011
        %v4021 = vadd.f32 %v3484, %v4012
        %v4022 = vadd.f32 %v3485, %v4013
        %v4023 = vadd.f32 %v3486, %v4014
        %v4024 = vadd.f32 %v3487, %v4015
        %v4025 = vadd.f32 %v3488, %v4016
        %v4026 = vadd.f32 %v3489, %v4017
        %v4027 = vadd.f32 %v3490, %v4018
        %s4028 = scalar_lea.vmem %s2, 392
        %v4029 = vld [vmem:[%s4028] sm:$0xff]
        %v4030 = vld [vmem:[%s4028 + $0x8] sm:$0xff]
        %v4031 = vld [vmem:[%s4028 + $0x10] sm:$0xff]
        %v4032 = vld [vmem:[%s4028 + $0x18] sm:$0xff]
        %v4033 = vld [vmem:[%s4028 + $0x20] sm:$0xff]
        %v4034 = vld [vmem:[%s4028 + $0x28] sm:$0xff]
        %v4035 = vld [vmem:[%s4028 + $0x30] sm:$0x1]
        %v4037 = vsel %vm257, %v4035, 0
        %4039 = vmatpush.msra.mxu0 0.0
        %4040 = vmatpush.msra.mxu0 0.0
        %4041 = vmatpush.msra.mxu0 0.0
        %4042 = vmatpush.msra.mxu0 0.0
        %4043 = vmatpush.msra.mxu0 0.0
        %4044 = vmatpush.msra.mxu0 0.0
        %4045 = vmatpush.msra.mxu0 0.0
        %4046 = vmatpush.msra.mxu0 0.0
        %4047 = vmatpush.msra.mxu0 0.0
        %v4048 = vand.u32 %v4037, 4294901760
        %4049 = vmatpush.msra.mxu0 %v4048
        %v4050 = vand.u32 %v4034, 4294901760
        %4051 = vmatpush.msra.mxu0 %v4050
        %v4052 = vand.u32 %v4033, 4294901760
        %4053 = vmatpush.msra.mxu0 %v4052
        %v4054 = vand.u32 %v4032, 4294901760
        %4055 = vmatpush.msra.mxu0 %v4054
        %v4056 = vand.u32 %v4031, 4294901760
        %4057 = vmatpush.msra.mxu0 %v4056
        %v4058 = vand.u32 %v4030, 4294901760
        %4059 = vmatpush.msra.mxu0 %v4058
        %v4060 = vand.u32 %v4029, 4294901760
        %4061 = vmatpush.msra.mxu0 %v4060
        %v4062 = vand.u32 %v231, 4294901760
        %v4063 = vsub.f32 %v231, %v4062
        %v4064 = vand.u32 %v4063, 4294901760
        %v4065 = vsub.f32 %v4063, %v4064
        %v4066 = vand.u32 %v4065, 4294901760
        %4067 = vmatmul.f32.gmra.mxu0 %v4066
        %v4068 = vpop.f32.mrf.mxu0
        %v4069 = vadd.f32 0.0, %v4068
        %v4070 = vand.u32 %v234, 4294901760
        %v4071 = vsub.f32 %v234, %v4070
        %v4072 = vand.u32 %v4071, 4294901760
        %v4073 = vsub.f32 %v4071, %v4072
        %v4074 = vand.u32 %v4073, 4294901760
        %4075 = vmatmul.f32.gmra.mxu0 %v4074
        %v4076 = vpop.f32.mrf.mxu0
        %v4077 = vadd.f32 0.0, %v4076
        %v4078 = vand.u32 %v237, 4294901760
        %v4079 = vsub.f32 %v237, %v4078
        %v4080 = vand.u32 %v4079, 4294901760
        %v4081 = vsub.f32 %v4079, %v4080
        %v4082 = vand.u32 %v4081, 4294901760
        %4083 = vmatmul.f32.gmra.mxu0 %v4082
        %v4084 = vpop.f32.mrf.mxu0
        %v4085 = vadd.f32 0.0, %v4084
        %v4086 = vand.u32 %v240, 4294901760
        %v4087 = vsub.f32 %v240, %v4086
        %v4088 = vand.u32 %v4087, 4294901760
        %v4089 = vsub.f32 %v4087, %v4088
        %v4090 = vand.u32 %v4089, 4294901760
        %4091 = vmatmul.f32.gmra.mxu0 %v4090
        %v4092 = vpop.f32.mrf.mxu0
        %v4093 = vadd.f32 0.0, %v4092
        %v4094 = vand.u32 %v243, 4294901760
        %v4095 = vsub.f32 %v243, %v4094
        %v4096 = vand.u32 %v4095, 4294901760
        %v4097 = vsub.f32 %v4095, %v4096
        %v4098 = vand.u32 %v4097, 4294901760
        %4099 = vmatmul.f32.gmra.mxu0 %v4098
        %v4100 = vpop.f32.mrf.mxu0
        %v4101 = vadd.f32 0.0, %v4100
        %v4102 = vand.u32 %v246, 4294901760
        %v4103 = vsub.f32 %v246, %v4102
        %v4104 = vand.u32 %v4103, 4294901760
        %v4105 = vsub.f32 %v4103, %v4104
        %v4106 = vand.u32 %v4105, 4294901760
        %4107 = vmatmul.f32.gmra.mxu0 %v4106
        %v4108 = vpop.f32.mrf.mxu0
        %v4109 = vadd.f32 0.0, %v4108
        %v4110 = vand.u32 %v249, 4294901760
        %v4111 = vsub.f32 %v249, %v4110
        %v4112 = vand.u32 %v4111, 4294901760
        %v4113 = vsub.f32 %v4111, %v4112
        %v4114 = vand.u32 %v4113, 4294901760
        %4115 = vmatmul.f32.gmra.mxu0 %v4114
        %v4116 = vpop.f32.mrf.mxu0
        %v4117 = vadd.f32 0.0, %v4116
        %v4118 = vand.u32 %v252, 4294901760
        %v4119 = vsub.f32 %v252, %v4118
        %v4120 = vand.u32 %v4119, 4294901760
        %v4121 = vsub.f32 %v4119, %v4120
        %v4122 = vand.u32 %v4121, 4294901760
        %4123 = vmatmul.f32.gmra.mxu0 %v4122
        %v4124 = vpop.f32.mrf.mxu0
        %v4125 = vadd.f32 0.0, %v4124
        %v4126 = vand.u32 %v255, 4294901760
        %v4127 = vsub.f32 %v255, %v4126
        %v4128 = vand.u32 %v4127, 4294901760
        %v4129 = vsub.f32 %v4127, %v4128
        %v4130 = vand.u32 %v4129, 4294901760
        %4131 = vmatmul.f32.gmra.mxu0 %v4130
        %v4132 = vpop.f32.mrf.mxu0
        %v4133 = vadd.f32 0.0, %v4132
        %4134 = vdwg.mxu0
        %4135 = vmatpush.msra.mxu0 0.0
        %4136 = vmatpush.msra.mxu0 0.0
        %4137 = vmatpush.msra.mxu0 0.0
        %4138 = vmatpush.msra.mxu0 0.0
        %4139 = vmatpush.msra.mxu0 0.0
        %4140 = vmatpush.msra.mxu0 0.0
        %4141 = vmatpush.msra.mxu0 0.0
        %4142 = vmatpush.msra.mxu0 0.0
        %4143 = vmatpush.msra.mxu0 0.0
        %v4144 = vand.u32 %v4037, 4294901760
        %v4145 = vsub.f32 %v4037, %v4144
        %v4146 = vand.u32 %v4145, 4294901760
        %v4147 = vsub.f32 %v4145, %v4146
        %v4148 = vand.u32 %v4147, 4294901760
        %4149 = vmatpush.msra.mxu0 %v4148
        %v4150 = vand.u32 %v4034, 4294901760
        %v4151 = vsub.f32 %v4034, %v4150
        %v4152 = vand.u32 %v4151, 4294901760
        %v4153 = vsub.f32 %v4151, %v4152
        %v4154 = vand.u32 %v4153, 4294901760
        %4155 = vmatpush.msra.mxu0 %v4154
        %v4156 = vand.u32 %v4033, 4294901760
        %v4157 = vsub.f32 %v4033, %v4156
        %v4158 = vand.u32 %v4157, 4294901760
        %v4159 = vsub.f32 %v4157, %v4158
        %v4160 = vand.u32 %v4159, 4294901760
        %4161 = vmatpush.msra.mxu0 %v4160
        %v4162 = vand.u32 %v4032, 4294901760
        %v4163 = vsub.f32 %v4032, %v4162
        %v4164 = vand.u32 %v4163, 4294901760
        %v4165 = vsub.f32 %v4163, %v4164
        %v4166 = vand.u32 %v4165, 4294901760
        %4167 = vmatpush.msra.mxu0 %v4166
        %v4168 = vand.u32 %v4031, 4294901760
        %v4169 = vsub.f32 %v4031, %v4168
        %v4170 = vand.u32 %v4169, 4294901760
        %v4171 = vsub.f32 %v4169, %v4170
        %v4172 = vand.u32 %v4171, 4294901760
        %4173 = vmatpush.msra.mxu0 %v4172
        %v4174 = vand.u32 %v4030, 4294901760
        %v4175 = vsub.f32 %v4030, %v4174
        %v4176 = vand.u32 %v4175, 4294901760
        %v4177 = vsub.f32 %v4175, %v4176
        %v4178 = vand.u32 %v4177, 4294901760
        %4179 = vmatpush.msra.mxu0 %v4178
        %v4180 = vand.u32 %v4029, 4294901760
        %v4181 = vsub.f32 %v4029, %v4180
        %v4182 = vand.u32 %v4181, 4294901760
        %v4183 = vsub.f32 %v4181, %v4182
        %v4184 = vand.u32 %v4183, 4294901760
        %4185 = vmatpush.msra.mxu0 %v4184
        %v4186 = vand.u32 %v231, 4294901760
        %4187 = vmatmul.f32.gmra.mxu0 %v4186
        %v4188 = vpop.f32.mrf.mxu0
        %v4189 = vadd.f32 %v4069, %v4188
        %v4190 = vand.u32 %v234, 4294901760
        %4191 = vmatmul.f32.gmra.mxu0 %v4190
        %v4192 = vpop.f32.mrf.mxu0
        %v4193 = vadd.f32 %v4077, %v4192
        %v4194 = vand.u32 %v237, 4294901760
        %4195 = vmatmul.f32.gmra.mxu0 %v4194
        %v4196 = vpop.f32.mrf.mxu0
        %v4197 = vadd.f32 %v4085, %v4196
        %v4198 = vand.u32 %v240, 4294901760
        %4199 = vmatmul.f32.gmra.mxu0 %v4198
        %v4200 = vpop.f32.mrf.mxu0
        %v4201 = vadd.f32 %v4093, %v4200
        %v4202 = vand.u32 %v243, 4294901760
        %4203 = vmatmul.f32.gmra.mxu0 %v4202
        %v4204 = vpop.f32.mrf.mxu0
        %v4205 = vadd.f32 %v4101, %v4204
        %v4206 = vand.u32 %v246, 4294901760
        %4207 = vmatmul.f32.gmra.mxu0 %v4206
        %v4208 = vpop.f32.mrf.mxu0
        %v4209 = vadd.f32 %v4109, %v4208
        %v4210 = vand.u32 %v249, 4294901760
        %4211 = vmatmul.f32.gmra.mxu0 %v4210
        %v4212 = vpop.f32.mrf.mxu0
        %v4213 = vadd.f32 %v4117, %v4212
        %v4214 = vand.u32 %v252, 4294901760
        %4215 = vmatmul.f32.gmra.mxu0 %v4214
        %v4216 = vpop.f32.mrf.mxu0
        %v4217 = vadd.f32 %v4125, %v4216
        %v4218 = vand.u32 %v255, 4294901760
        %4219 = vmatmul.f32.gmra.mxu0 %v4218
        %v4220 = vpop.f32.mrf.mxu0
        %v4221 = vadd.f32 %v4133, %v4220
        %4222 = vdwg.mxu0
        %4223 = vmatpush.msra.mxu0 0.0
        %4224 = vmatpush.msra.mxu0 0.0
        %4225 = vmatpush.msra.mxu0 0.0
        %4226 = vmatpush.msra.mxu0 0.0
        %4227 = vmatpush.msra.mxu0 0.0
        %4228 = vmatpush.msra.mxu0 0.0
        %4229 = vmatpush.msra.mxu0 0.0
        %4230 = vmatpush.msra.mxu0 0.0
        %4231 = vmatpush.msra.mxu0 0.0
        %v4232 = vand.u32 %v4037, 4294901760
        %v4233 = vsub.f32 %v4037, %v4232
        %4234 = vmatpush.msra.mxu0 %v4233
        %v4235 = vand.u32 %v4034, 4294901760
        %v4236 = vsub.f32 %v4034, %v4235
        %4237 = vmatpush.msra.mxu0 %v4236
        %v4238 = vand.u32 %v4033, 4294901760
        %v4239 = vsub.f32 %v4033, %v4238
        %4240 = vmatpush.msra.mxu0 %v4239
        %v4241 = vand.u32 %v4032, 4294901760
        %v4242 = vsub.f32 %v4032, %v4241
        %4243 = vmatpush.msra.mxu0 %v4242
        %v4244 = vand.u32 %v4031, 4294901760
        %v4245 = vsub.f32 %v4031, %v4244
        %4246 = vmatpush.msra.mxu0 %v4245
        %v4247 = vand.u32 %v4030, 4294901760
        %v4248 = vsub.f32 %v4030, %v4247
        %4249 = vmatpush.msra.mxu0 %v4248
        %v4250 = vand.u32 %v4029, 4294901760
        %v4251 = vsub.f32 %v4029, %v4250
        %4252 = vmatpush.msra.mxu0 %v4251
        %v4253 = vand.u32 %v231, 4294901760
        %v4254 = vsub.f32 %v231, %v4253
        %4255 = vmatmul.f32.gmra.mxu0 %v4254
        %v4256 = vpop.f32.mrf.mxu0
        %v4257 = vadd.f32 %v4189, %v4256
        %v4258 = vand.u32 %v234, 4294901760
        %v4259 = vsub.f32 %v234, %v4258
        %4260 = vmatmul.f32.gmra.mxu0 %v4259
        %v4261 = vpop.f32.mrf.mxu0
        %v4262 = vadd.f32 %v4193, %v4261
        %v4263 = vand.u32 %v237, 4294901760
        %v4264 = vsub.f32 %v237, %v4263
        %4265 = vmatmul.f32.gmra.mxu0 %v4264
        %v4266 = vpop.f32.mrf.mxu0
        %v4267 = vadd.f32 %v4197, %v4266
        %v4268 = vand.u32 %v240, 4294901760
        %v4269 = vsub.f32 %v240, %v4268
        %4270 = vmatmul.f32.gmra.mxu0 %v4269
        %v4271 = vpop.f32.mrf.mxu0
        %v4272 = vadd.f32 %v4201, %v4271
        %v4273 = vand.u32 %v243, 4294901760
        %v4274 = vsub.f32 %v243, %v4273
        %4275 = vmatmul.f32.gmra.mxu0 %v4274
        %v4276 = vpop.f32.mrf.mxu0
        %v4277 = vadd.f32 %v4205, %v4276
        %v4278 = vand.u32 %v246, 4294901760
        %v4279 = vsub.f32 %v246, %v4278
        %4280 = vmatmul.f32.gmra.mxu0 %v4279
        %v4281 = vpop.f32.mrf.mxu0
        %v4282 = vadd.f32 %v4209, %v4281
        %v4283 = vand.u32 %v249, 4294901760
        %v4284 = vsub.f32 %v249, %v4283
        %4285 = vmatmul.f32.gmra.mxu0 %v4284
        %v4286 = vpop.f32.mrf.mxu0
        %v4287 = vadd.f32 %v4213, %v4286
        %v4288 = vand.u32 %v252, 4294901760
        %v4289 = vsub.f32 %v252, %v4288
        %4290 = vmatmul.f32.gmra.mxu0 %v4289
        %v4291 = vpop.f32.mrf.mxu0
        %v4292 = vadd.f32 %v4217, %v4291
        %v4293 = vand.u32 %v255, 4294901760
        %v4294 = vsub.f32 %v255, %v4293
        %4295 = vmatmul.f32.gmra.mxu0 %v4294
        %v4296 = vpop.f32.mrf.mxu0
        %v4297 = vadd.f32 %v4221, %v4296
        %4298 = vdwg.mxu0
        %4299 = vmatpush.msra.mxu0 0.0
        %4300 = vmatpush.msra.mxu0 0.0
        %4301 = vmatpush.msra.mxu0 0.0
        %4302 = vmatpush.msra.mxu0 0.0
        %4303 = vmatpush.msra.mxu0 0.0
        %4304 = vmatpush.msra.mxu0 0.0
        %4305 = vmatpush.msra.mxu0 0.0
        %4306 = vmatpush.msra.mxu0 0.0
        %4307 = vmatpush.msra.mxu0 0.0
        %v4308 = vand.u32 %v4037, 4294901760
        %4309 = vmatpush.msra.mxu0 %v4308
        %v4310 = vand.u32 %v4034, 4294901760
        %4311 = vmatpush.msra.mxu0 %v4310
        %v4312 = vand.u32 %v4033, 4294901760
        %4313 = vmatpush.msra.mxu0 %v4312
        %v4314 = vand.u32 %v4032, 4294901760
        %4315 = vmatpush.msra.mxu0 %v4314
        %v4316 = vand.u32 %v4031, 4294901760
        %4317 = vmatpush.msra.mxu0 %v4316
        %v4318 = vand.u32 %v4030, 4294901760
        %4319 = vmatpush.msra.mxu0 %v4318
        %v4320 = vand.u32 %v4029, 4294901760
        %4321 = vmatpush.msra.mxu0 %v4320
        %v4322 = vand.u32 %v231, 4294901760
        %v4323 = vsub.f32 %v231, %v4322
        %v4324 = vand.u32 %v4323, 4294901760
        %4325 = vmatmul.f32.gmra.mxu0 %v4324
        %v4326 = vpop.f32.mrf.mxu0
        %v4327 = vadd.f32 %v4257, %v4326
        %v4328 = vand.u32 %v234, 4294901760
        %v4329 = vsub.f32 %v234, %v4328
        %v4330 = vand.u32 %v4329, 4294901760
        %4331 = vmatmul.f32.gmra.mxu0 %v4330
        %v4332 = vpop.f32.mrf.mxu0
        %v4333 = vadd.f32 %v4262, %v4332
        %v4334 = vand.u32 %v237, 4294901760
        %v4335 = vsub.f32 %v237, %v4334
        %v4336 = vand.u32 %v4335, 4294901760
        %4337 = vmatmul.f32.gmra.mxu0 %v4336
        %v4338 = vpop.f32.mrf.mxu0
        %v4339 = vadd.f32 %v4267, %v4338
        %v4340 = vand.u32 %v240, 4294901760
        %v4341 = vsub.f32 %v240, %v4340
        %v4342 = vand.u32 %v4341, 4294901760
        %4343 = vmatmul.f32.gmra.mxu0 %v4342
        %v4344 = vpop.f32.mrf.mxu0
        %v4345 = vadd.f32 %v4272, %v4344
        %v4346 = vand.u32 %v243, 4294901760
        %v4347 = vsub.f32 %v243, %v4346
        %v4348 = vand.u32 %v4347, 4294901760
        %4349 = vmatmul.f32.gmra.mxu0 %v4348
        %v4350 = vpop.f32.mrf.mxu0
        %v4351 = vadd.f32 %v4277, %v4350
        %v4352 = vand.u32 %v246, 4294901760
        %v4353 = vsub.f32 %v246, %v4352
        %v4354 = vand.u32 %v4353, 4294901760
        %4355 = vmatmul.f32.gmra.mxu0 %v4354
        %v4356 = vpop.f32.mrf.mxu0
        %v4357 = vadd.f32 %v4282, %v4356
        %v4358 = vand.u32 %v249, 4294901760
        %v4359 = vsub.f32 %v249, %v4358
        %v4360 = vand.u32 %v4359, 4294901760
        %4361 = vmatmul.f32.gmra.mxu0 %v4360
        %v4362 = vpop.f32.mrf.mxu0
        %v4363 = vadd.f32 %v4287, %v4362
        %v4364 = vand.u32 %v252, 4294901760
        %v4365 = vsub.f32 %v252, %v4364
        %v4366 = vand.u32 %v4365, 4294901760
        %4367 = vmatmul.f32.gmra.mxu0 %v4366
        %v4368 = vpop.f32.mrf.mxu0
        %v4369 = vadd.f32 %v4292, %v4368
        %v4370 = vand.u32 %v255, 4294901760
        %v4371 = vsub.f32 %v255, %v4370
        %v4372 = vand.u32 %v4371, 4294901760
        %4373 = vmatmul.f32.gmra.mxu0 %v4372
        %v4374 = vpop.f32.mrf.mxu0
        %v4375 = vadd.f32 %v4297, %v4374
        %4376 = vdwg.mxu0
        %4377 = vmatpush.msra.mxu0 0.0
        %4378 = vmatpush.msra.mxu0 0.0
        %4379 = vmatpush.msra.mxu0 0.0
        %4380 = vmatpush.msra.mxu0 0.0
        %4381 = vmatpush.msra.mxu0 0.0
        %4382 = vmatpush.msra.mxu0 0.0
        %4383 = vmatpush.msra.mxu0 0.0
        %4384 = vmatpush.msra.mxu0 0.0
        %4385 = vmatpush.msra.mxu0 0.0
        %v4386 = vand.u32 %v4037, 4294901760
        %v4387 = vsub.f32 %v4037, %v4386
        %v4388 = vand.u32 %v4387, 4294901760
        %4389 = vmatpush.msra.mxu0 %v4388
        %v4390 = vand.u32 %v4034, 4294901760
        %v4391 = vsub.f32 %v4034, %v4390
        %v4392 = vand.u32 %v4391, 4294901760
        %4393 = vmatpush.msra.mxu0 %v4392
        %v4394 = vand.u32 %v4033, 4294901760
        %v4395 = vsub.f32 %v4033, %v4394
        %v4396 = vand.u32 %v4395, 4294901760
        %4397 = vmatpush.msra.mxu0 %v4396
        %v4398 = vand.u32 %v4032, 4294901760
        %v4399 = vsub.f32 %v4032, %v4398
        %v4400 = vand.u32 %v4399, 4294901760
        %4401 = vmatpush.msra.mxu0 %v4400
        %v4402 = vand.u32 %v4031, 4294901760
        %v4403 = vsub.f32 %v4031, %v4402
        %v4404 = vand.u32 %v4403, 4294901760
        %4405 = vmatpush.msra.mxu0 %v4404
        %v4406 = vand.u32 %v4030, 4294901760
        %v4407 = vsub.f32 %v4030, %v4406
        %v4408 = vand.u32 %v4407, 4294901760
        %4409 = vmatpush.msra.mxu0 %v4408
        %v4410 = vand.u32 %v4029, 4294901760
        %v4411 = vsub.f32 %v4029, %v4410
        %v4412 = vand.u32 %v4411, 4294901760
        %4413 = vmatpush.msra.mxu0 %v4412
        %v4414 = vand.u32 %v231, 4294901760
        %4415 = vmatmul.f32.gmra.mxu0 %v4414
        %v4416 = vpop.f32.mrf.mxu0
        %v4417 = vadd.f32 %v4327, %v4416
        %v4418 = vand.u32 %v234, 4294901760
        %4419 = vmatmul.f32.gmra.mxu0 %v4418
        %v4420 = vpop.f32.mrf.mxu0
        %v4421 = vadd.f32 %v4333, %v4420
        %v4422 = vand.u32 %v237, 4294901760
        %4423 = vmatmul.f32.gmra.mxu0 %v4422
        %v4424 = vpop.f32.mrf.mxu0
        %v4425 = vadd.f32 %v4339, %v4424
        %v4426 = vand.u32 %v240, 4294901760
        %4427 = vmatmul.f32.gmra.mxu0 %v4426
        %v4428 = vpop.f32.mrf.mxu0
        %v4429 = vadd.f32 %v4345, %v4428
        %v4430 = vand.u32 %v243, 4294901760
        %4431 = vmatmul.f32.gmra.mxu0 %v4430
        %v4432 = vpop.f32.mrf.mxu0
        %v4433 = vadd.f32 %v4351, %v4432
        %v4434 = vand.u32 %v246, 4294901760
        %4435 = vmatmul.f32.gmra.mxu0 %v4434
        %v4436 = vpop.f32.mrf.mxu0
        %v4437 = vadd.f32 %v4357, %v4436
        %v4438 = vand.u32 %v249, 4294901760
        %4439 = vmatmul.f32.gmra.mxu0 %v4438
        %v4440 = vpop.f32.mrf.mxu0
        %v4441 = vadd.f32 %v4363, %v4440
        %v4442 = vand.u32 %v252, 4294901760
        %4443 = vmatmul.f32.gmra.mxu0 %v4442
        %v4444 = vpop.f32.mrf.mxu0
        %v4445 = vadd.f32 %v4369, %v4444
        %v4446 = vand.u32 %v255, 4294901760
        %4447 = vmatmul.f32.gmra.mxu0 %v4446
        %v4448 = vpop.f32.mrf.mxu0
        %v4449 = vadd.f32 %v4375, %v4448
        %4450 = vdwg.mxu0
        %4451 = vmatpush.msra.mxu0 0.0
        %4452 = vmatpush.msra.mxu0 0.0
        %4453 = vmatpush.msra.mxu0 0.0
        %4454 = vmatpush.msra.mxu0 0.0
        %4455 = vmatpush.msra.mxu0 0.0
        %4456 = vmatpush.msra.mxu0 0.0
        %4457 = vmatpush.msra.mxu0 0.0
        %4458 = vmatpush.msra.mxu0 0.0
        %4459 = vmatpush.msra.mxu0 0.0
        %v4460 = vand.u32 %v4037, 4294901760
        %4461 = vmatpush.msra.mxu0 %v4460
        %v4462 = vand.u32 %v4034, 4294901760
        %4463 = vmatpush.msra.mxu0 %v4462
        %v4464 = vand.u32 %v4033, 4294901760
        %4465 = vmatpush.msra.mxu0 %v4464
        %v4466 = vand.u32 %v4032, 4294901760
        %4467 = vmatpush.msra.mxu0 %v4466
        %v4468 = vand.u32 %v4031, 4294901760
        %4469 = vmatpush.msra.mxu0 %v4468
        %v4470 = vand.u32 %v4030, 4294901760
        %4471 = vmatpush.msra.mxu0 %v4470
        %v4472 = vand.u32 %v4029, 4294901760
        %4473 = vmatpush.msra.mxu0 %v4472
        %v4474 = vand.u32 %v231, 4294901760
        %4475 = vmatmul.f32.gmra.mxu0 %v4474
        %v4476 = vpop.f32.mrf.mxu0
        %v4477 = vadd.f32 %v4417, %v4476
        %v4478 = vand.u32 %v234, 4294901760
        %4479 = vmatmul.f32.gmra.mxu0 %v4478
        %v4480 = vpop.f32.mrf.mxu0
        %v4481 = vadd.f32 %v4421, %v4480
        %v4482 = vand.u32 %v237, 4294901760
        %4483 = vmatmul.f32.gmra.mxu0 %v4482
        %v4484 = vpop.f32.mrf.mxu0
        %v4485 = vadd.f32 %v4425, %v4484
        %v4486 = vand.u32 %v240, 4294901760
        %4487 = vmatmul.f32.gmra.mxu0 %v4486
        %v4488 = vpop.f32.mrf.mxu0
        %v4489 = vadd.f32 %v4429, %v4488
        %v4490 = vand.u32 %v243, 4294901760
        %4491 = vmatmul.f32.gmra.mxu0 %v4490
        %v4492 = vpop.f32.mrf.mxu0
        %v4493 = vadd.f32 %v4433, %v4492
        %v4494 = vand.u32 %v246, 4294901760
        %4495 = vmatmul.f32.gmra.mxu0 %v4494
        %v4496 = vpop.f32.mrf.mxu0
        %v4497 = vadd.f32 %v4437, %v4496
        %v4498 = vand.u32 %v249, 4294901760
        %4499 = vmatmul.f32.gmra.mxu0 %v4498
        %v4500 = vpop.f32.mrf.mxu0
        %v4501 = vadd.f32 %v4441, %v4500
        %v4502 = vand.u32 %v252, 4294901760
        %4503 = vmatmul.f32.gmra.mxu0 %v4502
        %v4504 = vpop.f32.mrf.mxu0
        %v4505 = vadd.f32 %v4445, %v4504
        %v4506 = vand.u32 %v255, 4294901760
        %4507 = vmatmul.f32.gmra.mxu0 %v4506
        %v4508 = vpop.f32.mrf.mxu0
        %v4509 = vadd.f32 %v4449, %v4508
        %4510 = vdwg.mxu0
        %4511 = vset.pattern.permute.xlu0 7
        %4512 = vperm.xlu0 %4511, %v734
        %v4513 = vpop.permute.xlu0 %4512
        %4515 = vset.pattern.permute.xlu0 7
        %4516 = vperm.xlu0 %4515, %v735
        %v4517 = vpop.permute.xlu0 %4516
        %4519 = vset.pattern.permute.xlu0 7
        %4520 = vperm.xlu0 %4519, %v736
        %v4521 = vpop.permute.xlu0 %4520
        %4523 = vset.pattern.permute.xlu0 7
        %4524 = vperm.xlu0 %4523, %v737
        %v4525 = vpop.permute.xlu0 %4524
        %4527 = vset.pattern.permute.xlu0 7
        %4528 = vperm.xlu0 %4527, %v738
        %v4529 = vpop.permute.xlu0 %4528
        %4531 = vset.pattern.permute.xlu0 7
        %4532 = vperm.xlu0 %4531, %v739
        %v4533 = vpop.permute.xlu0 %4532
        %4535 = vset.pattern.permute.xlu0 7
        %4536 = vperm.xlu0 %4535, %v740
        %v4537 = vpop.permute.xlu0 %4536
        %4539 = vset.pattern.permute.xlu0 7
        %4540 = vperm.xlu0 %4539, %v741
        %v4541 = vpop.permute.xlu0 %4540
        %4543 = vset.pattern.permute.xlu0 7
        %4544 = vperm.xlu0 %4543, %v742
        %v4545 = vpop.permute.xlu0 %4544
        %v4547 = vmul.f32 %v4477, %v4513
        %v4548 = vmul.f32 %v4481, %v4517
        %v4549 = vmul.f32 %v4485, %v4521
        %v4550 = vmul.f32 %v4489, %v4525
        %v4551 = vmul.f32 %v4493, %v4529
        %v4552 = vmul.f32 %v4497, %v4533
        %v4553 = vmul.f32 %v4501, %v4537
        %v4554 = vmul.f32 %v4505, %v4541
        %v4555 = vmul.f32 %v4509, %v4545
        %v4556 = vadd.f32 %v4019, %v4547
        %v4557 = vadd.f32 %v4020, %v4548
        %v4558 = vadd.f32 %v4021, %v4549
        %v4559 = vadd.f32 %v4022, %v4550
        %v4560 = vadd.f32 %v4023, %v4551
        %v4561 = vadd.f32 %v4024, %v4552
        %v4562 = vadd.f32 %v4025, %v4553
        %v4563 = vadd.f32 %v4026, %v4554
        %v4564 = vadd.f32 %v4027, %v4555
        %s4565 = scalar_lea.vmem %s2, 448
        %v4566 = vld [vmem:[%s4565] sm:$0xff]
        %v4567 = vld [vmem:[%s4565 + $0x8] sm:$0xff]
        %v4568 = vld [vmem:[%s4565 + $0x10] sm:$0xff]
        %v4569 = vld [vmem:[%s4565 + $0x18] sm:$0xff]
        %v4570 = vld [vmem:[%s4565 + $0x20] sm:$0xff]
        %v4571 = vld [vmem:[%s4565 + $0x28] sm:$0xff]
        %v4572 = vld [vmem:[%s4565 + $0x30] sm:$0x1]
        %v4574 = vsel %vm257, %v4572, 0
        %4576 = vmatpush.msra.mxu0 0.0
        %4577 = vmatpush.msra.mxu0 0.0
        %4578 = vmatpush.msra.mxu0 0.0
        %4579 = vmatpush.msra.mxu0 0.0
        %4580 = vmatpush.msra.mxu0 0.0
        %4581 = vmatpush.msra.mxu0 0.0
        %4582 = vmatpush.msra.mxu0 0.0
        %4583 = vmatpush.msra.mxu0 0.0
        %4584 = vmatpush.msra.mxu0 0.0
        %v4585 = vand.u32 %v4574, 4294901760
        %4586 = vmatpush.msra.mxu0 %v4585
        %v4587 = vand.u32 %v4571, 4294901760
        %4588 = vmatpush.msra.mxu0 %v4587
        %v4589 = vand.u32 %v4570, 4294901760
        %4590 = vmatpush.msra.mxu0 %v4589
        %v4591 = vand.u32 %v4569, 4294901760
        %4592 = vmatpush.msra.mxu0 %v4591
        %v4593 = vand.u32 %v4568, 4294901760
        %4594 = vmatpush.msra.mxu0 %v4593
        %v4595 = vand.u32 %v4567, 4294901760
        %4596 = vmatpush.msra.mxu0 %v4595
        %v4597 = vand.u32 %v4566, 4294901760
        %4598 = vmatpush.msra.mxu0 %v4597
        %v4599 = vand.u32 %v231, 4294901760
        %v4600 = vsub.f32 %v231, %v4599
        %v4601 = vand.u32 %v4600, 4294901760
        %v4602 = vsub.f32 %v4600, %v4601
        %v4603 = vand.u32 %v4602, 4294901760
        %4604 = vmatmul.f32.gmra.mxu0 %v4603
        %v4605 = vpop.f32.mrf.mxu0
        %v4606 = vadd.f32 0.0, %v4605
        %v4607 = vand.u32 %v234, 4294901760
        %v4608 = vsub.f32 %v234, %v4607
        %v4609 = vand.u32 %v4608, 4294901760
        %v4610 = vsub.f32 %v4608, %v4609
        %v4611 = vand.u32 %v4610, 4294901760
        %4612 = vmatmul.f32.gmra.mxu0 %v4611
        %v4613 = vpop.f32.mrf.mxu0
        %v4614 = vadd.f32 0.0, %v4613
        %v4615 = vand.u32 %v237, 4294901760
        %v4616 = vsub.f32 %v237, %v4615
        %v4617 = vand.u32 %v4616, 4294901760
        %v4618 = vsub.f32 %v4616, %v4617
        %v4619 = vand.u32 %v4618, 4294901760
        %4620 = vmatmul.f32.gmra.mxu0 %v4619
        %v4621 = vpop.f32.mrf.mxu0
        %v4622 = vadd.f32 0.0, %v4621
        %v4623 = vand.u32 %v240, 4294901760
        %v4624 = vsub.f32 %v240, %v4623
        %v4625 = vand.u32 %v4624, 4294901760
        %v4626 = vsub.f32 %v4624, %v4625
        %v4627 = vand.u32 %v4626, 4294901760
        %4628 = vmatmul.f32.gmra.mxu0 %v4627
        %v4629 = vpop.f32.mrf.mxu0
        %v4630 = vadd.f32 0.0, %v4629
        %v4631 = vand.u32 %v243, 4294901760
        %v4632 = vsub.f32 %v243, %v4631
        %v4633 = vand.u32 %v4632, 4294901760
        %v4634 = vsub.f32 %v4632, %v4633
        %v4635 = vand.u32 %v4634, 4294901760
        %4636 = vmatmul.f32.gmra.mxu0 %v4635
        %v4637 = vpop.f32.mrf.mxu0
        %v4638 = vadd.f32 0.0, %v4637
        %v4639 = vand.u32 %v246, 4294901760
        %v4640 = vsub.f32 %v246, %v4639
        %v4641 = vand.u32 %v4640, 4294901760
        %v4642 = vsub.f32 %v4640, %v4641
        %v4643 = vand.u32 %v4642, 4294901760
        %4644 = vmatmul.f32.gmra.mxu0 %v4643
        %v4645 = vpop.f32.mrf.mxu0
        %v4646 = vadd.f32 0.0, %v4645
        %v4647 = vand.u32 %v249, 4294901760
        %v4648 = vsub.f32 %v249, %v4647
        %v4649 = vand.u32 %v4648, 4294901760
        %v4650 = vsub.f32 %v4648, %v4649
        %v4651 = vand.u32 %v4650, 4294901760
        %4652 = vmatmul.f32.gmra.mxu0 %v4651
        %v4653 = vpop.f32.mrf.mxu0
        %v4654 = vadd.f32 0.0, %v4653
        %v4655 = vand.u32 %v252, 4294901760
        %v4656 = vsub.f32 %v252, %v4655
        %v4657 = vand.u32 %v4656, 4294901760
        %v4658 = vsub.f32 %v4656, %v4657
        %v4659 = vand.u32 %v4658, 4294901760
        %4660 = vmatmul.f32.gmra.mxu0 %v4659
        %v4661 = vpop.f32.mrf.mxu0
        %v4662 = vadd.f32 0.0, %v4661
        %v4663 = vand.u32 %v255, 4294901760
        %v4664 = vsub.f32 %v255, %v4663
        %v4665 = vand.u32 %v4664, 4294901760
        %v4666 = vsub.f32 %v4664, %v4665
        %v4667 = vand.u32 %v4666, 4294901760
        %4668 = vmatmul.f32.gmra.mxu0 %v4667
        %v4669 = vpop.f32.mrf.mxu0
        %v4670 = vadd.f32 0.0, %v4669
        %4671 = vdwg.mxu0
        %4672 = vmatpush.msra.mxu0 0.0
        %4673 = vmatpush.msra.mxu0 0.0
        %4674 = vmatpush.msra.mxu0 0.0
        %4675 = vmatpush.msra.mxu0 0.0
        %4676 = vmatpush.msra.mxu0 0.0
        %4677 = vmatpush.msra.mxu0 0.0
        %4678 = vmatpush.msra.mxu0 0.0
        %4679 = vmatpush.msra.mxu0 0.0
        %4680 = vmatpush.msra.mxu0 0.0
        %v4681 = vand.u32 %v4574, 4294901760
        %v4682 = vsub.f32 %v4574, %v4681
        %v4683 = vand.u32 %v4682, 4294901760
        %v4684 = vsub.f32 %v4682, %v4683
        %v4685 = vand.u32 %v4684, 4294901760
        %4686 = vmatpush.msra.mxu0 %v4685
        %v4687 = vand.u32 %v4571, 4294901760
        %v4688 = vsub.f32 %v4571, %v4687
        %v4689 = vand.u32 %v4688, 4294901760
        %v4690 = vsub.f32 %v4688, %v4689
        %v4691 = vand.u32 %v4690, 4294901760
        %4692 = vmatpush.msra.mxu0 %v4691
        %v4693 = vand.u32 %v4570, 4294901760
        %v4694 = vsub.f32 %v4570, %v4693
        %v4695 = vand.u32 %v4694, 4294901760
        %v4696 = vsub.f32 %v4694, %v4695
        %v4697 = vand.u32 %v4696, 4294901760
        %4698 = vmatpush.msra.mxu0 %v4697
        %v4699 = vand.u32 %v4569, 4294901760
        %v4700 = vsub.f32 %v4569, %v4699
        %v4701 = vand.u32 %v4700, 4294901760
        %v4702 = vsub.f32 %v4700, %v4701
        %v4703 = vand.u32 %v4702, 4294901760
        %4704 = vmatpush.msra.mxu0 %v4703
        %v4705 = vand.u32 %v4568, 4294901760
        %v4706 = vsub.f32 %v4568, %v4705
        %v4707 = vand.u32 %v4706, 4294901760
        %v4708 = vsub.f32 %v4706, %v4707
        %v4709 = vand.u32 %v4708, 4294901760
        %4710 = vmatpush.msra.mxu0 %v4709
        %v4711 = vand.u32 %v4567, 4294901760
        %v4712 = vsub.f32 %v4567, %v4711
        %v4713 = vand.u32 %v4712, 4294901760
        %v4714 = vsub.f32 %v4712, %v4713
        %v4715 = vand.u32 %v4714, 4294901760
        %4716 = vmatpush.msra.mxu0 %v4715
        %v4717 = vand.u32 %v4566, 4294901760
        %v4718 = vsub.f32 %v4566, %v4717
        %v4719 = vand.u32 %v4718, 4294901760
        %v4720 = vsub.f32 %v4718, %v4719
        %v4721 = vand.u32 %v4720, 4294901760
        %4722 = vmatpush.msra.mxu0 %v4721
        %v4723 = vand.u32 %v231, 4294901760
        %4724 = vmatmul.f32.gmra.mxu0 %v4723
        %v4725 = vpop.f32.mrf.mxu0
        %v4726 = vadd.f32 %v4606, %v4725
        %v4727 = vand.u32 %v234, 4294901760
        %4728 = vmatmul.f32.gmra.mxu0 %v4727
        %v4729 = vpop.f32.mrf.mxu0
        %v4730 = vadd.f32 %v4614, %v4729
        %v4731 = vand.u32 %v237, 4294901760
        %4732 = vmatmul.f32.gmra.mxu0 %v4731
        %v4733 = vpop.f32.mrf.mxu0
        %v4734 = vadd.f32 %v4622, %v4733
        %v4735 = vand.u32 %v240, 4294901760
        %4736 = vmatmul.f32.gmra.mxu0 %v4735
        %v4737 = vpop.f32.mrf.mxu0
        %v4738 = vadd.f32 %v4630, %v4737
        %v4739 = vand.u32 %v243, 4294901760
        %4740 = vmatmul.f32.gmra.mxu0 %v4739
        %v4741 = vpop.f32.mrf.mxu0
        %v4742 = vadd.f32 %v4638, %v4741
        %v4743 = vand.u32 %v246, 4294901760
        %4744 = vmatmul.f32.gmra.mxu0 %v4743
        %v4745 = vpop.f32.mrf.mxu0
        %v4746 = vadd.f32 %v4646, %v4745
        %v4747 = vand.u32 %v249, 4294901760
        %4748 = vmatmul.f32.gmra.mxu0 %v4747
        %v4749 = vpop.f32.mrf.mxu0
        %v4750 = vadd.f32 %v4654, %v4749
        %v4751 = vand.u32 %v252, 4294901760
        %4752 = vmatmul.f32.gmra.mxu0 %v4751
        %v4753 = vpop.f32.mrf.mxu0
        %v4754 = vadd.f32 %v4662, %v4753
        %v4755 = vand.u32 %v255, 4294901760
        %4756 = vmatmul.f32.gmra.mxu0 %v4755
        %v4757 = vpop.f32.mrf.mxu0
        %v4758 = vadd.f32 %v4670, %v4757
        %4759 = vdwg.mxu0
        %4760 = vmatpush.msra.mxu0 0.0
        %4761 = vmatpush.msra.mxu0 0.0
        %4762 = vmatpush.msra.mxu0 0.0
        %4763 = vmatpush.msra.mxu0 0.0
        %4764 = vmatpush.msra.mxu0 0.0
        %4765 = vmatpush.msra.mxu0 0.0
        %4766 = vmatpush.msra.mxu0 0.0
        %4767 = vmatpush.msra.mxu0 0.0
        %4768 = vmatpush.msra.mxu0 0.0
        %v4769 = vand.u32 %v4574, 4294901760
        %v4770 = vsub.f32 %v4574, %v4769
        %4771 = vmatpush.msra.mxu0 %v4770
        %v4772 = vand.u32 %v4571, 4294901760
        %v4773 = vsub.f32 %v4571, %v4772
        %4774 = vmatpush.msra.mxu0 %v4773
        %v4775 = vand.u32 %v4570, 4294901760
        %v4776 = vsub.f32 %v4570, %v4775
        %4777 = vmatpush.msra.mxu0 %v4776
        %v4778 = vand.u32 %v4569, 4294901760
        %v4779 = vsub.f32 %v4569, %v4778
        %4780 = vmatpush.msra.mxu0 %v4779
        %v4781 = vand.u32 %v4568, 4294901760
        %v4782 = vsub.f32 %v4568, %v4781
        %4783 = vmatpush.msra.mxu0 %v4782
        %v4784 = vand.u32 %v4567, 4294901760
        %v4785 = vsub.f32 %v4567, %v4784
        %4786 = vmatpush.msra.mxu0 %v4785
        %v4787 = vand.u32 %v4566, 4294901760
        %v4788 = vsub.f32 %v4566, %v4787
        %4789 = vmatpush.msra.mxu0 %v4788
        %v4790 = vand.u32 %v231, 4294901760
        %v4791 = vsub.f32 %v231, %v4790
        %4792 = vmatmul.f32.gmra.mxu0 %v4791
        %v4793 = vpop.f32.mrf.mxu0
        %v4794 = vadd.f32 %v4726, %v4793
        %v4795 = vand.u32 %v234, 4294901760
        %v4796 = vsub.f32 %v234, %v4795
        %4797 = vmatmul.f32.gmra.mxu0 %v4796
        %v4798 = vpop.f32.mrf.mxu0
        %v4799 = vadd.f32 %v4730, %v4798
        %v4800 = vand.u32 %v237, 4294901760
        %v4801 = vsub.f32 %v237, %v4800
        %4802 = vmatmul.f32.gmra.mxu0 %v4801
        %v4803 = vpop.f32.mrf.mxu0
        %v4804 = vadd.f32 %v4734, %v4803
        %v4805 = vand.u32 %v240, 4294901760
        %v4806 = vsub.f32 %v240, %v4805
        %4807 = vmatmul.f32.gmra.mxu0 %v4806
        %v4808 = vpop.f32.mrf.mxu0
        %v4809 = vadd.f32 %v4738, %v4808
        %v4810 = vand.u32 %v243, 4294901760
        %v4811 = vsub.f32 %v243, %v4810
        %4812 = vmatmul.f32.gmra.mxu0 %v4811
        %v4813 = vpop.f32.mrf.mxu0
        %v4814 = vadd.f32 %v4742, %v4813
        %v4815 = vand.u32 %v246, 4294901760
        %v4816 = vsub.f32 %v246, %v4815
        %4817 = vmatmul.f32.gmra.mxu0 %v4816
        %v4818 = vpop.f32.mrf.mxu0
        %v4819 = vadd.f32 %v4746, %v4818
        %v4820 = vand.u32 %v249, 4294901760
        %v4821 = vsub.f32 %v249, %v4820
        %4822 = vmatmul.f32.gmra.mxu0 %v4821
        %v4823 = vpop.f32.mrf.mxu0
        %v4824 = vadd.f32 %v4750, %v4823
        %v4825 = vand.u32 %v252, 4294901760
        %v4826 = vsub.f32 %v252, %v4825
        %4827 = vmatmul.f32.gmra.mxu0 %v4826
        %v4828 = vpop.f32.mrf.mxu0
        %v4829 = vadd.f32 %v4754, %v4828
        %v4830 = vand.u32 %v255, 4294901760
        %v4831 = vsub.f32 %v255, %v4830
        %4832 = vmatmul.f32.gmra.mxu0 %v4831
        %v4833 = vpop.f32.mrf.mxu0
        %v4834 = vadd.f32 %v4758, %v4833
        %4835 = vdwg.mxu0
        %4836 = vmatpush.msra.mxu0 0.0
        %4837 = vmatpush.msra.mxu0 0.0
        %4838 = vmatpush.msra.mxu0 0.0
        %4839 = vmatpush.msra.mxu0 0.0
        %4840 = vmatpush.msra.mxu0 0.0
        %4841 = vmatpush.msra.mxu0 0.0
        %4842 = vmatpush.msra.mxu0 0.0
        %4843 = vmatpush.msra.mxu0 0.0
        %4844 = vmatpush.msra.mxu0 0.0
        %v4845 = vand.u32 %v4574, 4294901760
        %4846 = vmatpush.msra.mxu0 %v4845
        %v4847 = vand.u32 %v4571, 4294901760
        %4848 = vmatpush.msra.mxu0 %v4847
        %v4849 = vand.u32 %v4570, 4294901760
        %4850 = vmatpush.msra.mxu0 %v4849
        %v4851 = vand.u32 %v4569, 4294901760
        %4852 = vmatpush.msra.mxu0 %v4851
        %v4853 = vand.u32 %v4568, 4294901760
        %4854 = vmatpush.msra.mxu0 %v4853
        %v4855 = vand.u32 %v4567, 4294901760
        %4856 = vmatpush.msra.mxu0 %v4855
        %v4857 = vand.u32 %v4566, 4294901760
        %4858 = vmatpush.msra.mxu0 %v4857
        %v4859 = vand.u32 %v231, 4294901760
        %v4860 = vsub.f32 %v231, %v4859
        %v4861 = vand.u32 %v4860, 4294901760
        %4862 = vmatmul.f32.gmra.mxu0 %v4861
        %v4863 = vpop.f32.mrf.mxu0
        %v4864 = vadd.f32 %v4794, %v4863
        %v4865 = vand.u32 %v234, 4294901760
        %v4866 = vsub.f32 %v234, %v4865
        %v4867 = vand.u32 %v4866, 4294901760
        %4868 = vmatmul.f32.gmra.mxu0 %v4867
        %v4869 = vpop.f32.mrf.mxu0
        %v4870 = vadd.f32 %v4799, %v4869
        %v4871 = vand.u32 %v237, 4294901760
        %v4872 = vsub.f32 %v237, %v4871
        %v4873 = vand.u32 %v4872, 4294901760
        %4874 = vmatmul.f32.gmra.mxu0 %v4873
        %v4875 = vpop.f32.mrf.mxu0
        %v4876 = vadd.f32 %v4804, %v4875
        %v4877 = vand.u32 %v240, 4294901760
        %v4878 = vsub.f32 %v240, %v4877
        %v4879 = vand.u32 %v4878, 4294901760
        %4880 = vmatmul.f32.gmra.mxu0 %v4879
        %v4881 = vpop.f32.mrf.mxu0
        %v4882 = vadd.f32 %v4809, %v4881
        %v4883 = vand.u32 %v243, 4294901760
        %v4884 = vsub.f32 %v243, %v4883
        %v4885 = vand.u32 %v4884, 4294901760
        %4886 = vmatmul.f32.gmra.mxu0 %v4885
        %v4887 = vpop.f32.mrf.mxu0
        %v4888 = vadd.f32 %v4814, %v4887
        %v4889 = vand.u32 %v246, 4294901760
        %v4890 = vsub.f32 %v246, %v4889
        %v4891 = vand.u32 %v4890, 4294901760
        %4892 = vmatmul.f32.gmra.mxu0 %v4891
        %v4893 = vpop.f32.mrf.mxu0
        %v4894 = vadd.f32 %v4819, %v4893
        %v4895 = vand.u32 %v249, 4294901760
        %v4896 = vsub.f32 %v249, %v4895
        %v4897 = vand.u32 %v4896, 4294901760
        %4898 = vmatmul.f32.gmra.mxu0 %v4897
        %v4899 = vpop.f32.mrf.mxu0
        %v4900 = vadd.f32 %v4824, %v4899
        %v4901 = vand.u32 %v252, 4294901760
        %v4902 = vsub.f32 %v252, %v4901
        %v4903 = vand.u32 %v4902, 4294901760
        %4904 = vmatmul.f32.gmra.mxu0 %v4903
        %v4905 = vpop.f32.mrf.mxu0
        %v4906 = vadd.f32 %v4829, %v4905
        %v4907 = vand.u32 %v255, 4294901760
        %v4908 = vsub.f32 %v255, %v4907
        %v4909 = vand.u32 %v4908, 4294901760
        %4910 = vmatmul.f32.gmra.mxu0 %v4909
        %v4911 = vpop.f32.mrf.mxu0
        %v4912 = vadd.f32 %v4834, %v4911
        %4913 = vdwg.mxu0
        %4914 = vmatpush.msra.mxu0 0.0
        %4915 = vmatpush.msra.mxu0 0.0
        %4916 = vmatpush.msra.mxu0 0.0
        %4917 = vmatpush.msra.mxu0 0.0
        %4918 = vmatpush.msra.mxu0 0.0
        %4919 = vmatpush.msra.mxu0 0.0
        %4920 = vmatpush.msra.mxu0 0.0
        %4921 = vmatpush.msra.mxu0 0.0
        %4922 = vmatpush.msra.mxu0 0.0
        %v4923 = vand.u32 %v4574, 4294901760
        %v4924 = vsub.f32 %v4574, %v4923
        %v4925 = vand.u32 %v4924, 4294901760
        %4926 = vmatpush.msra.mxu0 %v4925
        %v4927 = vand.u32 %v4571, 4294901760
        %v4928 = vsub.f32 %v4571, %v4927
        %v4929 = vand.u32 %v4928, 4294901760
        %4930 = vmatpush.msra.mxu0 %v4929
        %v4931 = vand.u32 %v4570, 4294901760
        %v4932 = vsub.f32 %v4570, %v4931
        %v4933 = vand.u32 %v4932, 4294901760
        %4934 = vmatpush.msra.mxu0 %v4933
        %v4935 = vand.u32 %v4569, 4294901760
        %v4936 = vsub.f32 %v4569, %v4935
        %v4937 = vand.u32 %v4936, 4294901760
        %4938 = vmatpush.msra.mxu0 %v4937
        %v4939 = vand.u32 %v4568, 4294901760
        %v4940 = vsub.f32 %v4568, %v4939
        %v4941 = vand.u32 %v4940, 4294901760
        %4942 = vmatpush.msra.mxu0 %v4941
        %v4943 = vand.u32 %v4567, 4294901760
        %v4944 = vsub.f32 %v4567, %v4943
        %v4945 = vand.u32 %v4944, 4294901760
        %4946 = vmatpush.msra.mxu0 %v4945
        %v4947 = vand.u32 %v4566, 4294901760
        %v4948 = vsub.f32 %v4566, %v4947
        %v4949 = vand.u32 %v4948, 4294901760
        %4950 = vmatpush.msra.mxu0 %v4949
        %v4951 = vand.u32 %v231, 4294901760
        %4952 = vmatmul.f32.gmra.mxu0 %v4951
        %v4953 = vpop.f32.mrf.mxu0
        %v4954 = vadd.f32 %v4864, %v4953
        %v4955 = vand.u32 %v234, 4294901760
        %4956 = vmatmul.f32.gmra.mxu0 %v4955
        %v4957 = vpop.f32.mrf.mxu0
        %v4958 = vadd.f32 %v4870, %v4957
        %v4959 = vand.u32 %v237, 4294901760
        %4960 = vmatmul.f32.gmra.mxu0 %v4959
        %v4961 = vpop.f32.mrf.mxu0
        %v4962 = vadd.f32 %v4876, %v4961
        %v4963 = vand.u32 %v240, 4294901760
        %4964 = vmatmul.f32.gmra.mxu0 %v4963
        %v4965 = vpop.f32.mrf.mxu0
        %v4966 = vadd.f32 %v4882, %v4965
        %v4967 = vand.u32 %v243, 4294901760
        %4968 = vmatmul.f32.gmra.mxu0 %v4967
        %v4969 = vpop.f32.mrf.mxu0
        %v4970 = vadd.f32 %v4888, %v4969
        %v4971 = vand.u32 %v246, 4294901760
        %4972 = vmatmul.f32.gmra.mxu0 %v4971
        %v4973 = vpop.f32.mrf.mxu0
        %v4974 = vadd.f32 %v4894, %v4973
        %v4975 = vand.u32 %v249, 4294901760
        %4976 = vmatmul.f32.gmra.mxu0 %v4975
        %v4977 = vpop.f32.mrf.mxu0
        %v4978 = vadd.f32 %v4900, %v4977
        %v4979 = vand.u32 %v252, 4294901760
        %4980 = vmatmul.f32.gmra.mxu0 %v4979
        %v4981 = vpop.f32.mrf.mxu0
        %v4982 = vadd.f32 %v4906, %v4981
        %v4983 = vand.u32 %v255, 4294901760
        %4984 = vmatmul.f32.gmra.mxu0 %v4983
        %v4985 = vpop.f32.mrf.mxu0
        %v4986 = vadd.f32 %v4912, %v4985
        %4987 = vdwg.mxu0
        %4988 = vmatpush.msra.mxu0 0.0
        %4989 = vmatpush.msra.mxu0 0.0
        %4990 = vmatpush.msra.mxu0 0.0
        %4991 = vmatpush.msra.mxu0 0.0
        %4992 = vmatpush.msra.mxu0 0.0
        %4993 = vmatpush.msra.mxu0 0.0
        %4994 = vmatpush.msra.mxu0 0.0
        %4995 = vmatpush.msra.mxu0 0.0
        %4996 = vmatpush.msra.mxu0 0.0
        %v4997 = vand.u32 %v4574, 4294901760
        %4998 = vmatpush.msra.mxu0 %v4997
        %v4999 = vand.u32 %v4571, 4294901760
        %5000 = vmatpush.msra.mxu0 %v4999
        %v5001 = vand.u32 %v4570, 4294901760
        %5002 = vmatpush.msra.mxu0 %v5001
        %v5003 = vand.u32 %v4569, 4294901760
        %5004 = vmatpush.msra.mxu0 %v5003
        %v5005 = vand.u32 %v4568, 4294901760
        %5006 = vmatpush.msra.mxu0 %v5005
        %v5007 = vand.u32 %v4567, 4294901760
        %5008 = vmatpush.msra.mxu0 %v5007
        %v5009 = vand.u32 %v4566, 4294901760
        %5010 = vmatpush.msra.mxu0 %v5009
        %v5011 = vand.u32 %v231, 4294901760
        %5012 = vmatmul.f32.gmra.mxu0 %v5011
        %v5013 = vpop.f32.mrf.mxu0
        %v5014 = vadd.f32 %v4954, %v5013
        %v5015 = vand.u32 %v234, 4294901760
        %5016 = vmatmul.f32.gmra.mxu0 %v5015
        %v5017 = vpop.f32.mrf.mxu0
        %v5018 = vadd.f32 %v4958, %v5017
        %v5019 = vand.u32 %v237, 4294901760
        %5020 = vmatmul.f32.gmra.mxu0 %v5019
        %v5021 = vpop.f32.mrf.mxu0
        %v5022 = vadd.f32 %v4962, %v5021
        %v5023 = vand.u32 %v240, 4294901760
        %5024 = vmatmul.f32.gmra.mxu0 %v5023
        %v5025 = vpop.f32.mrf.mxu0
        %v5026 = vadd.f32 %v4966, %v5025
        %v5027 = vand.u32 %v243, 4294901760
        %5028 = vmatmul.f32.gmra.mxu0 %v5027
        %v5029 = vpop.f32.mrf.mxu0
        %v5030 = vadd.f32 %v4970, %v5029
        %v5031 = vand.u32 %v246, 4294901760
        %5032 = vmatmul.f32.gmra.mxu0 %v5031
        %v5033 = vpop.f32.mrf.mxu0
        %v5034 = vadd.f32 %v4974, %v5033
        %v5035 = vand.u32 %v249, 4294901760
        %5036 = vmatmul.f32.gmra.mxu0 %v5035
        %v5037 = vpop.f32.mrf.mxu0
        %v5038 = vadd.f32 %v4978, %v5037
        %v5039 = vand.u32 %v252, 4294901760
        %5040 = vmatmul.f32.gmra.mxu0 %v5039
        %v5041 = vpop.f32.mrf.mxu0
        %v5042 = vadd.f32 %v4982, %v5041
        %v5043 = vand.u32 %v255, 4294901760
        %5044 = vmatmul.f32.gmra.mxu0 %v5043
        %v5045 = vpop.f32.mrf.mxu0
        %v5046 = vadd.f32 %v4986, %v5045
        %5047 = vdwg.mxu0
        %5048 = vset.pattern.permute.xlu0 8
        %5049 = vperm.xlu0 %5048, %v734
        %v5050 = vpop.permute.xlu0 %5049
        %5052 = vset.pattern.permute.xlu0 8
        %5053 = vperm.xlu0 %5052, %v735
        %v5054 = vpop.permute.xlu0 %5053
        %5056 = vset.pattern.permute.xlu0 8
        %5057 = vperm.xlu0 %5056, %v736
        %v5058 = vpop.permute.xlu0 %5057
        %5060 = vset.pattern.permute.xlu0 8
        %5061 = vperm.xlu0 %5060, %v737
        %v5062 = vpop.permute.xlu0 %5061
        %5064 = vset.pattern.permute.xlu0 8
        %5065 = vperm.xlu0 %5064, %v738
        %v5066 = vpop.permute.xlu0 %5065
        %5068 = vset.pattern.permute.xlu0 8
        %5069 = vperm.xlu0 %5068, %v739
        %v5070 = vpop.permute.xlu0 %5069
        %5072 = vset.pattern.permute.xlu0 8
        %5073 = vperm.xlu0 %5072, %v740
        %v5074 = vpop.permute.xlu0 %5073
        %5076 = vset.pattern.permute.xlu0 8
        %5077 = vperm.xlu0 %5076, %v741
        %v5078 = vpop.permute.xlu0 %5077
        %5080 = vset.pattern.permute.xlu0 8
        %5081 = vperm.xlu0 %5080, %v742
        %v5082 = vpop.permute.xlu0 %5081
        %v5084 = vmul.f32 %v5014, %v5050
        %v5085 = vmul.f32 %v5018, %v5054
        %v5086 = vmul.f32 %v5022, %v5058
        %v5087 = vmul.f32 %v5026, %v5062
        %v5088 = vmul.f32 %v5030, %v5066
        %v5089 = vmul.f32 %v5034, %v5070
        %v5090 = vmul.f32 %v5038, %v5074
        %v5091 = vmul.f32 %v5042, %v5078
        %v5092 = vmul.f32 %v5046, %v5082
        %v5093 = vadd.f32 %v4556, %v5084
        %v5094 = vadd.f32 %v4557, %v5085
        %v5095 = vadd.f32 %v4558, %v5086
        %v5096 = vadd.f32 %v4559, %v5087
        %v5097 = vadd.f32 %v4560, %v5088
        %v5098 = vadd.f32 %v4561, %v5089
        %v5099 = vadd.f32 %v4562, %v5090
        %v5100 = vadd.f32 %v4563, %v5091
        %v5101 = vadd.f32 %v4564, %v5092
        %s5102 = scalar_lea.vmem %s194, %s202
        %5103 = vst.msk [vmem:[%s5102] sm:$0xff] %vm229, %v5093
        %5104 = vst.msk [vmem:[%s5102 + $0x8] sm:$0xff] %vm229, %v5094
        %5105 = vst.msk [vmem:[%s5102 + $0x10] sm:$0xff] %vm229, %v5095
        %5106 = vst.msk [vmem:[%s5102 + $0x18] sm:$0xff] %vm229, %v5096
        %5107 = vst.msk [vmem:[%s5102 + $0x20] sm:$0xff] %vm229, %v5097
        %5108 = vst.msk [vmem:[%s5102 + $0x28] sm:$0xff] %vm229, %v5098
        %5109 = vst.msk [vmem:[%s5102 + $0x30] sm:$0xff] %vm229, %v5099
        %5110 = vst.msk [vmem:[%s5102 + $0x38] sm:$0xff] %vm229, %v5100
        %5111 = vst.msk [vmem:[%s5102 + $0x40] sm:$0xff] %vm229, %v5101
      $region37: #{relu_dwconv3x3.1} parent=31 // loop_footer
        %s201 = sadd.s32 1, %s197
      $region38: #{relu_dwconv3x3.1} parent=31 // loop_footer_branch
        %196 = sbr.rel target = $region34
      $region39: #{relu_dwconv3x3.1} parent=31 // loop_exit
        _
      %s5112 = smul.u32 54, %s14
      %p5113 = scmp.lt.s32.totalorder %s5112, 107
      %s5114 = scalar_select %p5113, %s5112, 107
      %s5115 = smul.addr %s5114, 8
      %s5116 = scalar_lea.vmem %s3, %s5115
      // Predicated region
      $region40: #{relu_dwconv3x3.1} parent=31 // pred_check
        %p5117 = pneg %p105
      $region41: #{relu_dwconv3x3.1} parent=31 // pred_check_branch
        %5119 = sbr.rel (%p5117) target = $region43
      $region42: #{relu_dwconv3x3.1} parent=31 // pred_region
        %s5120 = smul.u32 54, %s14
      $region43: #{relu_dwconv3x3.1} parent=31 // pred_fallthru
        _
    $region32: #{relu_dwconv3x3.1} parent=5 // pred_fallthru
      _
    %p5121 = scmp.le.s32.totalorder 2, %s9
    // Predicated region
    $region44: #{relu_dwconv3x3.1} parent=5 // pred_check
      %p5122 = pneg %p5121
    $region45: #{relu_dwconv3x3.1} parent=5 // pred_check_branch
      %5124 = sbr.rel (%p5122) target = $region47
    $region46: #{relu_dwconv3x3.1} parent=5 // pred_region
      %s5125 = ssub.s32 %s9, 2
      // Predicated region
      $region48: #{relu_dwconv3x3.1} parent=46 // pred_check
        %p5126 = pneg %p111
      $region49: #{relu_dwconv3x3.1} parent=46 // pred_check_branch
        %5128 = sbr.rel (%p5126) target = $region51
      $region50: #{relu_dwconv3x3.1} parent=46 // pred_region
        %s5129 = smul.u32 54, %s15
        %p5130 = scmp.lt.s32.totalorder %s5129, 107
        %s5131 = scalar_select %p5130, %s5129, 107
        %s5132 = smul.addr %s5131, 8
        %s5133 = scalar_lea.vmem %s3, %s5132
      $region51: #{relu_dwconv3x3.1} parent=46 // pred_fallthru
        _
    $region47: #{relu_dwconv3x3.1} parent=5 // pred_fallthru
      _
  $region6: #{relu_dwconv3x3.1} parent=0 // loop_footer
    %s13 = sadd.s32 1, %s9
  $region7: #{relu_dwconv3x3.1} parent=0 // loop_footer_branch
    %8 = sbr.rel target = $region3
  $region8: #{relu_dwconv3x3.1} parent=0 // loop_exit
    _

</llo_original>
